<compile_context>
chip_gen: v7x
topology: tpu7x:2x2x1
jax: 0.10.0
libtpu: 0.0.40
codegen_flags: <defaults>
</compile_context>

<pallas_src>
import jax
import jax.numpy as jnp
from jax import lax
from jax.experimental import pallas as pl
from jax.experimental.pallas import tpu as pltpu


def encoder_rnn_kernel(x_ref, wcomb_ref, whh_f_ref, whh_b_ref,
                       bhn_f_ref, bhn_b_ref,
                       out_ref, hid_ref, gi_ref):
    T, Bp, Hp = out_ref.shape

    # One MXU matmul: input-side gate pre-activations for BOTH directions, all
    # timesteps.  The Linear layer and all additive biases are folded into wcomb
    # (ones-column trick), so there is no broadcast-add epilogue here.
    gi_ref[...] = jnp.dot(x_ref[...], wcomb_ref[...],
                          preferred_element_type=jnp.float32)

    # Hoist loop-invariant loads / broadcasts (JAX does not CSE broadcast_in_dim).
    whh_f = whh_f_ref[...]
    whh_b = whh_b_ref[...]
    bhn_f = jnp.broadcast_to(bhn_f_ref[...], (Bp, Hp))   # n-gate hidden bias only
    bhn_b = jnp.broadcast_to(bhn_b_ref[...], (Bp, Hp))

    h0 = jnp.zeros((Bp, Hp), dtype=jnp.float32)

    def sigm(v):
        # sigmoid via a single tanh -> one EUP op on the serial chain.
        return 0.5 * (jnp.tanh(0.5 * v) + 1.0)

    def cell(gi, h_prev, whh, bhn):
        # Only the h-side matmul remains on the serial critical path.
        gh = jnp.dot(h_prev, whh, preferred_element_type=jnp.float32)
        # Gate order [r, z, n]; Hp is a multiple of 128 so these are lane-aligned views.
        i_r, i_z, i_n = gi[:, :Hp], gi[:, Hp:2 * Hp], gi[:, 2 * Hp:3 * Hp]
        h_r, h_z, h_n = gh[:, :Hp], gh[:, Hp:2 * Hp], gh[:, 2 * Hp:3 * Hp]
        r = sigm(i_r + h_r)
        z = sigm(i_z + h_z)
        n = jnp.tanh(i_n + r * (h_n + bhn))
        return (1.0 - z) * n + z * h_prev

    def gi_slab(t, col0):
        row = t * Bp
        if not isinstance(row, int):
            row = pl.multiple_of(row, Bp)
        return gi_ref[pl.ds(row, Bp), col0:col0 + 3 * Hp]

    def step(t, tb, h_f, h_b):
        # Two independent dependence chains interleaved to hide MXU/EUP latency.
        h_f = cell(gi_slab(t, 0), h_f, whh_f, bhn_f)
        h_b = cell(gi_slab(tb, 3 * Hp), h_b, whh_b, bhn_b)
        return h_f, h_b

    half = T // 2
    unroll = True if T <= 32 else 8   # bounded unroll: avoid vreg spills at large T

    # Phase 1: rows t and T-1-t not written yet -> plain dense (8,128) stores.
    def body_store(t, carry):
        h_f, h_b = carry
        tb = T - 1 - t
        h_f, h_b = step(t, tb, h_f, h_b)
        out_ref[t] = h_f
        out_ref[tb] = h_b
        return (h_f, h_b)

    h_f, h_b = lax.fori_loop(0, half, body_store, (h0, h0), unroll=unroll)

    # Odd-T middle step: both directions hit the same row -> store the sum once.
    if T % 2 == 1:
        h_f, h_b = step(half, half, h_f, h_b)
        out_ref[half] = h_f + h_b

    # Phase 2: both rows already written by the other direction -> read-add-write
    # (hides under the h-side matmul slack; no separate bwd scratch / epilogue pass).
    def body_add(t, carry):
        h_f, h_b = carry
        tb = T - 1 - t
        h_f, h_b = step(t, tb, h_f, h_b)
        out_ref[t] = out_ref[t] + h_f
        out_ref[tb] = out_ref[tb] + h_b
        return (h_f, h_b)

    h_f, h_b = lax.fori_loop(half + (T % 2), T, body_add, (h_f, h_b),
                             unroll=unroll)

    hid_ref[0] = h_f
    hid_ref[1] = h_b


def _round_up(x, m):
    return (x + m - 1) // m * m


def encoder_rnn_forward(x, params):
    T, B, Din = x.shape
    H = params["w_in"].shape[1]
    Bp = _round_up(max(B, 8), 8)       # sublane multiple
    Hp = _round_up(H, 128)             # lane multiple -> aligned gate splits, dense stores
    Dinp = _round_up(Din + 1, 128)     # +1 guarantees a spare K column for the folded bias

    def pad_gates_last(w):
        # last dim is 3H laid out [r|z|n]; pad each gate block to Hp -> 3Hp
        parts = [w[..., g * H:(g + 1) * H] for g in range(3)]
        pad = [(0, 0)] * (w.ndim - 1) + [(0, Hp - H)]
        return jnp.concatenate([jnp.pad(p, pad) for p in parts], axis=-1)

    def fold(w_ih, b_ih, b_hh):
        # Fold nn.Linear into the GRU input weights, and fold every purely-additive
        # bias (b_in@W_ih + b_ih + b_hh[r,z]) into an extra row multiplied by the
        # ones-column of x.  b_hh[n] stays out (it sits inside r*(...) in the GRU).
        w_comb = params["w_in"] @ w_ih                                   # (Din, 3H)
        b_rz = jnp.concatenate([b_hh[:, :2 * H],
                                jnp.zeros((1, H), jnp.float32)], axis=-1)
        b_row = params["b_in"] @ w_ih + b_ih + b_rz                      # (1, 3H)
        w_full = jnp.concatenate([w_comb, b_row], axis=0)                # (Din+1, 3H)
        w_full = pad_gates_last(w_full)                                  # (Din+1, 3Hp)
        return jnp.pad(w_full, ((0, Dinp - Din - 1), (0, 0)))            # (Dinp, 3Hp)

    wc_f = fold(params["w_ih_f"], params["b_ih_f"], params["b_hh_f"])
    wc_b = fold(params["w_ih_b"], params["b_ih_b"], params["b_hh_b"])
    w_comb = jnp.concatenate([wc_f, wc_b], axis=-1)                      # (Dinp, 6Hp)

    def pad_hh(w_hh):
        w = pad_gates_last(w_hh)                                         # (H, 3Hp)
        return jnp.pad(w, ((0, Hp - H), (0, 0)))                         # (Hp, 3Hp)

    whh_f = pad_hh(params["w_hh_f"])
    whh_b = pad_hh(params["w_hh_b"])
    # n-gate hidden bias (the only bias kept inside the recurrence).
    bhn_f = jnp.pad(params["b_hh_f"][:, 2 * H:3 * H], ((0, 0), (0, Hp - H)))
    bhn_b = jnp.pad(params["b_hh_b"][:, 2 * H:3 * H], ((0, 0), (0, Hp - H)))

    # Pad batch/feature, add the bias ones-column in the K padding, flatten outside
    # the kernel (free XLA layout work).
    x_pad = jnp.pad(x, ((0, 0), (0, Bp - B), (0, Dinp - Din)))
    ones_col = (jnp.arange(Dinp) == Din).astype(x.dtype)
    x_flat = (x_pad + ones_col).reshape(T * Bp, Dinp)

    # VMEM budget: actual footprint with headroom, capped below v7x-safe limits.
    est = 4 * (T * Bp * Dinp + Dinp * 6 * Hp + 2 * Hp * 3 * Hp + 2 * Hp
               + T * Bp * 6 * Hp + T * Bp * Hp + 2 * Bp * Hp)
    vmem_limit = int(min(48 * 1024 * 1024, max(32 * 1024 * 1024, 2 * est)))

    vmem = pl.BlockSpec(memory_space=pltpu.MemorySpace.VMEM)
    out_p, hid_p = pl.pallas_call(
        encoder_rnn_kernel,
        out_shape=(jax.ShapeDtypeStruct((T, Bp, Hp), jnp.float32),
                   jax.ShapeDtypeStruct((2, Bp, Hp), jnp.float32)),
        in_specs=[vmem] * 6,
        out_specs=(vmem, vmem),
        scratch_shapes=[pltpu.VMEM((T * Bp, 6 * Hp), jnp.float32)],   # gi (both dirs)
        compiler_params=pltpu.CompilerParams(vmem_limit_bytes=vmem_limit),
    )(x_flat, w_comb, whh_f, whh_b, bhn_f, bhn_b)

    # Strip padding.
    return out_p[:, :B, :H], hid_p[:, :B, :H]


def make_params(key, input_size, hidden_size):
    """Deterministic synthetic parameters (same shapes as the PyTorch module)."""
    H = hidden_size
    ks = jax.random.split(key, 11)
    scale = 1.0 / jnp.sqrt(jnp.float32(H))
    u = lambda k, shape: jax.random.uniform(k, shape, jnp.float32, -scale, scale)
    return {
        # nn.Linear(input_size, H): weight (H, Din) stored transposed as (Din, H)
        "w_in": u(ks[0], (input_size, H)),
        "b_in": u(ks[1], (1, H)),
        # nn.GRU weight_ih_l0 (3H, H) stored transposed as (H, 3H); gate order [r, z, n]
        "w_ih_f": u(ks[2], (H, 3 * H)),
        "w_hh_f": u(ks[3], (H, 3 * H)),
        "b_ih_f": u(ks[4], (1, 3 * H)),
        "b_hh_f": u(ks[5], (1, 3 * H)),
        "w_ih_b": u(ks[6], (H, 3 * H)),
        "w_hh_b": u(ks[7], (H, 3 * H)),
        "b_ih_b": u(ks[8], (1, 3 * H)),
        "b_hh_b": u(ks[9], (1, 3 * H)),
    }


def _gru_cell_ref(x_t, h_prev, w_ih, w_hh, b_ih, b_hh, H):
    gi = jnp.dot(x_t, w_ih, preferred_element_type=jnp.float32) + b_ih
    gh = jnp.dot(h_prev, w_hh, preferred_element_type=jnp.float32) + b_hh
    i_r, i_z, i_n = gi[:, :H], gi[:, H:2 * H], gi[:, 2 * H:]
    h_r, h_z, h_n = gh[:, :H], gh[:, H:2 * H], gh[:, 2 * H:]
    r = jax.nn.sigmoid(i_r + h_r)
    z = jax.nn.sigmoid(i_z + h_z)
    n = jnp.tanh(i_n + r * h_n)
    return (1.0 - z) * n + z * h_prev


def reference_forward(x, params):
    """Pure-JAX reference (mirrors PyTorch EncoderRNN.forward with hidden=None)."""
    H = params["w_in"].shape[1]
    xl = jnp.einsum("tbd,dh->tbh", x, params["w_in"]) + params["b_in"][0]

    def run_dir(xs, w_ih, w_hh, b_ih, b_hh):
        def step(h, x_t):
            h_new = _gru_cell_ref(x_t, h, w_ih, w_hh, b_ih, b_hh, H)
            return h_new, h_new
        h0 = jnp.zeros((x.shape[1], H), jnp.float32)
        h_last, ys = lax.scan(step, h0, xs)
        return ys, h_last

    out_f, h_f = run_dir(xl, params["w_ih_f"], params["w_hh_f"],
                         params["b_ih_f"], params["b_hh_f"])
    out_b_rev, h_b = run_dir(xl[::-1], params["w_ih_b"], params["w_hh_b"],
                             params["b_ih_b"], params["b_hh_b"])
    out_b = out_b_rev[::-1]
    return out_f + out_b, jnp.stack([h_f, h_b], axis=0)


if __name__ == "__main__":
    T, B, INPUT_SIZE, HIDDEN_SIZE = 8, 2, 16, 32

    key = jax.random.PRNGKey(0)
    k_x, k_p = jax.random.split(key)
    x = jax.random.normal(k_x, (T, B, INPUT_SIZE), dtype=jnp.float32)
    params = make_params(k_p, INPUT_SIZE, HIDDEN_SIZE)

    outputs, hidden = jax.block_until_ready(encoder_rnn_forward(x, params))

    ref_out, ref_hid = reference_forward(x, params)
    assert outputs.shape == (T, B, HIDDEN_SIZE)
    assert hidden.shape == (2, B, HIDDEN_SIZE)
    assert jnp.allclose(outputs, ref_out, rtol=1e-4, atol=1e-4)
    assert jnp.allclose(hidden, ref_hid, rtol=1e-4, atol=1e-4)

    # TODO(synk): GRU dropout is a no-op for n_layers=1 (PyTorch only applies it between
    # stacked layers) and flatten_parameters is CUDA-only, so neither is implemented.
    print("KERNEL_OK")
</pallas_src>

<mosaic_0001>
module attributes {stable_mosaic.version = 11 : i64} {
  func.func @encoder_rnn_kernel(%arg0: memref<64x128xf32, #tpu.memory_space<vmem>>, %arg1: memref<128x768xf32, #tpu.memory_space<vmem>>, %arg2: memref<128x384xf32, #tpu.memory_space<vmem>>, %arg3: memref<128x384xf32, #tpu.memory_space<vmem>>, %arg4: memref<1x128xf32, #tpu.memory_space<vmem>>, %arg5: memref<1x128xf32, #tpu.memory_space<vmem>>, %arg6: memref<8x8x128xf32, #tpu.memory_space<vmem>>, %arg7: memref<2x8x128xf32, #tpu.memory_space<vmem>>, %arg8: memref<64x768xf32, #tpu.memory_space<vmem>>) attributes {dimension_semantics = [], scalar_prefetch = 0 : i64, scratch_operands = 1 : i64, tpu.core_type = #tpu.core_type<tc>} {
    %c0 = arith.constant 0 : index
    %c0_0 = arith.constant 0 : index
    %0 = vector.load %arg0[%c0, %c0_0] : memref<64x128xf32, #tpu.memory_space<vmem>>, vector<64x128xf32>
    %c0_1 = arith.constant 0 : index
    %c0_2 = arith.constant 0 : index
    %1 = vector.load %arg1[%c0_1, %c0_2] : memref<128x768xf32, #tpu.memory_space<vmem>>, vector<128x768xf32>
    %cst = arith.constant dense<0.000000e+00> : vector<64x768xf32>
    %2 = tpu.matmul %0, %1, %cst {dimension_numbers = #tpu.dot_dimension_numbers<[1], [0], [0], [1], [0, 0, 1, 1], [], []>} : vector<64x128xf32>, vector<128x768xf32>, vector<64x768xf32> -> vector<64x768xf32>
    %c0_3 = arith.constant 0 : index
    %c0_4 = arith.constant 0 : index
    %3 = vector.load %arg8[%c0_3, %c0_4] : memref<64x768xf32, #tpu.memory_space<vmem>>, vector<64x768xf32>
    tpu.vector_store %arg8[%c0_3, %c0_4], %2 {strides = array<i32>} : memref<64x768xf32, #tpu.memory_space<vmem>>, vector<64x768xf32>,
    %c0_5 = arith.constant 0 : index
    %c0_6 = arith.constant 0 : index
    %4 = vector.load %arg2[%c0_5, %c0_6] : memref<128x384xf32, #tpu.memory_space<vmem>>, vector<128x384xf32>
    %c0_7 = arith.constant 0 : index
    %c0_8 = arith.constant 0 : index
    %5 = vector.load %arg3[%c0_7, %c0_8] : memref<128x384xf32, #tpu.memory_space<vmem>>, vector<128x384xf32>
    %c0_9 = arith.constant 0 : index
    %c0_10 = arith.constant 0 : index
    %6 = vector.load %arg4[%c0_9, %c0_10] : memref<1x128xf32, #tpu.memory_space<vmem>>, vector<1x128xf32>
    %7 = vector.shape_cast %6 : vector<1x128xf32> to vector<1x128xf32>
    %8 = vector.broadcast %7 : vector<1x128xf32> to vector<8x128xf32>
    %c0_11 = arith.constant 0 : index
    %c0_12 = arith.constant 0 : index
    %9 = vector.load %arg5[%c0_11, %c0_12] : memref<1x128xf32, #tpu.memory_space<vmem>>, vector<1x128xf32>
    %10 = vector.shape_cast %9 : vector<1x128xf32> to vector<1x128xf32>
    %11 = vector.broadcast %10 : vector<1x128xf32> to vector<8x128xf32>
    %cst_13 = arith.constant 0.000000e+00 : f32
    %12 = vector.broadcast %cst_13 : f32 to vector<8x128xf32>
    %c0_i32 = arith.constant 0 : i32
    %c7_i32 = arith.constant 7 : i32
    %13 = arith.subi %c7_i32, %c0_i32 : i32
    %c8_i32 = arith.constant 8 : i32
    %14 = arith.muli %c0_i32, %c8_i32 : i32
    %15 = tpu.assume_multiple %14, 8 : i32
    %16 = arith.index_cast %15 : i32 to index
    %c0_14 = arith.constant 0 : index
    %17 = vector.load %arg8[%16, %c0_14] : memref<64x768xf32, #tpu.memory_space<vmem>>, vector<8x384xf32>
    %cst_15 = arith.constant dense<0.000000e+00> : vector<8x384xf32>
    %18 = tpu.matmul %12, %4, %cst_15 {dimension_numbers = #tpu.dot_dimension_numbers<[1], [0], [0], [1], [0, 0, 1, 1], [], []>} : vector<8x128xf32>, vector<128x384xf32>, vector<8x384xf32> -> vector<8x384xf32>
    %19 = vector.extract_strided_slice %17 {offsets = [0, 0], sizes = [8, 128], strides = [1, 1]} : vector<8x384xf32> to vector<8x128xf32>
    %20 = vector.extract_strided_slice %17 {offsets = [0, 128], sizes = [8, 128], strides = [1, 1]} : vector<8x384xf32> to vector<8x128xf32>
    %21 = vector.extract_strided_slice %17 {offsets = [0, 256], sizes = [8, 128], strides = [1, 1]} : vector<8x384xf32> to vector<8x128xf32>
    %22 = vector.extract_strided_slice %18 {offsets = [0, 0], sizes = [8, 128], strides = [1, 1]} : vector<8x384xf32> to vector<8x128xf32>
    %23 = vector.extract_strided_slice %18 {offsets = [0, 128], sizes = [8, 128], strides = [1, 1]} : vector<8x384xf32> to vector<8x128xf32>
    %24 = vector.extract_strided_slice %18 {offsets = [0, 256], sizes = [8, 128], strides = [1, 1]} : vector<8x384xf32> to vector<8x128xf32>
    %25 = arith.addf %19, %22 : vector<8x128xf32>
    %cst_16 = arith.constant 5.000000e-01 : f32
    %26 = vector.broadcast %cst_16 : f32 to vector<8x128xf32>
    %27 = arith.mulf %26, %25 : vector<8x128xf32>
    %28 = math.tanh %27 : vector<8x128xf32>
    %cst_17 = arith.constant 1.000000e+00 : f32
    %29 = vector.broadcast %cst_17 : f32 to vector<8x128xf32>
    %30 = arith.addf %28, %29 : vector<8x128xf32>
    %cst_18 = arith.constant 5.000000e-01 : f32
    %31 = vector.broadcast %cst_18 : f32 to vector<8x128xf32>
    %32 = arith.mulf %31, %30 : vector<8x128xf32>
    %33 = arith.addf %20, %23 : vector<8x128xf32>
    %cst_19 = arith.constant 5.000000e-01 : f32
    %34 = vector.broadcast %cst_19 : f32 to vector<8x128xf32>
    %35 = arith.mulf %34, %33 : vector<8x128xf32>
    %36 = math.tanh %35 : vector<8x128xf32>
    %cst_20 = arith.constant 1.000000e+00 : f32
    %37 = vector.broadcast %cst_20 : f32 to vector<8x128xf32>
    %38 = arith.addf %36, %37 : vector<8x128xf32>
    %cst_21 = arith.constant 5.000000e-01 : f32
    %39 = vector.broadcast %cst_21 : f32 to vector<8x128xf32>
    %40 = arith.mulf %39, %38 : vector<8x128xf32>
    %41 = arith.addf %24, %8 : vector<8x128xf32>
    %42 = arith.mulf %32, %41 : vector<8x128xf32>
    %43 = arith.addf %21, %42 : vector<8x128xf32>
    %44 = math.tanh %43 : vector<8x128xf32>
    %cst_22 = arith.constant 1.000000e+00 : f32
    %45 = vector.broadcast %cst_22 : f32 to vector<8x128xf32>
    %46 = arith.subf %45, %40 : vector<8x128xf32>
    %47 = arith.mulf %46, %44 : vector<8x128xf32>
    %48 = arith.mulf %40, %12 : vector<8x128xf32>
    %49 = arith.addf %47, %48 : vector<8x128xf32>
    %c8_i32_23 = arith.constant 8 : i32
    %50 = arith.muli %13, %c8_i32_23 : i32
    %51 = tpu.assume_multiple %50, 8 : i32
    %52 = arith.index_cast %51 : i32 to index
    %c384 = arith.constant 384 : index
    %53 = vector.load %arg8[%52, %c384] : memref<64x768xf32, #tpu.memory_space<vmem>>, vector<8x384xf32>
    %cst_24 = arith.constant dense<0.000000e+00> : vector<8x384xf32>
    %54 = tpu.matmul %12, %5, %cst_24 {dimension_numbers = #tpu.dot_dimension_numbers<[1], [0], [0], [1], [0, 0, 1, 1], [], []>} : vector<8x128xf32>, vector<128x384xf32>, vector<8x384xf32> -> vector<8x384xf32>
    %55 = vector.extract_strided_slice %53 {offsets = [0, 0], sizes = [8, 128], strides = [1, 1]} : vector<8x384xf32> to vector<8x128xf32>
    %56 = vector.extract_strided_slice %53 {offsets = [0, 128], sizes = [8, 128], strides = [1, 1]} : vector<8x384xf32> to vector<8x128xf32>
    %57 = vector.extract_strided_slice %53 {offsets = [0, 256], sizes = [8, 128], strides = [1, 1]} : vector<8x384xf32> to vector<8x128xf32>
    %58 = vector.extract_strided_slice %54 {offsets = [0, 0], sizes = [8, 128], strides = [1, 1]} : vector<8x384xf32> to vector<8x128xf32>
    %59 = vector.extract_strided_slice %54 {offsets = [0, 128], sizes = [8, 128], strides = [1, 1]} : vector<8x384xf32> to vector<8x128xf32>
    %60 = vector.extract_strided_slice %54 {offsets = [0, 256], sizes = [8, 128], strides = [1, 1]} : vector<8x384xf32> to vector<8x128xf32>
    %61 = arith.addf %55, %58 : vector<8x128xf32>
    %cst_25 = arith.constant 5.000000e-01 : f32
    %62 = vector.broadcast %cst_25 : f32 to vector<8x128xf32>
    %63 = arith.mulf %62, %61 : vector<8x128xf32>
    %64 = math.tanh %63 : vector<8x128xf32>
    %cst_26 = arith.constant 1.000000e+00 : f32
    %65 = vector.broadcast %cst_26 : f32 to vector<8x128xf32>
    %66 = arith.addf %64, %65 : vector<8x128xf32>
    %cst_27 = arith.constant 5.000000e-01 : f32
    %67 = vector.broadcast %cst_27 : f32 to vector<8x128xf32>
    %68 = arith.mulf %67, %66 : vector<8x128xf32>
    %69 = arith.addf %56, %59 : vector<8x128xf32>
    %cst_28 = arith.constant 5.000000e-01 : f32
    %70 = vector.broadcast %cst_28 : f32 to vector<8x128xf32>
    %71 = arith.mulf %70, %69 : vector<8x128xf32>
    %72 = math.tanh %71 : vector<8x128xf32>
    %cst_29 = arith.constant 1.000000e+00 : f32
    %73 = vector.broadcast %cst_29 : f32 to vector<8x128xf32>
    %74 = arith.addf %72, %73 : vector<8x128xf32>
    %cst_30 = arith.constant 5.000000e-01 : f32
    %75 = vector.broadcast %cst_30 : f32 to vector<8x128xf32>
    %76 = arith.mulf %75, %74 : vector<8x128xf32>
    %77 = arith.addf %60, %11 : vector<8x128xf32>
    %78 = arith.mulf %68, %77 : vector<8x128xf32>
    %79 = arith.addf %57, %78 : vector<8x128xf32>
    %80 = math.tanh %79 : vector<8x128xf32>
    %cst_31 = arith.constant 1.000000e+00 : f32
    %81 = vector.broadcast %cst_31 : f32 to vector<8x128xf32>
    %82 = arith.subf %81, %76 : vector<8x128xf32>
    %83 = arith.mulf %82, %80 : vector<8x128xf32>
    %84 = arith.mulf %76, %12 : vector<8x128xf32>
    %85 = arith.addf %83, %84 : vector<8x128xf32>
    %86 = arith.index_cast %c0_i32 : i32 to index
    %c0_32 = arith.constant 0 : index
    %c0_33 = arith.constant 0 : index
    %87 = vector.load %arg6[%86, %c0_32, %c0_33] : memref<8x8x128xf32, #tpu.memory_space<vmem>>, vector<1x8x128xf32>
    %88 = vector.shape_cast %87 : vector<1x8x128xf32> to vector<8x128xf32>
    %89 = vector.shape_cast %49 : vector<8x128xf32> to vector<1x8x128xf32>
    tpu.vector_store %arg6[%86, %c0_32, %c0_33], %89 {strides = array<i32>} : memref<8x8x128xf32, #tpu.memory_space<vmem>>, vector<1x8x128xf32>,
    %90 = arith.index_cast %13 : i32 to index
    %c0_34 = arith.constant 0 : index
    %c0_35 = arith.constant 0 : index
    %91 = vector.load %arg6[%90, %c0_34, %c0_35] : memref<8x8x128xf32, #tpu.memory_space<vmem>>, vector<1x8x128xf32>
    %92 = vector.shape_cast %91 : vector<1x8x128xf32> to vector<8x128xf32>
    %93 = vector.shape_cast %85 : vector<8x128xf32> to vector<1x8x128xf32>
    tpu.vector_store %arg6[%90, %c0_34, %c0_35], %93 {strides = array<i32>} : memref<8x8x128xf32, #tpu.memory_space<vmem>>, vector<1x8x128xf32>,
    %c1_i32 = arith.constant 1 : i32
    %c7_i32_36 = arith.constant 7 : i32
    %94 = arith.subi %c7_i32_36, %c1_i32 : i32
    %c8_i32_37 = arith.constant 8 : i32
    %95 = arith.muli %c1_i32, %c8_i32_37 : i32
    %96 = tpu.assume_multiple %95, 8 : i32
    %97 = arith.index_cast %96 : i32 to index
    %c0_38 = arith.constant 0 : index
    %98 = vector.load %arg8[%97, %c0_38] : memref<64x768xf32, #tpu.memory_space<vmem>>, vector<8x384xf32>
    %cst_39 = arith.constant dense<0.000000e+00> : vector<8x384xf32>
    %99 = tpu.matmul %49, %4, %cst_39 {dimension_numbers = #tpu.dot_dimension_numbers<[1], [0], [0], [1], [0, 0, 1, 1], [], []>} : vector<8x128xf32>, vector<128x384xf32>, vector<8x384xf32> -> vector<8x384xf32>
    %100 = vector.extract_strided_slice %98 {offsets = [0, 0], sizes = [8, 128], strides = [1, 1]} : vector<8x384xf32> to vector<8x128xf32>
    %101 = vector.extract_strided_slice %98 {offsets = [0, 128], sizes = [8, 128], strides = [1, 1]} : vector<8x384xf32> to vector<8x128xf32>
    %102 = vector.extract_strided_slice %98 {offsets = [0, 256], sizes = [8, 128], strides = [1, 1]} : vector<8x384xf32> to vector<8x128xf32>
    %103 = vector.extract_strided_slice %99 {offsets = [0, 0], sizes = [8, 128], strides = [1, 1]} : vector<8x384xf32> to vector<8x128xf32>
    %104 = vector.extract_strided_slice %99 {offsets = [0, 128], sizes = [8, 128], strides = [1, 1]} : vector<8x384xf32> to vector<8x128xf32>
    %105 = vector.extract_strided_slice %99 {offsets = [0, 256], sizes = [8, 128], strides = [1, 1]} : vector<8x384xf32> to vector<8x128xf32>
    %106 = arith.addf %100, %103 : vector<8x128xf32>
    %cst_40 = arith.constant 5.000000e-01 : f32
    %107 = vector.broadcast %cst_40 : f32 to vector<8x128xf32>
    %108 = arith.mulf %107, %106 : vector<8x128xf32>
    %109 = math.tanh %108 : vector<8x128xf32>
    %cst_41 = arith.constant 1.000000e+00 : f32
    %110 = vector.broadcast %cst_41 : f32 to vector<8x128xf32>
    %111 = arith.addf %109, %110 : vector<8x128xf32>
    %cst_42 = arith.constant 5.000000e-01 : f32
    %112 = vector.broadcast %cst_42 : f32 to vector<8x128xf32>
    %113 = arith.mulf %112, %111 : vector<8x128xf32>
    %114 = arith.addf %101, %104 : vector<8x128xf32>
    %cst_43 = arith.constant 5.000000e-01 : f32
    %115 = vector.broadcast %cst_43 : f32 to vector<8x128xf32>
    %116 = arith.mulf %115, %114 : vector<8x128xf32>
    %117 = math.tanh %116 : vector<8x128xf32>
    %cst_44 = arith.constant 1.000000e+00 : f32
    %118 = vector.broadcast %cst_44 : f32 to vector<8x128xf32>
    %119 = arith.addf %117, %118 : vector<8x128xf32>
    %cst_45 = arith.constant 5.000000e-01 : f32
    %120 = vector.broadcast %cst_45 : f32 to vector<8x128xf32>
    %121 = arith.mulf %120, %119 : vector<8x128xf32>
    %122 = arith.addf %105, %8 : vector<8x128xf32>
    %123 = arith.mulf %113, %122 : vector<8x128xf32>
    %124 = arith.addf %102, %123 : vector<8x128xf32>
    %125 = math.tanh %124 : vector<8x128xf32>
    %cst_46 = arith.constant 1.000000e+00 : f32
    %126 = vector.broadcast %cst_46 : f32 to vector<8x128xf32>
    %127 = arith.subf %126, %121 : vector<8x128xf32>
    %128 = arith.mulf %127, %125 : vector<8x128xf32>
    %129 = arith.mulf %121, %49 : vector<8x128xf32>
    %130 = arith.addf %128, %129 : vector<8x128xf32>
    %c8_i32_47 = arith.constant 8 : i32
    %131 = arith.muli %94, %c8_i32_47 : i32
    %132 = tpu.assume_multiple %131, 8 : i32
    %133 = arith.index_cast %132 : i32 to index
    %c384_48 = arith.constant 384 : index
    %134 = vector.load %arg8[%133, %c384_48] : memref<64x768xf32, #tpu.memory_space<vmem>>, vector<8x384xf32>
    %cst_49 = arith.constant dense<0.000000e+00> : vector<8x384xf32>
    %135 = tpu.matmul %85, %5, %cst_49 {dimension_numbers = #tpu.dot_dimension_numbers<[1], [0], [0], [1], [0, 0, 1, 1], [], []>} : vector<8x128xf32>, vector<128x384xf32>, vector<8x384xf32> -> vector<8x384xf32>
    %136 = vector.extract_strided_slice %134 {offsets = [0, 0], sizes = [8, 128], strides = [1, 1]} : vector<8x384xf32> to vector<8x128xf32>
    %137 = vector.extract_strided_slice %134 {offsets = [0, 128], sizes = [8, 128], strides = [1, 1]} : vector<8x384xf32> to vector<8x128xf32>
    %138 = vector.extract_strided_slice %134 {offsets = [0, 256], sizes = [8, 128], strides = [1, 1]} : vector<8x384xf32> to vector<8x128xf32>
    %139 = vector.extract_strided_slice %135 {offsets = [0, 0], sizes = [8, 128], strides = [1, 1]} : vector<8x384xf32> to vector<8x128xf32>
    %140 = vector.extract_strided_slice %135 {offsets = [0, 128], sizes = [8, 128], strides = [1, 1]} : vector<8x384xf32> to vector<8x128xf32>
    %141 = vector.extract_strided_slice %135 {offsets = [0, 256], sizes = [8, 128], strides = [1, 1]} : vector<8x384xf32> to vector<8x128xf32>
    %142 = arith.addf %136, %139 : vector<8x128xf32>
    %cst_50 = arith.constant 5.000000e-01 : f32
    %143 = vector.broadcast %cst_50 : f32 to vector<8x128xf32>
    %144 = arith.mulf %143, %142 : vector<8x128xf32>
    %145 = math.tanh %144 : vector<8x128xf32>
    %cst_51 = arith.constant 1.000000e+00 : f32
    %146 = vector.broadcast %cst_51 : f32 to vector<8x128xf32>
    %147 = arith.addf %145, %146 : vector<8x128xf32>
    %cst_52 = arith.constant 5.000000e-01 : f32
    %148 = vector.broadcast %cst_52 : f32 to vector<8x128xf32>
    %149 = arith.mulf %148, %147 : vector<8x128xf32>
    %150 = arith.addf %137, %140 : vector<8x128xf32>
    %cst_53 = arith.constant 5.000000e-01 : f32
    %151 = vector.broadcast %cst_53 : f32 to vector<8x128xf32>
    %152 = arith.mulf %151, %150 : vector<8x128xf32>
    %153 = math.tanh %152 : vector<8x128xf32>
    %cst_54 = arith.constant 1.000000e+00 : f32
    %154 = vector.broadcast %cst_54 : f32 to vector<8x128xf32>
    %155 = arith.addf %153, %154 : vector<8x128xf32>
    %cst_55 = arith.constant 5.000000e-01 : f32
    %156 = vector.broadcast %cst_55 : f32 to vector<8x128xf32>
    %157 = arith.mulf %156, %155 : vector<8x128xf32>
    %158 = arith.addf %141, %11 : vector<8x128xf32>
    %159 = arith.mulf %149, %158 : vector<8x128xf32>
    %160 = arith.addf %138, %159 : vector<8x128xf32>
    %161 = math.tanh %160 : vector<8x128xf32>
    %cst_56 = arith.constant 1.000000e+00 : f32
    %162 = vector.broadcast %cst_56 : f32 to vector<8x128xf32>
    %163 = arith.subf %162, %157 : vector<8x128xf32>
    %164 = arith.mulf %163, %161 : vector<8x128xf32>
    %165 = arith.mulf %157, %85 : vector<8x128xf32>
    %166 = arith.addf %164, %165 : vector<8x128xf32>
    %167 = arith.index_cast %c1_i32 : i32 to index
    %c0_57 = arith.constant 0 : index
    %c0_58 = arith.constant 0 : index
    %168 = vector.load %arg6[%167, %c0_57, %c0_58] : memref<8x8x128xf32, #tpu.memory_space<vmem>>, vector<1x8x128xf32>
    %169 = vector.shape_cast %168 : vector<1x8x128xf32> to vector<8x128xf32>
    %170 = vector.shape_cast %130 : vector<8x128xf32> to vector<1x8x128xf32>
    tpu.vector_store %arg6[%167, %c0_57, %c0_58], %170 {strides = array<i32>} : memref<8x8x128xf32, #tpu.memory_space<vmem>>, vector<1x8x128xf32>,
    %171 = arith.index_cast %94 : i32 to index
    %c0_59 = arith.constant 0 : index
    %c0_60 = arith.constant 0 : index
    %172 = vector.load %arg6[%171, %c0_59, %c0_60] : memref<8x8x128xf32, #tpu.memory_space<vmem>>, vector<1x8x128xf32>
    %173 = vector.shape_cast %172 : vector<1x8x128xf32> to vector<8x128xf32>
    %174 = vector.shape_cast %166 : vector<8x128xf32> to vector<1x8x128xf32>
    tpu.vector_store %arg6[%171, %c0_59, %c0_60], %174 {strides = array<i32>} : memref<8x8x128xf32, #tpu.memory_space<vmem>>, vector<1x8x128xf32>,
    %c2_i32 = arith.constant 2 : i32
    %c7_i32_61 = arith.constant 7 : i32
    %175 = arith.subi %c7_i32_61, %c2_i32 : i32
    %c8_i32_62 = arith.constant 8 : i32
    %176 = arith.muli %c2_i32, %c8_i32_62 : i32
    %177 = tpu.assume_multiple %176, 8 : i32
    %178 = arith.index_cast %177 : i32 to index
    %c0_63 = arith.constant 0 : index
    %179 = vector.load %arg8[%178, %c0_63] : memref<64x768xf32, #tpu.memory_space<vmem>>, vector<8x384xf32>
    %cst_64 = arith.constant dense<0.000000e+00> : vector<8x384xf32>
    %180 = tpu.matmul %130, %4, %cst_64 {dimension_numbers = #tpu.dot_dimension_numbers<[1], [0], [0], [1], [0, 0, 1, 1], [], []>} : vector<8x128xf32>, vector<128x384xf32>, vector<8x384xf32> -> vector<8x384xf32>
    %181 = vector.extract_strided_slice %179 {offsets = [0, 0], sizes = [8, 128], strides = [1, 1]} : vector<8x384xf32> to vector<8x128xf32>
    %182 = vector.extract_strided_slice %179 {offsets = [0, 128], sizes = [8, 128], strides = [1, 1]} : vector<8x384xf32> to vector<8x128xf32>
    %183 = vector.extract_strided_slice %179 {offsets = [0, 256], sizes = [8, 128], strides = [1, 1]} : vector<8x384xf32> to vector<8x128xf32>
    %184 = vector.extract_strided_slice %180 {offsets = [0, 0], sizes = [8, 128], strides = [1, 1]} : vector<8x384xf32> to vector<8x128xf32>
    %185 = vector.extract_strided_slice %180 {offsets = [0, 128], sizes = [8, 128], strides = [1, 1]} : vector<8x384xf32> to vector<8x128xf32>
    %186 = vector.extract_strided_slice %180 {offsets = [0, 256], sizes = [8, 128], strides = [1, 1]} : vector<8x384xf32> to vector<8x128xf32>
    %187 = arith.addf %181, %184 : vector<8x128xf32>
    %cst_65 = arith.constant 5.000000e-01 : f32
    %188 = vector.broadcast %cst_65 : f32 to vector<8x128xf32>
    %189 = arith.mulf %188, %187 : vector<8x128xf32>
    %190 = math.tanh %189 : vector<8x128xf32>
    %cst_66 = arith.constant 1.000000e+00 : f32
    %191 = vector.broadcast %cst_66 : f32 to vector<8x128xf32>
    %192 = arith.addf %190, %191 : vector<8x128xf32>
    %cst_67 = arith.constant 5.000000e-01 : f32
    %193 = vector.broadcast %cst_67 : f32 to vector<8x128xf32>
    %194 = arith.mulf %193, %192 : vector<8x128xf32>
    %195 = arith.addf %182, %185 : vector<8x128xf32>
    %cst_68 = arith.constant 5.000000e-01 : f32
    %196 = vector.broadcast %cst_68 : f32 to vector<8x128xf32>
    %197 = arith.mulf %196, %195 : vector<8x128xf32>
    %198 = math.tanh %197 : vector<8x128xf32>
    %cst_69 = arith.constant 1.000000e+00 : f32
    %199 = vector.broadcast %cst_69 : f32 to vector<8x128xf32>
    %200 = arith.addf %198, %199 : vector<8x128xf32>
    %cst_70 = arith.constant 5.000000e-01 : f32
    %201 = vector.broadcast %cst_70 : f32 to vector<8x128xf32>
    %202 = arith.mulf %201, %200 : vector<8x128xf32>
    %203 = arith.addf %186, %8 : vector<8x128xf32>
    %204 = arith.mulf %194, %203 : vector<8x128xf32>
    %205 = arith.addf %183, %204 : vector<8x128xf32>
    %206 = math.tanh %205 : vector<8x128xf32>
    %cst_71 = arith.constant 1.000000e+00 : f32
    %207 = vector.broadcast %cst_71 : f32 to vector<8x128xf32>
    %208 = arith.subf %207, %202 : vector<8x128xf32>
    %209 = arith.mulf %208, %206 : vector<8x128xf32>
    %210 = arith.mulf %202, %130 : vector<8x128xf32>
    %211 = arith.addf %209, %210 : vector<8x128xf32>
    %c8_i32_72 = arith.constant 8 : i32
    %212 = arith.muli %175, %c8_i32_72 : i32
    %213 = tpu.assume_multiple %212, 8 : i32
    %214 = arith.index_cast %213 : i32 to index
    %c384_73 = arith.constant 384 : index
    %215 = vector.load %arg8[%214, %c384_73] : memref<64x768xf32, #tpu.memory_space<vmem>>, vector<8x384xf32>
    %cst_74 = arith.constant dense<0.000000e+00> : vector<8x384xf32>
    %216 = tpu.matmul %166, %5, %cst_74 {dimension_numbers = #tpu.dot_dimension_numbers<[1], [0], [0], [1], [0, 0, 1, 1], [], []>} : vector<8x128xf32>, vector<128x384xf32>, vector<8x384xf32> -> vector<8x384xf32>
    %217 = vector.extract_strided_slice %215 {offsets = [0, 0], sizes = [8, 128], strides = [1, 1]} : vector<8x384xf32> to vector<8x128xf32>
    %218 = vector.extract_strided_slice %215 {offsets = [0, 128], sizes = [8, 128], strides = [1, 1]} : vector<8x384xf32> to vector<8x128xf32>
    %219 = vector.extract_strided_slice %215 {offsets = [0, 256], sizes = [8, 128], strides = [1, 1]} : vector<8x384xf32> to vector<8x128xf32>
    %220 = vector.extract_strided_slice %216 {offsets = [0, 0], sizes = [8, 128], strides = [1, 1]} : vector<8x384xf32> to vector<8x128xf32>
    %221 = vector.extract_strided_slice %216 {offsets = [0, 128], sizes = [8, 128], strides = [1, 1]} : vector<8x384xf32> to vector<8x128xf32>
    %222 = vector.extract_strided_slice %216 {offsets = [0, 256], sizes = [8, 128], strides = [1, 1]} : vector<8x384xf32> to vector<8x128xf32>
    %223 = arith.addf %217, %220 : vector<8x128xf32>
    %cst_75 = arith.constant 5.000000e-01 : f32
    %224 = vector.broadcast %cst_75 : f32 to vector<8x128xf32>
    %225 = arith.mulf %224, %223 : vector<8x128xf32>
    %226 = math.tanh %225 : vector<8x128xf32>
    %cst_76 = arith.constant 1.000000e+00 : f32
    %227 = vector.broadcast %cst_76 : f32 to vector<8x128xf32>
    %228 = arith.addf %226, %227 : vector<8x128xf32>
    %cst_77 = arith.constant 5.000000e-01 : f32
    %229 = vector.broadcast %cst_77 : f32 to vector<8x128xf32>
    %230 = arith.mulf %229, %228 : vector<8x128xf32>
    %231 = arith.addf %218, %221 : vector<8x128xf32>
    %cst_78 = arith.constant 5.000000e-01 : f32
    %232 = vector.broadcast %cst_78 : f32 to vector<8x128xf32>
    %233 = arith.mulf %232, %231 : vector<8x128xf32>
    %234 = math.tanh %233 : vector<8x128xf32>
    %cst_79 = arith.constant 1.000000e+00 : f32
    %235 = vector.broadcast %cst_79 : f32 to vector<8x128xf32>
    %236 = arith.addf %234, %235 : vector<8x128xf32>
    %cst_80 = arith.constant 5.000000e-01 : f32
    %237 = vector.broadcast %cst_80 : f32 to vector<8x128xf32>
    %238 = arith.mulf %237, %236 : vector<8x128xf32>
    %239 = arith.addf %222, %11 : vector<8x128xf32>
    %240 = arith.mulf %230, %239 : vector<8x128xf32>
    %241 = arith.addf %219, %240 : vector<8x128xf32>
    %242 = math.tanh %241 : vector<8x128xf32>
    %cst_81 = arith.constant 1.000000e+00 : f32
    %243 = vector.broadcast %cst_81 : f32 to vector<8x128xf32>
    %244 = arith.subf %243, %238 : vector<8x128xf32>
    %245 = arith.mulf %244, %242 : vector<8x128xf32>
    %246 = arith.mulf %238, %166 : vector<8x128xf32>
    %247 = arith.addf %245, %246 : vector<8x128xf32>
    %248 = arith.index_cast %c2_i32 : i32 to index
    %c0_82 = arith.constant 0 : index
    %c0_83 = arith.constant 0 : index
    %249 = vector.load %arg6[%248, %c0_82, %c0_83] : memref<8x8x128xf32, #tpu.memory_space<vmem>>, vector<1x8x128xf32>
    %250 = vector.shape_cast %249 : vector<1x8x128xf32> to vector<8x128xf32>
    %251 = vector.shape_cast %211 : vector<8x128xf32> to vector<1x8x128xf32>
    tpu.vector_store %arg6[%248, %c0_82, %c0_83], %251 {strides = array<i32>} : memref<8x8x128xf32, #tpu.memory_space<vmem>>, vector<1x8x128xf32>,
    %252 = arith.index_cast %175 : i32 to index
    %c0_84 = arith.constant 0 : index
    %c0_85 = arith.constant 0 : index
    %253 = vector.load %arg6[%252, %c0_84, %c0_85] : memref<8x8x128xf32, #tpu.memory_space<vmem>>, vector<1x8x128xf32>
    %254 = vector.shape_cast %253 : vector<1x8x128xf32> to vector<8x128xf32>
    %255 = vector.shape_cast %247 : vector<8x128xf32> to vector<1x8x128xf32>
    tpu.vector_store %arg6[%252, %c0_84, %c0_85], %255 {strides = array<i32>} : memref<8x8x128xf32, #tpu.memory_space<vmem>>, vector<1x8x128xf32>,
    %c3_i32 = arith.constant 3 : i32
    %c7_i32_86 = arith.constant 7 : i32
    %256 = arith.subi %c7_i32_86, %c3_i32 : i32
    %c8_i32_87 = arith.constant 8 : i32
    %257 = arith.muli %c3_i32, %c8_i32_87 : i32
    %258 = tpu.assume_multiple %257, 8 : i32
    %259 = arith.index_cast %258 : i32 to index
    %c0_88 = arith.constant 0 : index
    %260 = vector.load %arg8[%259, %c0_88] : memref<64x768xf32, #tpu.memory_space<vmem>>, vector<8x384xf32>
    %cst_89 = arith.constant dense<0.000000e+00> : vector<8x384xf32>
    %261 = tpu.matmul %211, %4, %cst_89 {dimension_numbers = #tpu.dot_dimension_numbers<[1], [0], [0], [1], [0, 0, 1, 1], [], []>} : vector<8x128xf32>, vector<128x384xf32>, vector<8x384xf32> -> vector<8x384xf32>
    %262 = vector.extract_strided_slice %260 {offsets = [0, 0], sizes = [8, 128], strides = [1, 1]} : vector<8x384xf32> to vector<8x128xf32>
    %263 = vector.extract_strided_slice %260 {offsets = [0, 128], sizes = [8, 128], strides = [1, 1]} : vector<8x384xf32> to vector<8x128xf32>
    %264 = vector.extract_strided_slice %260 {offsets = [0, 256], sizes = [8, 128], strides = [1, 1]} : vector<8x384xf32> to vector<8x128xf32>
    %265 = vector.extract_strided_slice %261 {offsets = [0, 0], sizes = [8, 128], strides = [1, 1]} : vector<8x384xf32> to vector<8x128xf32>
    %266 = vector.extract_strided_slice %261 {offsets = [0, 128], sizes = [8, 128], strides = [1, 1]} : vector<8x384xf32> to vector<8x128xf32>
    %267 = vector.extract_strided_slice %261 {offsets = [0, 256], sizes = [8, 128], strides = [1, 1]} : vector<8x384xf32> to vector<8x128xf32>
    %268 = arith.addf %262, %265 : vector<8x128xf32>
    %cst_90 = arith.constant 5.000000e-01 : f32
    %269 = vector.broadcast %cst_90 : f32 to vector<8x128xf32>
    %270 = arith.mulf %269, %268 : vector<8x128xf32>
    %271 = math.tanh %270 : vector<8x128xf32>
    %cst_91 = arith.constant 1.000000e+00 : f32
    %272 = vector.broadcast %cst_91 : f32 to vector<8x128xf32>
    %273 = arith.addf %271, %272 : vector<8x128xf32>
    %cst_92 = arith.constant 5.000000e-01 : f32
    %274 = vector.broadcast %cst_92 : f32 to vector<8x128xf32>
    %275 = arith.mulf %274, %273 : vector<8x128xf32>
    %276 = arith.addf %263, %266 : vector<8x128xf32>
    %cst_93 = arith.constant 5.000000e-01 : f32
    %277 = vector.broadcast %cst_93 : f32 to vector<8x128xf32>
    %278 = arith.mulf %277, %276 : vector<8x128xf32>
    %279 = math.tanh %278 : vector<8x128xf32>
    %cst_94 = arith.constant 1.000000e+00 : f32
    %280 = vector.broadcast %cst_94 : f32 to vector<8x128xf32>
    %281 = arith.addf %279, %280 : vector<8x128xf32>
    %cst_95 = arith.constant 5.000000e-01 : f32
    %282 = vector.broadcast %cst_95 : f32 to vector<8x128xf32>
    %283 = arith.mulf %282, %281 : vector<8x128xf32>
    %284 = arith.addf %267, %8 : vector<8x128xf32>
    %285 = arith.mulf %275, %284 : vector<8x128xf32>
    %286 = arith.addf %264, %285 : vector<8x128xf32>
    %287 = math.tanh %286 : vector<8x128xf32>
    %cst_96 = arith.constant 1.000000e+00 : f32
    %288 = vector.broadcast %cst_96 : f32 to vector<8x128xf32>
    %289 = arith.subf %288, %283 : vector<8x128xf32>
    %290 = arith.mulf %289, %287 : vector<8x128xf32>
    %291 = arith.mulf %283, %211 : vector<8x128xf32>
    %292 = arith.addf %290, %291 : vector<8x128xf32>
    %c8_i32_97 = arith.constant 8 : i32
    %293 = arith.muli %256, %c8_i32_97 : i32
    %294 = tpu.assume_multiple %293, 8 : i32
    %295 = arith.index_cast %294 : i32 to index
    %c384_98 = arith.constant 384 : index
    %296 = vector.load %arg8[%295, %c384_98] : memref<64x768xf32, #tpu.memory_space<vmem>>, vector<8x384xf32>
    %cst_99 = arith.constant dense<0.000000e+00> : vector<8x384xf32>
    %297 = tpu.matmul %247, %5, %cst_99 {dimension_numbers = #tpu.dot_dimension_numbers<[1], [0], [0], [1], [0, 0, 1, 1], [], []>} : vector<8x128xf32>, vector<128x384xf32>, vector<8x384xf32> -> vector<8x384xf32>
    %298 = vector.extract_strided_slice %296 {offsets = [0, 0], sizes = [8, 128], strides = [1, 1]} : vector<8x384xf32> to vector<8x128xf32>
    %299 = vector.extract_strided_slice %296 {offsets = [0, 128], sizes = [8, 128], strides = [1, 1]} : vector<8x384xf32> to vector<8x128xf32>
    %300 = vector.extract_strided_slice %296 {offsets = [0, 256], sizes = [8, 128], strides = [1, 1]} : vector<8x384xf32> to vector<8x128xf32>
    %301 = vector.extract_strided_slice %297 {offsets = [0, 0], sizes = [8, 128], strides = [1, 1]} : vector<8x384xf32> to vector<8x128xf32>
    %302 = vector.extract_strided_slice %297 {offsets = [0, 128], sizes = [8, 128], strides = [1, 1]} : vector<8x384xf32> to vector<8x128xf32>
    %303 = vector.extract_strided_slice %297 {offsets = [0, 256], sizes = [8, 128], strides = [1, 1]} : vector<8x384xf32> to vector<8x128xf32>
    %304 = arith.addf %298, %301 : vector<8x128xf32>
    %cst_100 = arith.constant 5.000000e-01 : f32
    %305 = vector.broadcast %cst_100 : f32 to vector<8x128xf32>
    %306 = arith.mulf %305, %304 : vector<8x128xf32>
    %307 = math.tanh %306 : vector<8x128xf32>
    %cst_101 = arith.constant 1.000000e+00 : f32
    %308 = vector.broadcast %cst_101 : f32 to vector<8x128xf32>
    %309 = arith.addf %307, %308 : vector<8x128xf32>
    %cst_102 = arith.constant 5.000000e-01 : f32
    %310 = vector.broadcast %cst_102 : f32 to vector<8x128xf32>
    %311 = arith.mulf %310, %309 : vector<8x128xf32>
    %312 = arith.addf %299, %302 : vector<8x128xf32>
    %cst_103 = arith.constant 5.000000e-01 : f32
    %313 = vector.broadcast %cst_103 : f32 to vector<8x128xf32>
    %314 = arith.mulf %313, %312 : vector<8x128xf32>
    %315 = math.tanh %314 : vector<8x128xf32>
    %cst_104 = arith.constant 1.000000e+00 : f32
    %316 = vector.broadcast %cst_104 : f32 to vector<8x128xf32>
    %317 = arith.addf %315, %316 : vector<8x128xf32>
    %cst_105 = arith.constant 5.000000e-01 : f32
    %318 = vector.broadcast %cst_105 : f32 to vector<8x128xf32>
    %319 = arith.mulf %318, %317 : vector<8x128xf32>
    %320 = arith.addf %303, %11 : vector<8x128xf32>
    %321 = arith.mulf %311, %320 : vector<8x128xf32>
    %322 = arith.addf %300, %321 : vector<8x128xf32>
    %323 = math.tanh %322 : vector<8x128xf32>
    %cst_106 = arith.constant 1.000000e+00 : f32
    %324 = vector.broadcast %cst_106 : f32 to vector<8x128xf32>
    %325 = arith.subf %324, %319 : vector<8x128xf32>
    %326 = arith.mulf %325, %323 : vector<8x128xf32>
    %327 = arith.mulf %319, %247 : vector<8x128xf32>
    %328 = arith.addf %326, %327 : vector<8x128xf32>
    %329 = arith.index_cast %c3_i32 : i32 to index
    %c0_107 = arith.constant 0 : index
    %c0_108 = arith.constant 0 : index
    %330 = vector.load %arg6[%329, %c0_107, %c0_108] : memref<8x8x128xf32, #tpu.memory_space<vmem>>, vector<1x8x128xf32>
    %331 = vector.shape_cast %330 : vector<1x8x128xf32> to vector<8x128xf32>
    %332 = vector.shape_cast %292 : vector<8x128xf32> to vector<1x8x128xf32>
    tpu.vector_store %arg6[%329, %c0_107, %c0_108], %332 {strides = array<i32>} : memref<8x8x128xf32, #tpu.memory_space<vmem>>, vector<1x8x128xf32>,
    %333 = arith.index_cast %256 : i32 to index
    %c0_109 = arith.constant 0 : index
    %c0_110 = arith.constant 0 : index
    %334 = vector.load %arg6[%333, %c0_109, %c0_110] : memref<8x8x128xf32, #tpu.memory_space<vmem>>, vector<1x8x128xf32>
    %335 = vector.shape_cast %334 : vector<1x8x128xf32> to vector<8x128xf32>
    %336 = vector.shape_cast %328 : vector<8x128xf32> to vector<1x8x128xf32>
    tpu.vector_store %arg6[%333, %c0_109, %c0_110], %336 {strides = array<i32>} : memref<8x8x128xf32, #tpu.memory_space<vmem>>, vector<1x8x128xf32>,
    %c4_i32 = arith.constant 4 : i32
    %c4_i32_111 = arith.constant 4 : i32
    %c7_i32_112 = arith.constant 7 : i32
    %337 = arith.subi %c7_i32_112, %c4_i32_111 : i32
    %c8_i32_113 = arith.constant 8 : i32
    %338 = arith.muli %c4_i32_111, %c8_i32_113 : i32
    %339 = tpu.assume_multiple %338, 8 : i32
    %340 = arith.index_cast %339 : i32 to index
    %c0_114 = arith.constant 0 : index
    %341 = vector.load %arg8[%340, %c0_114] : memref<64x768xf32, #tpu.memory_space<vmem>>, vector<8x384xf32>
    %cst_115 = arith.constant dense<0.000000e+00> : vector<8x384xf32>
    %342 = tpu.matmul %292, %4, %cst_115 {dimension_numbers = #tpu.dot_dimension_numbers<[1], [0], [0], [1], [0, 0, 1, 1], [], []>} : vector<8x128xf32>, vector<128x384xf32>, vector<8x384xf32> -> vector<8x384xf32>
    %343 = vector.extract_strided_slice %341 {offsets = [0, 0], sizes = [8, 128], strides = [1, 1]} : vector<8x384xf32> to vector<8x128xf32>
    %344 = vector.extract_strided_slice %341 {offsets = [0, 128], sizes = [8, 128], strides = [1, 1]} : vector<8x384xf32> to vector<8x128xf32>
    %345 = vector.extract_strided_slice %341 {offsets = [0, 256], sizes = [8, 128], strides = [1, 1]} : vector<8x384xf32> to vector<8x128xf32>
    %346 = vector.extract_strided_slice %342 {offsets = [0, 0], sizes = [8, 128], strides = [1, 1]} : vector<8x384xf32> to vector<8x128xf32>
    %347 = vector.extract_strided_slice %342 {offsets = [0, 128], sizes = [8, 128], strides = [1, 1]} : vector<8x384xf32> to vector<8x128xf32>
    %348 = vector.extract_strided_slice %342 {offsets = [0, 256], sizes = [8, 128], strides = [1, 1]} : vector<8x384xf32> to vector<8x128xf32>
    %349 = arith.addf %343, %346 : vector<8x128xf32>
    %cst_116 = arith.constant 5.000000e-01 : f32
    %350 = vector.broadcast %cst_116 : f32 to vector<8x128xf32>
    %351 = arith.mulf %350, %349 : vector<8x128xf32>
    %352 = math.tanh %351 : vector<8x128xf32>
    %cst_117 = arith.constant 1.000000e+00 : f32
    %353 = vector.broadcast %cst_117 : f32 to vector<8x128xf32>
    %354 = arith.addf %352, %353 : vector<8x128xf32>
    %cst_118 = arith.constant 5.000000e-01 : f32
    %355 = vector.broadcast %cst_118 : f32 to vector<8x128xf32>
    %356 = arith.mulf %355, %354 : vector<8x128xf32>
    %357 = arith.addf %344, %347 : vector<8x128xf32>
    %cst_119 = arith.constant 5.000000e-01 : f32
    %358 = vector.broadcast %cst_119 : f32 to vector<8x128xf32>
    %359 = arith.mulf %358, %357 : vector<8x128xf32>
    %360 = math.tanh %359 : vector<8x128xf32>
    %cst_120 = arith.constant 1.000000e+00 : f32
    %361 = vector.broadcast %cst_120 : f32 to vector<8x128xf32>
    %362 = arith.addf %360, %361 : vector<8x128xf32>
    %cst_121 = arith.constant 5.000000e-01 : f32
    %363 = vector.broadcast %cst_121 : f32 to vector<8x128xf32>
    %364 = arith.mulf %363, %362 : vector<8x128xf32>
    %365 = arith.addf %348, %8 : vector<8x128xf32>
    %366 = arith.mulf %356, %365 : vector<8x128xf32>
    %367 = arith.addf %345, %366 : vector<8x128xf32>
    %368 = math.tanh %367 : vector<8x128xf32>
    %cst_122 = arith.constant 1.000000e+00 : f32
    %369 = vector.broadcast %cst_122 : f32 to vector<8x128xf32>
    %370 = arith.subf %369, %364 : vector<8x128xf32>
    %371 = arith.mulf %370, %368 : vector<8x128xf32>
    %372 = arith.mulf %364, %292 : vector<8x128xf32>
    %373 = arith.addf %371, %372 : vector<8x128xf32>
    %c8_i32_123 = arith.constant 8 : i32
    %374 = arith.muli %337, %c8_i32_123 : i32
    %375 = tpu.assume_multiple %374, 8 : i32
    %376 = arith.index_cast %375 : i32 to index
    %c384_124 = arith.constant 384 : index
    %377 = vector.load %arg8[%376, %c384_124] : memref<64x768xf32, #tpu.memory_space<vmem>>, vector<8x384xf32>
    %cst_125 = arith.constant dense<0.000000e+00> : vector<8x384xf32>
    %378 = tpu.matmul %328, %5, %cst_125 {dimension_numbers = #tpu.dot_dimension_numbers<[1], [0], [0], [1], [0, 0, 1, 1], [], []>} : vector<8x128xf32>, vector<128x384xf32>, vector<8x384xf32> -> vector<8x384xf32>
    %379 = vector.extract_strided_slice %377 {offsets = [0, 0], sizes = [8, 128], strides = [1, 1]} : vector<8x384xf32> to vector<8x128xf32>
    %380 = vector.extract_strided_slice %377 {offsets = [0, 128], sizes = [8, 128], strides = [1, 1]} : vector<8x384xf32> to vector<8x128xf32>
    %381 = vector.extract_strided_slice %377 {offsets = [0, 256], sizes = [8, 128], strides = [1, 1]} : vector<8x384xf32> to vector<8x128xf32>
    %382 = vector.extract_strided_slice %378 {offsets = [0, 0], sizes = [8, 128], strides = [1, 1]} : vector<8x384xf32> to vector<8x128xf32>
    %383 = vector.extract_strided_slice %378 {offsets = [0, 128], sizes = [8, 128], strides = [1, 1]} : vector<8x384xf32> to vector<8x128xf32>
    %384 = vector.extract_strided_slice %378 {offsets = [0, 256], sizes = [8, 128], strides = [1, 1]} : vector<8x384xf32> to vector<8x128xf32>
    %385 = arith.addf %379, %382 : vector<8x128xf32>
    %cst_126 = arith.constant 5.000000e-01 : f32
    %386 = vector.broadcast %cst_126 : f32 to vector<8x128xf32>
    %387 = arith.mulf %386, %385 : vector<8x128xf32>
    %388 = math.tanh %387 : vector<8x128xf32>
    %cst_127 = arith.constant 1.000000e+00 : f32
    %389 = vector.broadcast %cst_127 : f32 to vector<8x128xf32>
    %390 = arith.addf %388, %389 : vector<8x128xf32>
    %cst_128 = arith.constant 5.000000e-01 : f32
    %391 = vector.broadcast %cst_128 : f32 to vector<8x128xf32>
    %392 = arith.mulf %391, %390 : vector<8x128xf32>
    %393 = arith.addf %380, %383 : vector<8x128xf32>
    %cst_129 = arith.constant 5.000000e-01 : f32
    %394 = vector.broadcast %cst_129 : f32 to vector<8x128xf32>
    %395 = arith.mulf %394, %393 : vector<8x128xf32>
    %396 = math.tanh %395 : vector<8x128xf32>
    %cst_130 = arith.constant 1.000000e+00 : f32
    %397 = vector.broadcast %cst_130 : f32 to vector<8x128xf32>
    %398 = arith.addf %396, %397 : vector<8x128xf32>
    %cst_131 = arith.constant 5.000000e-01 : f32
    %399 = vector.broadcast %cst_131 : f32 to vector<8x128xf32>
    %400 = arith.mulf %399, %398 : vector<8x128xf32>
    %401 = arith.addf %384, %11 : vector<8x128xf32>
    %402 = arith.mulf %392, %401 : vector<8x128xf32>
    %403 = arith.addf %381, %402 : vector<8x128xf32>
    %404 = math.tanh %403 : vector<8x128xf32>
    %cst_132 = arith.constant 1.000000e+00 : f32
    %405 = vector.broadcast %cst_132 : f32 to vector<8x128xf32>
    %406 = arith.subf %405, %400 : vector<8x128xf32>
    %407 = arith.mulf %406, %404 : vector<8x128xf32>
    %408 = arith.mulf %400, %328 : vector<8x128xf32>
    %409 = arith.addf %407, %408 : vector<8x128xf32>
    %410 = arith.index_cast %c4_i32_111 : i32 to index
    %c0_133 = arith.constant 0 : index
    %c0_134 = arith.constant 0 : index
    %411 = vector.load %arg6[%410, %c0_133, %c0_134] : memref<8x8x128xf32, #tpu.memory_space<vmem>>, vector<1x8x128xf32>
    %412 = vector.shape_cast %411 : vector<1x8x128xf32> to vector<8x128xf32>
    %413 = arith.addf %412, %373 : vector<8x128xf32>
    %414 = arith.index_cast %c4_i32_111 : i32 to index
    %c0_135 = arith.constant 0 : index
    %c0_136 = arith.constant 0 : index
    %415 = vector.load %arg6[%414, %c0_135, %c0_136] : memref<8x8x128xf32, #tpu.memory_space<vmem>>, vector<1x8x128xf32>
    %416 = vector.shape_cast %415 : vector<1x8x128xf32> to vector<8x128xf32>
    %417 = vector.shape_cast %413 : vector<8x128xf32> to vector<1x8x128xf32>
    tpu.vector_store %arg6[%414, %c0_135, %c0_136], %417 {strides = array<i32>} : memref<8x8x128xf32, #tpu.memory_space<vmem>>, vector<1x8x128xf32>,
    %418 = arith.index_cast %337 : i32 to index
    %c0_137 = arith.constant 0 : index
    %c0_138 = arith.constant 0 : index
    %419 = vector.load %arg6[%418, %c0_137, %c0_138] : memref<8x8x128xf32, #tpu.memory_space<vmem>>, vector<1x8x128xf32>
    %420 = vector.shape_cast %419 : vector<1x8x128xf32> to vector<8x128xf32>
    %421 = arith.addf %420, %409 : vector<8x128xf32>
    %422 = arith.index_cast %337 : i32 to index
    %c0_139 = arith.constant 0 : index
    %c0_140 = arith.constant 0 : index
    %423 = vector.load %arg6[%422, %c0_139, %c0_140] : memref<8x8x128xf32, #tpu.memory_space<vmem>>, vector<1x8x128xf32>
    %424 = vector.shape_cast %423 : vector<1x8x128xf32> to vector<8x128xf32>
    %425 = vector.shape_cast %421 : vector<8x128xf32> to vector<1x8x128xf32>
    tpu.vector_store %arg6[%422, %c0_139, %c0_140], %425 {strides = array<i32>} : memref<8x8x128xf32, #tpu.memory_space<vmem>>, vector<1x8x128xf32>,
    %c5_i32 = arith.constant 5 : i32
    %c7_i32_141 = arith.constant 7 : i32
    %426 = arith.subi %c7_i32_141, %c5_i32 : i32
    %c8_i32_142 = arith.constant 8 : i32
    %427 = arith.muli %c5_i32, %c8_i32_142 : i32
    %428 = tpu.assume_multiple %427, 8 : i32
    %429 = arith.index_cast %428 : i32 to index
    %c0_143 = arith.constant 0 : index
    %430 = vector.load %arg8[%429, %c0_143] : memref<64x768xf32, #tpu.memory_space<vmem>>, vector<8x384xf32>
    %cst_144 = arith.constant dense<0.000000e+00> : vector<8x384xf32>
    %431 = tpu.matmul %373, %4, %cst_144 {dimension_numbers = #tpu.dot_dimension_numbers<[1], [0], [0], [1], [0, 0, 1, 1], [], []>} : vector<8x128xf32>, vector<128x384xf32>, vector<8x384xf32> -> vector<8x384xf32>
    %432 = vector.extract_strided_slice %430 {offsets = [0, 0], sizes = [8, 128], strides = [1, 1]} : vector<8x384xf32> to vector<8x128xf32>
    %433 = vector.extract_strided_slice %430 {offsets = [0, 128], sizes = [8, 128], strides = [1, 1]} : vector<8x384xf32> to vector<8x128xf32>
    %434 = vector.extract_strided_slice %430 {offsets = [0, 256], sizes = [8, 128], strides = [1, 1]} : vector<8x384xf32> to vector<8x128xf32>
    %435 = vector.extract_strided_slice %431 {offsets = [0, 0], sizes = [8, 128], strides = [1, 1]} : vector<8x384xf32> to vector<8x128xf32>
    %436 = vector.extract_strided_slice %431 {offsets = [0, 128], sizes = [8, 128], strides = [1, 1]} : vector<8x384xf32> to vector<8x128xf32>
    %437 = vector.extract_strided_slice %431 {offsets = [0, 256], sizes = [8, 128], strides = [1, 1]} : vector<8x384xf32> to vector<8x128xf32>
    %438 = arith.addf %432, %435 : vector<8x128xf32>
    %cst_145 = arith.constant 5.000000e-01 : f32
    %439 = vector.broadcast %cst_145 : f32 to vector<8x128xf32>
    %440 = arith.mulf %439, %438 : vector<8x128xf32>
    %441 = math.tanh %440 : vector<8x128xf32>
    %cst_146 = arith.constant 1.000000e+00 : f32
    %442 = vector.broadcast %cst_146 : f32 to vector<8x128xf32>
    %443 = arith.addf %441, %442 : vector<8x128xf32>
    %cst_147 = arith.constant 5.000000e-01 : f32
    %444 = vector.broadcast %cst_147 : f32 to vector<8x128xf32>
    %445 = arith.mulf %444, %443 : vector<8x128xf32>
    %446 = arith.addf %433, %436 : vector<8x128xf32>
    %cst_148 = arith.constant 5.000000e-01 : f32
    %447 = vector.broadcast %cst_148 : f32 to vector<8x128xf32>
    %448 = arith.mulf %447, %446 : vector<8x128xf32>
    %449 = math.tanh %448 : vector<8x128xf32>
    %cst_149 = arith.constant 1.000000e+00 : f32
    %450 = vector.broadcast %cst_149 : f32 to vector<8x128xf32>
    %451 = arith.addf %449, %450 : vector<8x128xf32>
    %cst_150 = arith.constant 5.000000e-01 : f32
    %452 = vector.broadcast %cst_150 : f32 to vector<8x128xf32>
    %453 = arith.mulf %452, %451 : vector<8x128xf32>
    %454 = arith.addf %437, %8 : vector<8x128xf32>
    %455 = arith.mulf %445, %454 : vector<8x128xf32>
    %456 = arith.addf %434, %455 : vector<8x128xf32>
    %457 = math.tanh %456 : vector<8x128xf32>
    %cst_151 = arith.constant 1.000000e+00 : f32
    %458 = vector.broadcast %cst_151 : f32 to vector<8x128xf32>
    %459 = arith.subf %458, %453 : vector<8x128xf32>
    %460 = arith.mulf %459, %457 : vector<8x128xf32>
    %461 = arith.mulf %453, %373 : vector<8x128xf32>
    %462 = arith.addf %460, %461 : vector<8x128xf32>
    %c8_i32_152 = arith.constant 8 : i32
    %463 = arith.muli %426, %c8_i32_152 : i32
    %464 = tpu.assume_multiple %463, 8 : i32
    %465 = arith.index_cast %464 : i32 to index
    %c384_153 = arith.constant 384 : index
    %466 = vector.load %arg8[%465, %c384_153] : memref<64x768xf32, #tpu.memory_space<vmem>>, vector<8x384xf32>
    %cst_154 = arith.constant dense<0.000000e+00> : vector<8x384xf32>
    %467 = tpu.matmul %409, %5, %cst_154 {dimension_numbers = #tpu.dot_dimension_numbers<[1], [0], [0], [1], [0, 0, 1, 1], [], []>} : vector<8x128xf32>, vector<128x384xf32>, vector<8x384xf32> -> vector<8x384xf32>
    %468 = vector.extract_strided_slice %466 {offsets = [0, 0], sizes = [8, 128], strides = [1, 1]} : vector<8x384xf32> to vector<8x128xf32>
    %469 = vector.extract_strided_slice %466 {offsets = [0, 128], sizes = [8, 128], strides = [1, 1]} : vector<8x384xf32> to vector<8x128xf32>
    %470 = vector.extract_strided_slice %466 {offsets = [0, 256], sizes = [8, 128], strides = [1, 1]} : vector<8x384xf32> to vector<8x128xf32>
    %471 = vector.extract_strided_slice %467 {offsets = [0, 0], sizes = [8, 128], strides = [1, 1]} : vector<8x384xf32> to vector<8x128xf32>
    %472 = vector.extract_strided_slice %467 {offsets = [0, 128], sizes = [8, 128], strides = [1, 1]} : vector<8x384xf32> to vector<8x128xf32>
    %473 = vector.extract_strided_slice %467 {offsets = [0, 256], sizes = [8, 128], strides = [1, 1]} : vector<8x384xf32> to vector<8x128xf32>
    %474 = arith.addf %468, %471 : vector<8x128xf32>
    %cst_155 = arith.constant 5.000000e-01 : f32
    %475 = vector.broadcast %cst_155 : f32 to vector<8x128xf32>
    %476 = arith.mulf %475, %474 : vector<8x128xf32>
    %477 = math.tanh %476 : vector<8x128xf32>
    %cst_156 = arith.constant 1.000000e+00 : f32
    %478 = vector.broadcast %cst_156 : f32 to vector<8x128xf32>
    %479 = arith.addf %477, %478 : vector<8x128xf32>
    %cst_157 = arith.constant 5.000000e-01 : f32
    %480 = vector.broadcast %cst_157 : f32 to vector<8x128xf32>
    %481 = arith.mulf %480, %479 : vector<8x128xf32>
    %482 = arith.addf %469, %472 : vector<8x128xf32>
    %cst_158 = arith.constant 5.000000e-01 : f32
    %483 = vector.broadcast %cst_158 : f32 to vector<8x128xf32>
    %484 = arith.mulf %483, %482 : vector<8x128xf32>
    %485 = math.tanh %484 : vector<8x128xf32>
    %cst_159 = arith.constant 1.000000e+00 : f32
    %486 = vector.broadcast %cst_159 : f32 to vector<8x128xf32>
    %487 = arith.addf %485, %486 : vector<8x128xf32>
    %cst_160 = arith.constant 5.000000e-01 : f32
    %488 = vector.broadcast %cst_160 : f32 to vector<8x128xf32>
    %489 = arith.mulf %488, %487 : vector<8x128xf32>
    %490 = arith.addf %473, %11 : vector<8x128xf32>
    %491 = arith.mulf %481, %490 : vector<8x128xf32>
    %492 = arith.addf %470, %491 : vector<8x128xf32>
    %493 = math.tanh %492 : vector<8x128xf32>
    %cst_161 = arith.constant 1.000000e+00 : f32
    %494 = vector.broadcast %cst_161 : f32 to vector<8x128xf32>
    %495 = arith.subf %494, %489 : vector<8x128xf32>
    %496 = arith.mulf %495, %493 : vector<8x128xf32>
    %497 = arith.mulf %489, %409 : vector<8x128xf32>
    %498 = arith.addf %496, %497 : vector<8x128xf32>
    %499 = arith.index_cast %c5_i32 : i32 to index
    %c0_162 = arith.constant 0 : index
    %c0_163 = arith.constant 0 : index
    %500 = vector.load %arg6[%499, %c0_162, %c0_163] : memref<8x8x128xf32, #tpu.memory_space<vmem>>, vector<1x8x128xf32>
    %501 = vector.shape_cast %500 : vector<1x8x128xf32> to vector<8x128xf32>
    %502 = arith.addf %501, %462 : vector<8x128xf32>
    %503 = arith.index_cast %c5_i32 : i32 to index
    %c0_164 = arith.constant 0 : index
    %c0_165 = arith.constant 0 : index
    %504 = vector.load %arg6[%503, %c0_164, %c0_165] : memref<8x8x128xf32, #tpu.memory_space<vmem>>, vector<1x8x128xf32>
    %505 = vector.shape_cast %504 : vector<1x8x128xf32> to vector<8x128xf32>
    %506 = vector.shape_cast %502 : vector<8x128xf32> to vector<1x8x128xf32>
    tpu.vector_store %arg6[%503, %c0_164, %c0_165], %506 {strides = array<i32>} : memref<8x8x128xf32, #tpu.memory_space<vmem>>, vector<1x8x128xf32>,
    %507 = arith.index_cast %426 : i32 to index
    %c0_166 = arith.constant 0 : index
    %c0_167 = arith.constant 0 : index
    %508 = vector.load %arg6[%507, %c0_166, %c0_167] : memref<8x8x128xf32, #tpu.memory_space<vmem>>, vector<1x8x128xf32>
    %509 = vector.shape_cast %508 : vector<1x8x128xf32> to vector<8x128xf32>
    %510 = arith.addf %509, %498 : vector<8x128xf32>
    %511 = arith.index_cast %426 : i32 to index
    %c0_168 = arith.constant 0 : index
    %c0_169 = arith.constant 0 : index
    %512 = vector.load %arg6[%511, %c0_168, %c0_169] : memref<8x8x128xf32, #tpu.memory_space<vmem>>, vector<1x8x128xf32>
    %513 = vector.shape_cast %512 : vector<1x8x128xf32> to vector<8x128xf32>
    %514 = vector.shape_cast %510 : vector<8x128xf32> to vector<1x8x128xf32>
    tpu.vector_store %arg6[%511, %c0_168, %c0_169], %514 {strides = array<i32>} : memref<8x8x128xf32, #tpu.memory_space<vmem>>, vector<1x8x128xf32>,
    %c6_i32 = arith.constant 6 : i32
    %c7_i32_170 = arith.constant 7 : i32
    %515 = arith.subi %c7_i32_170, %c6_i32 : i32
    %c8_i32_171 = arith.constant 8 : i32
    %516 = arith.muli %c6_i32, %c8_i32_171 : i32
    %517 = tpu.assume_multiple %516, 8 : i32
    %518 = arith.index_cast %517 : i32 to index
    %c0_172 = arith.constant 0 : index
    %519 = vector.load %arg8[%518, %c0_172] : memref<64x768xf32, #tpu.memory_space<vmem>>, vector<8x384xf32>
    %cst_173 = arith.constant dense<0.000000e+00> : vector<8x384xf32>
    %520 = tpu.matmul %462, %4, %cst_173 {dimension_numbers = #tpu.dot_dimension_numbers<[1], [0], [0], [1], [0, 0, 1, 1], [], []>} : vector<8x128xf32>, vector<128x384xf32>, vector<8x384xf32> -> vector<8x384xf32>
    %521 = vector.extract_strided_slice %519 {offsets = [0, 0], sizes = [8, 128], strides = [1, 1]} : vector<8x384xf32> to vector<8x128xf32>
    %522 = vector.extract_strided_slice %519 {offsets = [0, 128], sizes = [8, 128], strides = [1, 1]} : vector<8x384xf32> to vector<8x128xf32>
    %523 = vector.extract_strided_slice %519 {offsets = [0, 256], sizes = [8, 128], strides = [1, 1]} : vector<8x384xf32> to vector<8x128xf32>
    %524 = vector.extract_strided_slice %520 {offsets = [0, 0], sizes = [8, 128], strides = [1, 1]} : vector<8x384xf32> to vector<8x128xf32>
    %525 = vector.extract_strided_slice %520 {offsets = [0, 128], sizes = [8, 128], strides = [1, 1]} : vector<8x384xf32> to vector<8x128xf32>
    %526 = vector.extract_strided_slice %520 {offsets = [0, 256], sizes = [8, 128], strides = [1, 1]} : vector<8x384xf32> to vector<8x128xf32>
    %527 = arith.addf %521, %524 : vector<8x128xf32>
    %cst_174 = arith.constant 5.000000e-01 : f32
    %528 = vector.broadcast %cst_174 : f32 to vector<8x128xf32>
    %529 = arith.mulf %528, %527 : vector<8x128xf32>
    %530 = math.tanh %529 : vector<8x128xf32>
    %cst_175 = arith.constant 1.000000e+00 : f32
    %531 = vector.broadcast %cst_175 : f32 to vector<8x128xf32>
    %532 = arith.addf %530, %531 : vector<8x128xf32>
    %cst_176 = arith.constant 5.000000e-01 : f32
    %533 = vector.broadcast %cst_176 : f32 to vector<8x128xf32>
    %534 = arith.mulf %533, %532 : vector<8x128xf32>
    %535 = arith.addf %522, %525 : vector<8x128xf32>
    %cst_177 = arith.constant 5.000000e-01 : f32
    %536 = vector.broadcast %cst_177 : f32 to vector<8x128xf32>
    %537 = arith.mulf %536, %535 : vector<8x128xf32>
    %538 = math.tanh %537 : vector<8x128xf32>
    %cst_178 = arith.constant 1.000000e+00 : f32
    %539 = vector.broadcast %cst_178 : f32 to vector<8x128xf32>
    %540 = arith.addf %538, %539 : vector<8x128xf32>
    %cst_179 = arith.constant 5.000000e-01 : f32
    %541 = vector.broadcast %cst_179 : f32 to vector<8x128xf32>
    %542 = arith.mulf %541, %540 : vector<8x128xf32>
    %543 = arith.addf %526, %8 : vector<8x128xf32>
    %544 = arith.mulf %534, %543 : vector<8x128xf32>
    %545 = arith.addf %523, %544 : vector<8x128xf32>
    %546 = math.tanh %545 : vector<8x128xf32>
    %cst_180 = arith.constant 1.000000e+00 : f32
    %547 = vector.broadcast %cst_180 : f32 to vector<8x128xf32>
    %548 = arith.subf %547, %542 : vector<8x128xf32>
    %549 = arith.mulf %548, %546 : vector<8x128xf32>
    %550 = arith.mulf %542, %462 : vector<8x128xf32>
    %551 = arith.addf %549, %550 : vector<8x128xf32>
    %c8_i32_181 = arith.constant 8 : i32
    %552 = arith.muli %515, %c8_i32_181 : i32
    %553 = tpu.assume_multiple %552, 8 : i32
    %554 = arith.index_cast %553 : i32 to index
    %c384_182 = arith.constant 384 : index
    %555 = vector.load %arg8[%554, %c384_182] : memref<64x768xf32, #tpu.memory_space<vmem>>, vector<8x384xf32>
    %cst_183 = arith.constant dense<0.000000e+00> : vector<8x384xf32>
    %556 = tpu.matmul %498, %5, %cst_183 {dimension_numbers = #tpu.dot_dimension_numbers<[1], [0], [0], [1], [0, 0, 1, 1], [], []>} : vector<8x128xf32>, vector<128x384xf32>, vector<8x384xf32> -> vector<8x384xf32>
    %557 = vector.extract_strided_slice %555 {offsets = [0, 0], sizes = [8, 128], strides = [1, 1]} : vector<8x384xf32> to vector<8x128xf32>
    %558 = vector.extract_strided_slice %555 {offsets = [0, 128], sizes = [8, 128], strides = [1, 1]} : vector<8x384xf32> to vector<8x128xf32>
    %559 = vector.extract_strided_slice %555 {offsets = [0, 256], sizes = [8, 128], strides = [1, 1]} : vector<8x384xf32> to vector<8x128xf32>
    %560 = vector.extract_strided_slice %556 {offsets = [0, 0], sizes = [8, 128], strides = [1, 1]} : vector<8x384xf32> to vector<8x128xf32>
    %561 = vector.extract_strided_slice %556 {offsets = [0, 128], sizes = [8, 128], strides = [1, 1]} : vector<8x384xf32> to vector<8x128xf32>
    %562 = vector.extract_strided_slice %556 {offsets = [0, 256], sizes = [8, 128], strides = [1, 1]} : vector<8x384xf32> to vector<8x128xf32>
    %563 = arith.addf %557, %560 : vector<8x128xf32>
    %cst_184 = arith.constant 5.000000e-01 : f32
    %564 = vector.broadcast %cst_184 : f32 to vector<8x128xf32>
    %565 = arith.mulf %564, %563 : vector<8x128xf32>
    %566 = math.tanh %565 : vector<8x128xf32>
    %cst_185 = arith.constant 1.000000e+00 : f32
    %567 = vector.broadcast %cst_185 : f32 to vector<8x128xf32>
    %568 = arith.addf %566, %567 : vector<8x128xf32>
    %cst_186 = arith.constant 5.000000e-01 : f32
    %569 = vector.broadcast %cst_186 : f32 to vector<8x128xf32>
    %570 = arith.mulf %569, %568 : vector<8x128xf32>
    %571 = arith.addf %558, %561 : vector<8x128xf32>
    %cst_187 = arith.constant 5.000000e-01 : f32
    %572 = vector.broadcast %cst_187 : f32 to vector<8x128xf32>
    %573 = arith.mulf %572, %571 : vector<8x128xf32>
    %574 = math.tanh %573 : vector<8x128xf32>
    %cst_188 = arith.constant 1.000000e+00 : f32
    %575 = vector.broadcast %cst_188 : f32 to vector<8x128xf32>
    %576 = arith.addf %574, %575 : vector<8x128xf32>
    %cst_189 = arith.constant 5.000000e-01 : f32
    %577 = vector.broadcast %cst_189 : f32 to vector<8x128xf32>
    %578 = arith.mulf %577, %576 : vector<8x128xf32>
    %579 = arith.addf %562, %11 : vector<8x128xf32>
    %580 = arith.mulf %570, %579 : vector<8x128xf32>
    %581 = arith.addf %559, %580 : vector<8x128xf32>
    %582 = math.tanh %581 : vector<8x128xf32>
    %cst_190 = arith.constant 1.000000e+00 : f32
    %583 = vector.broadcast %cst_190 : f32 to vector<8x128xf32>
    %584 = arith.subf %583, %578 : vector<8x128xf32>
    %585 = arith.mulf %584, %582 : vector<8x128xf32>
    %586 = arith.mulf %578, %498 : vector<8x128xf32>
    %587 = arith.addf %585, %586 : vector<8x128xf32>
    %588 = arith.index_cast %c6_i32 : i32 to index
    %c0_191 = arith.constant 0 : index
    %c0_192 = arith.constant 0 : index
    %589 = vector.load %arg6[%588, %c0_191, %c0_192] : memref<8x8x128xf32, #tpu.memory_space<vmem>>, vector<1x8x128xf32>
    %590 = vector.shape_cast %589 : vector<1x8x128xf32> to vector<8x128xf32>
    %591 = arith.addf %590, %551 : vector<8x128xf32>
    %592 = arith.index_cast %c6_i32 : i32 to index
    %c0_193 = arith.constant 0 : index
    %c0_194 = arith.constant 0 : index
    %593 = vector.load %arg6[%592, %c0_193, %c0_194] : memref<8x8x128xf32, #tpu.memory_space<vmem>>, vector<1x8x128xf32>
    %594 = vector.shape_cast %593 : vector<1x8x128xf32> to vector<8x128xf32>
    %595 = vector.shape_cast %591 : vector<8x128xf32> to vector<1x8x128xf32>
    tpu.vector_store %arg6[%592, %c0_193, %c0_194], %595 {strides = array<i32>} : memref<8x8x128xf32, #tpu.memory_space<vmem>>, vector<1x8x128xf32>,
    %596 = arith.index_cast %515 : i32 to index
    %c0_195 = arith.constant 0 : index
    %c0_196 = arith.constant 0 : index
    %597 = vector.load %arg6[%596, %c0_195, %c0_196] : memref<8x8x128xf32, #tpu.memory_space<vmem>>, vector<1x8x128xf32>
    %598 = vector.shape_cast %597 : vector<1x8x128xf32> to vector<8x128xf32>
    %599 = arith.addf %598, %587 : vector<8x128xf32>
    %600 = arith.index_cast %515 : i32 to index
    %c0_197 = arith.constant 0 : index
    %c0_198 = arith.constant 0 : index
    %601 = vector.load %arg6[%600, %c0_197, %c0_198] : memref<8x8x128xf32, #tpu.memory_space<vmem>>, vector<1x8x128xf32>
    %602 = vector.shape_cast %601 : vector<1x8x128xf32> to vector<8x128xf32>
    %603 = vector.shape_cast %599 : vector<8x128xf32> to vector<1x8x128xf32>
    tpu.vector_store %arg6[%600, %c0_197, %c0_198], %603 {strides = array<i32>} : memref<8x8x128xf32, #tpu.memory_space<vmem>>, vector<1x8x128xf32>,
    %c7_i32_199 = arith.constant 7 : i32
    %c7_i32_200 = arith.constant 7 : i32
    %604 = arith.subi %c7_i32_200, %c7_i32_199 : i32
    %c8_i32_201 = arith.constant 8 : i32
    %605 = arith.muli %c7_i32_199, %c8_i32_201 : i32
    %606 = tpu.assume_multiple %605, 8 : i32
    %607 = arith.index_cast %606 : i32 to index
    %c0_202 = arith.constant 0 : index
    %608 = vector.load %arg8[%607, %c0_202] : memref<64x768xf32, #tpu.memory_space<vmem>>, vector<8x384xf32>
    %cst_203 = arith.constant dense<0.000000e+00> : vector<8x384xf32>
    %609 = tpu.matmul %551, %4, %cst_203 {dimension_numbers = #tpu.dot_dimension_numbers<[1], [0], [0], [1], [0, 0, 1, 1], [], []>} : vector<8x128xf32>, vector<128x384xf32>, vector<8x384xf32> -> vector<8x384xf32>
    %610 = vector.extract_strided_slice %608 {offsets = [0, 0], sizes = [8, 128], strides = [1, 1]} : vector<8x384xf32> to vector<8x128xf32>
    %611 = vector.extract_strided_slice %608 {offsets = [0, 128], sizes = [8, 128], strides = [1, 1]} : vector<8x384xf32> to vector<8x128xf32>
    %612 = vector.extract_strided_slice %608 {offsets = [0, 256], sizes = [8, 128], strides = [1, 1]} : vector<8x384xf32> to vector<8x128xf32>
    %613 = vector.extract_strided_slice %609 {offsets = [0, 0], sizes = [8, 128], strides = [1, 1]} : vector<8x384xf32> to vector<8x128xf32>
    %614 = vector.extract_strided_slice %609 {offsets = [0, 128], sizes = [8, 128], strides = [1, 1]} : vector<8x384xf32> to vector<8x128xf32>
    %615 = vector.extract_strided_slice %609 {offsets = [0, 256], sizes = [8, 128], strides = [1, 1]} : vector<8x384xf32> to vector<8x128xf32>
    %616 = arith.addf %610, %613 : vector<8x128xf32>
    %cst_204 = arith.constant 5.000000e-01 : f32
    %617 = vector.broadcast %cst_204 : f32 to vector<8x128xf32>
    %618 = arith.mulf %617, %616 : vector<8x128xf32>
    %619 = math.tanh %618 : vector<8x128xf32>
    %cst_205 = arith.constant 1.000000e+00 : f32
    %620 = vector.broadcast %cst_205 : f32 to vector<8x128xf32>
    %621 = arith.addf %619, %620 : vector<8x128xf32>
    %cst_206 = arith.constant 5.000000e-01 : f32
    %622 = vector.broadcast %cst_206 : f32 to vector<8x128xf32>
    %623 = arith.mulf %622, %621 : vector<8x128xf32>
    %624 = arith.addf %611, %614 : vector<8x128xf32>
    %cst_207 = arith.constant 5.000000e-01 : f32
    %625 = vector.broadcast %cst_207 : f32 to vector<8x128xf32>
    %626 = arith.mulf %625, %624 : vector<8x128xf32>
    %627 = math.tanh %626 : vector<8x128xf32>
    %cst_208 = arith.constant 1.000000e+00 : f32
    %628 = vector.broadcast %cst_208 : f32 to vector<8x128xf32>
    %629 = arith.addf %627, %628 : vector<8x128xf32>
    %cst_209 = arith.constant 5.000000e-01 : f32
    %630 = vector.broadcast %cst_209 : f32 to vector<8x128xf32>
    %631 = arith.mulf %630, %629 : vector<8x128xf32>
    %632 = arith.addf %615, %8 : vector<8x128xf32>
    %633 = arith.mulf %623, %632 : vector<8x128xf32>
    %634 = arith.addf %612, %633 : vector<8x128xf32>
    %635 = math.tanh %634 : vector<8x128xf32>
    %cst_210 = arith.constant 1.000000e+00 : f32
    %636 = vector.broadcast %cst_210 : f32 to vector<8x128xf32>
    %637 = arith.subf %636, %631 : vector<8x128xf32>
    %638 = arith.mulf %637, %635 : vector<8x128xf32>
    %639 = arith.mulf %631, %551 : vector<8x128xf32>
    %640 = arith.addf %638, %639 : vector<8x128xf32>
    %c8_i32_211 = arith.constant 8 : i32
    %641 = arith.muli %604, %c8_i32_211 : i32
    %642 = tpu.assume_multiple %641, 8 : i32
    %643 = arith.index_cast %642 : i32 to index
    %c384_212 = arith.constant 384 : index
    %644 = vector.load %arg8[%643, %c384_212] : memref<64x768xf32, #tpu.memory_space<vmem>>, vector<8x384xf32>
    %cst_213 = arith.constant dense<0.000000e+00> : vector<8x384xf32>
    %645 = tpu.matmul %587, %5, %cst_213 {dimension_numbers = #tpu.dot_dimension_numbers<[1], [0], [0], [1], [0, 0, 1, 1], [], []>} : vector<8x128xf32>, vector<128x384xf32>, vector<8x384xf32> -> vector<8x384xf32>
    %646 = vector.extract_strided_slice %644 {offsets = [0, 0], sizes = [8, 128], strides = [1, 1]} : vector<8x384xf32> to vector<8x128xf32>
    %647 = vector.extract_strided_slice %644 {offsets = [0, 128], sizes = [8, 128], strides = [1, 1]} : vector<8x384xf32> to vector<8x128xf32>
    %648 = vector.extract_strided_slice %644 {offsets = [0, 256], sizes = [8, 128], strides = [1, 1]} : vector<8x384xf32> to vector<8x128xf32>
    %649 = vector.extract_strided_slice %645 {offsets = [0, 0], sizes = [8, 128], strides = [1, 1]} : vector<8x384xf32> to vector<8x128xf32>
    %650 = vector.extract_strided_slice %645 {offsets = [0, 128], sizes = [8, 128], strides = [1, 1]} : vector<8x384xf32> to vector<8x128xf32>
    %651 = vector.extract_strided_slice %645 {offsets = [0, 256], sizes = [8, 128], strides = [1, 1]} : vector<8x384xf32> to vector<8x128xf32>
    %652 = arith.addf %646, %649 : vector<8x128xf32>
    %cst_214 = arith.constant 5.000000e-01 : f32
    %653 = vector.broadcast %cst_214 : f32 to vector<8x128xf32>
    %654 = arith.mulf %653, %652 : vector<8x128xf32>
    %655 = math.tanh %654 : vector<8x128xf32>
    %cst_215 = arith.constant 1.000000e+00 : f32
    %656 = vector.broadcast %cst_215 : f32 to vector<8x128xf32>
    %657 = arith.addf %655, %656 : vector<8x128xf32>
    %cst_216 = arith.constant 5.000000e-01 : f32
    %658 = vector.broadcast %cst_216 : f32 to vector<8x128xf32>
    %659 = arith.mulf %658, %657 : vector<8x128xf32>
    %660 = arith.addf %647, %650 : vector<8x128xf32>
    %cst_217 = arith.constant 5.000000e-01 : f32
    %661 = vector.broadcast %cst_217 : f32 to vector<8x128xf32>
    %662 = arith.mulf %661, %660 : vector<8x128xf32>
    %663 = math.tanh %662 : vector<8x128xf32>
    %cst_218 = arith.constant 1.000000e+00 : f32
    %664 = vector.broadcast %cst_218 : f32 to vector<8x128xf32>
    %665 = arith.addf %663, %664 : vector<8x128xf32>
    %cst_219 = arith.constant 5.000000e-01 : f32
    %666 = vector.broadcast %cst_219 : f32 to vector<8x128xf32>
    %667 = arith.mulf %666, %665 : vector<8x128xf32>
    %668 = arith.addf %651, %11 : vector<8x128xf32>
    %669 = arith.mulf %659, %668 : vector<8x128xf32>
    %670 = arith.addf %648, %669 : vector<8x128xf32>
    %671 = math.tanh %670 : vector<8x128xf32>
    %cst_220 = arith.constant 1.000000e+00 : f32
    %672 = vector.broadcast %cst_220 : f32 to vector<8x128xf32>
    %673 = arith.subf %672, %667 : vector<8x128xf32>
    %674 = arith.mulf %673, %671 : vector<8x128xf32>
    %675 = arith.mulf %667, %587 : vector<8x128xf32>
    %676 = arith.addf %674, %675 : vector<8x128xf32>
    %677 = arith.index_cast %c7_i32_199 : i32 to index
    %c0_221 = arith.constant 0 : index
    %c0_222 = arith.constant 0 : index
    %678 = vector.load %arg6[%677, %c0_221, %c0_222] : memref<8x8x128xf32, #tpu.memory_space<vmem>>, vector<1x8x128xf32>
    %679 = vector.shape_cast %678 : vector<1x8x128xf32> to vector<8x128xf32>
    %680 = arith.addf %679, %640 : vector<8x128xf32>
    %681 = arith.index_cast %c7_i32_199 : i32 to index
    %c0_223 = arith.constant 0 : index
    %c0_224 = arith.constant 0 : index
    %682 = vector.load %arg6[%681, %c0_223, %c0_224] : memref<8x8x128xf32, #tpu.memory_space<vmem>>, vector<1x8x128xf32>
    %683 = vector.shape_cast %682 : vector<1x8x128xf32> to vector<8x128xf32>
    %684 = vector.shape_cast %680 : vector<8x128xf32> to vector<1x8x128xf32>
    tpu.vector_store %arg6[%681, %c0_223, %c0_224], %684 {strides = array<i32>} : memref<8x8x128xf32, #tpu.memory_space<vmem>>, vector<1x8x128xf32>,
    %685 = arith.index_cast %604 : i32 to index
    %c0_225 = arith.constant 0 : index
    %c0_226 = arith.constant 0 : index
    %686 = vector.load %arg6[%685, %c0_225, %c0_226] : memref<8x8x128xf32, #tpu.memory_space<vmem>>, vector<1x8x128xf32>
    %687 = vector.shape_cast %686 : vector<1x8x128xf32> to vector<8x128xf32>
    %688 = arith.addf %687, %676 : vector<8x128xf32>
    %689 = arith.index_cast %604 : i32 to index
    %c0_227 = arith.constant 0 : index
    %c0_228 = arith.constant 0 : index
    %690 = vector.load %arg6[%689, %c0_227, %c0_228] : memref<8x8x128xf32, #tpu.memory_space<vmem>>, vector<1x8x128xf32>
    %691 = vector.shape_cast %690 : vector<1x8x128xf32> to vector<8x128xf32>
    %692 = vector.shape_cast %688 : vector<8x128xf32> to vector<1x8x128xf32>
    tpu.vector_store %arg6[%689, %c0_227, %c0_228], %692 {strides = array<i32>} : memref<8x8x128xf32, #tpu.memory_space<vmem>>, vector<1x8x128xf32>,
    %c4_i32_229 = arith.constant 4 : i32
    %c0_230 = arith.constant 0 : index
    %c0_231 = arith.constant 0 : index
    %c0_232 = arith.constant 0 : index
    %693 = vector.load %arg7[%c0_230, %c0_231, %c0_232] : memref<2x8x128xf32, #tpu.memory_space<vmem>>, vector<1x8x128xf32>
    %694 = vector.shape_cast %693 : vector<1x8x128xf32> to vector<8x128xf32>
    %695 = vector.shape_cast %640 : vector<8x128xf32> to vector<1x8x128xf32>
    tpu.vector_store %arg7[%c0_230, %c0_231, %c0_232], %695 {strides = array<i32>} : memref<2x8x128xf32, #tpu.memory_space<vmem>>, vector<1x8x128xf32>,
    %c1 = arith.constant 1 : index
    %c0_233 = arith.constant 0 : index
    %c0_234 = arith.constant 0 : index
    %696 = vector.load %arg7[%c1, %c0_233, %c0_234] : memref<2x8x128xf32, #tpu.memory_space<vmem>>, vector<1x8x128xf32>
    %697 = vector.shape_cast %696 : vector<1x8x128xf32> to vector<8x128xf32>
    %698 = vector.shape_cast %676 : vector<8x128xf32> to vector<1x8x128xf32>
    tpu.vector_store %arg7[%c1, %c0_233, %c0_234], %698 {strides = array<i32>} : memref<2x8x128xf32, #tpu.memory_space<vmem>>, vector<1x8x128xf32>,
    return
  }
}

</mosaic_0001>

<llo_original>
// kernel: tpu_custom_call.1
$region0: #{tpu_custom_call.1}
  #allocation0 [shape = 'u32[]', space=smem, size = 0x4, offset = 0x4, fixed_abs, tag = 'smem constant byte address 0x4 - core index']
  #allocation1 [shape = 'u32[144,128]{1,0:T(1,128)}', space=vmem, size = 0x12000, scoped, tag = 'internal scratch']
  #allocation2 [shape = 'f32[64,768]{1,0:T(8,128)}', space=vmem, size = 0x30000, scoped, tag = 'scratch operand']
  %s0 = inlined_call_operand.hbm [shape: f32[64,128], index: 0, kind: input, shape index: {}]
  %s1 = inlined_call_operand.hbm [shape: f32[128,768], index: 1, kind: input, shape index: {}]
  %s2 = inlined_call_operand.hbm [shape: f32[128,384], index: 2, kind: input, shape index: {}]
  %s3 = inlined_call_operand.hbm [shape: f32[128,384], index: 3, kind: input, shape index: {}]
  %s4 = inlined_call_operand.vmem [shape: f32[1,128], index: 4, kind: input, shape index: {}]
  %s5 = inlined_call_operand.vmem [shape: f32[1,128], index: 5, kind: input, shape index: {}]
  %s6 = inlined_call_operand.hbm [shape: f32[8,8,128], index: 6, kind: output, shape index: {0}]
  %s7 = inlined_call_operand.hbm [shape: f32[2,8,128], index: 7, kind: output, shape index: {1}]
  %8 = xla_tuple %s6, %s7
  %s9 = sld [smem:[#allocation0]]
  $region58: #{tpu_custom_call.1} parent=0
    _
  %s11 = ssub.s32 1, %s9
  %s12 = scalar_select 0, %s11, %s9
  $region1: #{tpu_custom_call.1} parent=0
    #allocation3 [shape = 'u8[32768]{0}', space=vmem, size = 0x8000, scoped, tag = 'input window, operand 0, single buffered']
    #allocation4 [shape = 's32[1]{0}', space=sflag, size = 0x4, scoped, tag = 'scoped memory for tpu_custom_call.1']
    #allocation5 [shape = 's32[1]{0}', space=sflag, size = 0x4, scoped, tag = 'scoped memory for tpu_custom_call.1']
    #allocation6 [shape = 'u8[393216]{0}', space=vmem, size = 0x60000, scoped, tag = 'input window, operand 1, single buffered']
    #allocation7 [shape = 's32[1]{0}', space=sflag, size = 0x4, scoped, tag = 'scoped memory for tpu_custom_call.1']
    #allocation8 [shape = 'u8[196608]{0}', space=vmem, size = 0x30000, scoped, tag = 'input window, operand 2, single buffered']
    #allocation9 [shape = 'u8[196608]{0}', space=vmem, size = 0x30000, scoped, tag = 'input window, operand 3, single buffered']
    #allocation10 [shape = 's32[1]{0}', space=sflag, size = 0x4, scoped, tag = 'scoped memory for tpu_custom_call.1']
    #allocation11 [shape = 'u8[32768]{0}', space=vmem, size = 0x8000, scoped, tag = 'output window, operand 0, single buffered']
    #allocation12 [shape = 'u8[8192]{0}', space=vmem, size = 0x2000, scoped, tag = 'output window, operand 1, single buffered']
    #allocation13 [shape = 's32[1]{0}', space=sflag, size = 0x4, scoped, tag = 'scoped memory for tpu_custom_call.1']
    %13 = vsyncpa [#allocation4], 0
    %14 = vsyncpa [#allocation7], 0
    %15 = vsyncpa [#allocation10], 0
    %16 = vsyncpa [#allocation5], 0
    %17 = vsyncpa [#allocation13], 0
    // Predicated region
    $region2: #{tpu_custom_call.1} parent=1 // pred_check
      _
    $region3: #{tpu_custom_call.1} parent=1 // pred_check_branch
      %19 = sbr.rel (0) target = $region5
    $region4: #{tpu_custom_call.1} parent=1 // pred_region
      %s21 = ssub.s32 1024, 1024
      %22 = vsyncadd [#allocation4], %s21
      %s23 = sshll.u32 [#allocation3], 4
      %s24 = int_to_ptr.vmem [resolvable:$true] %s23
      %29 = dma.hbm_to_vmem [thread:$0]  %s0, 1024, %s24, [#allocation4], 128, 128, 8
    $region5: #{tpu_custom_call.1} parent=1 // pred_fallthru
      _
    // Predicated region
    $region6: #{tpu_custom_call.1} parent=1 // pred_check
      _
    $region7: #{tpu_custom_call.1} parent=1 // pred_check_branch
      %31 = sbr.rel (0) target = $region9
    $region8: #{tpu_custom_call.1} parent=1 // pred_region
      %s33 = ssub.s32 12288, 12288
      %34 = vsyncadd [#allocation7], %s33
      %s35 = sshll.u32 [#allocation6], 4
      %s36 = int_to_ptr.vmem [resolvable:$true] %s35
      %41 = dma.hbm_to_vmem [thread:$0]  %s1, 12288, %s36, [#allocation7], 768, 768, 48
    $region9: #{tpu_custom_call.1} parent=1 // pred_fallthru
      _
    // Predicated region
    $region10: #{tpu_custom_call.1} parent=1 // pred_check
      _
    $region11: #{tpu_custom_call.1} parent=1 // pred_check_branch
      %43 = sbr.rel (0) target = $region13
    $region12: #{tpu_custom_call.1} parent=1 // pred_region
      %s45 = ssub.s32 6144, 6144
      %46 = vsyncadd [#allocation7], %s45
      %s47 = sshll.u32 [#allocation8], 4
      %s48 = int_to_ptr.vmem [resolvable:$true] %s47
      %53 = dma.hbm_to_vmem [thread:$0]  %s2, 6144, %s48, [#allocation7], 384, 384, 24
    $region13: #{tpu_custom_call.1} parent=1 // pred_fallthru
      _
    // Predicated region
    $region14: #{tpu_custom_call.1} parent=1 // pred_check
      _
    $region15: #{tpu_custom_call.1} parent=1 // pred_check_branch
      %55 = sbr.rel (0) target = $region17
    $region16: #{tpu_custom_call.1} parent=1 // pred_region
      %s57 = ssub.s32 6144, 6144
      %58 = vsyncadd [#allocation10], %s57
      %s59 = sshll.u32 [#allocation9], 4
      %s60 = int_to_ptr.vmem [resolvable:$true] %s59
      %65 = dma.hbm_to_vmem [thread:$0]  %s3, 6144, %s60, [#allocation10], 384, 384, 24
    $region17: #{tpu_custom_call.1} parent=1 // pred_fallthru
      _
    // Predicated region
    $region18: #{tpu_custom_call.1} parent=1 // pred_check
      _
    $region19: #{tpu_custom_call.1} parent=1 // pred_check_branch
      %67 = sbr.rel (0) target = $region21
    $region20: #{tpu_custom_call.1} parent=1 // pred_region
      _
    $region21: #{tpu_custom_call.1} parent=1 // pred_fallthru
      _
    // Predicated region
    $region22: #{tpu_custom_call.1} parent=1 // pred_check
      _
    $region23: #{tpu_custom_call.1} parent=1 // pred_check_branch
      %69 = sbr.rel (0) target = $region25
    $region24: #{tpu_custom_call.1} parent=1 // pred_region
      _
    $region25: #{tpu_custom_call.1} parent=1 // pred_fallthru
      _
    // Predicated region
    $region26: #{tpu_custom_call.1} parent=1 // pred_check
      _
    $region27: #{tpu_custom_call.1} parent=1 // pred_check_branch
      %71 = sbr.rel (0) target = $region29
    $region28: #{tpu_custom_call.1} parent=1 // pred_region
      %72 = dma.done [#allocation4], 1024
    $region29: #{tpu_custom_call.1} parent=1 // pred_fallthru
      _
    // Predicated region
    $region30: #{tpu_custom_call.1} parent=1 // pred_check
      _
    $region31: #{tpu_custom_call.1} parent=1 // pred_check_branch
      %74 = sbr.rel (0) target = $region33
    $region32: #{tpu_custom_call.1} parent=1 // pred_region
      %75 = dma.done [#allocation7], 12288
    $region33: #{tpu_custom_call.1} parent=1 // pred_fallthru
      _
    // Predicated region
    $region34: #{tpu_custom_call.1} parent=1 // pred_check
      _
    $region35: #{tpu_custom_call.1} parent=1 // pred_check_branch
      %77 = sbr.rel (0) target = $region37
    $region36: #{tpu_custom_call.1} parent=1 // pred_region
      %78 = dma.done [#allocation7], 6144
    $region37: #{tpu_custom_call.1} parent=1 // pred_fallthru
      _
    // Predicated region
    $region38: #{tpu_custom_call.1} parent=1 // pred_check
      _
    $region39: #{tpu_custom_call.1} parent=1 // pred_check_branch
      %80 = sbr.rel (0) target = $region41
    $region40: #{tpu_custom_call.1} parent=1 // pred_region
      %81 = dma.done [#allocation10], 6144
    $region41: #{tpu_custom_call.1} parent=1 // pred_fallthru
      _
    %v82 = vld [vmem:[#allocation3] sm:$0xff]
    %v83 = vld [vmem:[#allocation3 + $0x8] sm:$0xff]
    %v84 = vld [vmem:[#allocation3 + $0x10] sm:$0xff]
    %v85 = vld [vmem:[#allocation3 + $0x18] sm:$0xff]
    %v86 = vld [vmem:[#allocation3 + $0x20] sm:$0xff]
    %v87 = vld [vmem:[#allocation3 + $0x28] sm:$0xff]
    %v88 = vld [vmem:[#allocation3 + $0x30] sm:$0xff]
    %v89 = vld [vmem:[#allocation3 + $0x38] sm:$0xff]
    %v90 = vld [vmem:[#allocation6] sm:$0xff]
    %v91 = vld [vmem:[#allocation6 + $0x8] sm:$0xff]
    %v92 = vld [vmem:[#allocation6 + $0x10] sm:$0xff]
    %v93 = vld [vmem:[#allocation6 + $0x18] sm:$0xff]
    %v94 = vld [vmem:[#allocation6 + $0x20] sm:$0xff]
    %v95 = vld [vmem:[#allocation6 + $0x28] sm:$0xff]
    %v96 = vld [vmem:[#allocation6 + $0x30] sm:$0xff]
    %v97 = vld [vmem:[#allocation6 + $0x38] sm:$0xff]
    %v98 = vld [vmem:[#allocation6 + $0x40] sm:$0xff]
    %v99 = vld [vmem:[#allocation6 + $0x48] sm:$0xff]
    %v100 = vld [vmem:[#allocation6 + $0x50] sm:$0xff]
    %v101 = vld [vmem:[#allocation6 + $0x58] sm:$0xff]
    %v102 = vld [vmem:[#allocation6 + $0x60] sm:$0xff]
    %v103 = vld [vmem:[#allocation6 + $0x68] sm:$0xff]
    %v104 = vld [vmem:[#allocation6 + $0x70] sm:$0xff]
    %v105 = vld [vmem:[#allocation6 + $0x78] sm:$0xff]
    %v106 = vld [vmem:[#allocation6 + $0x80] sm:$0xff]
    %v107 = vld [vmem:[#allocation6 + $0x88] sm:$0xff]
    %v108 = vld [vmem:[#allocation6 + $0x90] sm:$0xff]
    %v109 = vld [vmem:[#allocation6 + $0x98] sm:$0xff]
    %v110 = vld [vmem:[#allocation6 + $0xa0] sm:$0xff]
    %v111 = vld [vmem:[#allocation6 + $0xa8] sm:$0xff]
    %v112 = vld [vmem:[#allocation6 + $0xb0] sm:$0xff]
    %v113 = vld [vmem:[#allocation6 + $0xb8] sm:$0xff]
    %v114 = vld [vmem:[#allocation6 + $0xc0] sm:$0xff]
    %v115 = vld [vmem:[#allocation6 + $0xc8] sm:$0xff]
    %v116 = vld [vmem:[#allocation6 + $0xd0] sm:$0xff]
    %v117 = vld [vmem:[#allocation6 + $0xd8] sm:$0xff]
    %v118 = vld [vmem:[#allocation6 + $0xe0] sm:$0xff]
    %v119 = vld [vmem:[#allocation6 + $0xe8] sm:$0xff]
    %v120 = vld [vmem:[#allocation6 + $0xf0] sm:$0xff]
    %v121 = vld [vmem:[#allocation6 + $0xf8] sm:$0xff]
    %v122 = vld [vmem:[#allocation6 + $0x100] sm:$0xff]
    %v123 = vld [vmem:[#allocation6 + $0x108] sm:$0xff]
    %v124 = vld [vmem:[#allocation6 + $0x110] sm:$0xff]
    %v125 = vld [vmem:[#allocation6 + $0x118] sm:$0xff]
    %v126 = vld [vmem:[#allocation6 + $0x120] sm:$0xff]
    %v127 = vld [vmem:[#allocation6 + $0x128] sm:$0xff]
    %v128 = vld [vmem:[#allocation6 + $0x130] sm:$0xff]
    %v129 = vld [vmem:[#allocation6 + $0x138] sm:$0xff]
    %v130 = vld [vmem:[#allocation6 + $0x140] sm:$0xff]
    %v131 = vld [vmem:[#allocation6 + $0x148] sm:$0xff]
    %v132 = vld [vmem:[#allocation6 + $0x150] sm:$0xff]
    %v133 = vld [vmem:[#allocation6 + $0x158] sm:$0xff]
    %v134 = vld [vmem:[#allocation6 + $0x160] sm:$0xff]
    %v135 = vld [vmem:[#allocation6 + $0x168] sm:$0xff]
    %v136 = vld [vmem:[#allocation6 + $0x170] sm:$0xff]
    %v137 = vld [vmem:[#allocation6 + $0x178] sm:$0xff]
    %v138 = vld [vmem:[#allocation6 + $0x180] sm:$0xff]
    %v139 = vld [vmem:[#allocation6 + $0x188] sm:$0xff]
    %v140 = vld [vmem:[#allocation6 + $0x190] sm:$0xff]
    %v141 = vld [vmem:[#allocation6 + $0x198] sm:$0xff]
    %v142 = vld [vmem:[#allocation6 + $0x1a0] sm:$0xff]
    %v143 = vld [vmem:[#allocation6 + $0x1a8] sm:$0xff]
    %v144 = vld [vmem:[#allocation6 + $0x1b0] sm:$0xff]
    %v145 = vld [vmem:[#allocation6 + $0x1b8] sm:$0xff]
    %v146 = vld [vmem:[#allocation6 + $0x1c0] sm:$0xff]
    %v147 = vld [vmem:[#allocation6 + $0x1c8] sm:$0xff]
    %v148 = vld [vmem:[#allocation6 + $0x1d0] sm:$0xff]
    %v149 = vld [vmem:[#allocation6 + $0x1d8] sm:$0xff]
    %v150 = vld [vmem:[#allocation6 + $0x1e0] sm:$0xff]
    %v151 = vld [vmem:[#allocation6 + $0x1e8] sm:$0xff]
    %v152 = vld [vmem:[#allocation6 + $0x1f0] sm:$0xff]
    %v153 = vld [vmem:[#allocation6 + $0x1f8] sm:$0xff]
    %v154 = vld [vmem:[#allocation6 + $0x200] sm:$0xff]
    %v155 = vld [vmem:[#allocation6 + $0x208] sm:$0xff]
    %v156 = vld [vmem:[#allocation6 + $0x210] sm:$0xff]
    %v157 = vld [vmem:[#allocation6 + $0x218] sm:$0xff]
    %v158 = vld [vmem:[#allocation6 + $0x220] sm:$0xff]
    %v159 = vld [vmem:[#allocation6 + $0x228] sm:$0xff]
    %v160 = vld [vmem:[#allocation6 + $0x230] sm:$0xff]
    %v161 = vld [vmem:[#allocation6 + $0x238] sm:$0xff]
    %v162 = vld [vmem:[#allocation6 + $0x240] sm:$0xff]
    %v163 = vld [vmem:[#allocation6 + $0x248] sm:$0xff]
    %v164 = vld [vmem:[#allocation6 + $0x250] sm:$0xff]
    %v165 = vld [vmem:[#allocation6 + $0x258] sm:$0xff]
    %v166 = vld [vmem:[#allocation6 + $0x260] sm:$0xff]
    %v167 = vld [vmem:[#allocation6 + $0x268] sm:$0xff]
    %v168 = vld [vmem:[#allocation6 + $0x270] sm:$0xff]
    %v169 = vld [vmem:[#allocation6 + $0x278] sm:$0xff]
    %v170 = vld [vmem:[#allocation6 + $0x280] sm:$0xff]
    %v171 = vld [vmem:[#allocation6 + $0x288] sm:$0xff]
    %v172 = vld [vmem:[#allocation6 + $0x290] sm:$0xff]
    %v173 = vld [vmem:[#allocation6 + $0x298] sm:$0xff]
    %v174 = vld [vmem:[#allocation6 + $0x2a0] sm:$0xff]
    %v175 = vld [vmem:[#allocation6 + $0x2a8] sm:$0xff]
    %v176 = vld [vmem:[#allocation6 + $0x2b0] sm:$0xff]
    %v177 = vld [vmem:[#allocation6 + $0x2b8] sm:$0xff]
    %v178 = vld [vmem:[#allocation6 + $0x2c0] sm:$0xff]
    %v179 = vld [vmem:[#allocation6 + $0x2c8] sm:$0xff]
    %v180 = vld [vmem:[#allocation6 + $0x2d0] sm:$0xff]
    %v181 = vld [vmem:[#allocation6 + $0x2d8] sm:$0xff]
    %v182 = vld [vmem:[#allocation6 + $0x2e0] sm:$0xff]
    %v183 = vld [vmem:[#allocation6 + $0x2e8] sm:$0xff]
    %v184 = vld [vmem:[#allocation6 + $0x2f0] sm:$0xff]
    %v185 = vld [vmem:[#allocation6 + $0x2f8] sm:$0xff]
    %186 = vmatprep.subr.mxu0 %v91
    %187 = vmatpush1.msra.mxu0 %v90
    %188 = vmatprep.subr.mxu0 %v97
    %189 = vmatpush1.msra.mxu0 %v96
    %190 = vmatprep.subr.mxu0 %v103
    %191 = vmatpush1.msra.mxu0 %v102
    %192 = vmatprep.subr.mxu0 %v109
    %193 = vmatpush1.msra.mxu0 %v108
    %194 = vmatprep.subr.mxu0 %v115
    %195 = vmatpush1.msra.mxu0 %v114
    %196 = vmatprep.subr.mxu0 %v121
    %197 = vmatpush1.msra.mxu0 %v120
    %198 = vmatprep.subr.mxu0 %v127
    %199 = vmatpush1.msra.mxu0 %v126
    %200 = vmatprep.subr.mxu0 %v133
    %201 = vmatpush1.msra.mxu0 %v132
    %202 = vmatprep.subr.mxu0 %v139
    %203 = vmatpush1.msra.mxu0 %v138
    %204 = vmatprep.subr.mxu0 %v145
    %205 = vmatpush1.msra.mxu0 %v144
    %206 = vmatprep.subr.mxu0 %v151
    %207 = vmatpush1.msra.mxu0 %v150
    %208 = vmatprep.subr.mxu0 %v157
    %209 = vmatpush1.msra.mxu0 %v156
    %210 = vmatprep.subr.mxu0 %v163
    %211 = vmatpush1.msra.mxu0 %v162
    %212 = vmatprep.subr.mxu0 %v169
    %213 = vmatpush1.msra.mxu0 %v168
    %214 = vmatprep.subr.mxu0 %v175
    %215 = vmatpush1.msra.mxu0 %v174
    %216 = vmatprep.subr.mxu0 %v181
    %217 = vmatpush1.msra.mxu0 %v180
    %218 = vmatprep.subr.mxu0 0.0
    %219 = vmatpush1.msra.mxu0 0.0
    %220 = vmatprep.subr.mxu0 0.0
    %221 = vmatpush1.msra.mxu0 0.0
    %222 = vmatprep.subr.mxu0 0.0
    %223 = vmatpush1.msra.mxu0 0.0
    %224 = vmatprep.subr.mxu0 0.0
    %225 = vmatpush1.msra.mxu0 0.0
    %226 = vmatprep.subr.mxu0 0.0
    %227 = vmatpush1.msra.mxu0 0.0
    %228 = vmatprep.subr.mxu0 0.0
    %229 = vmatpush1.msra.mxu0 0.0
    %230 = vmatprep.subr.mxu0 0.0
    %231 = vmatpush1.msra.mxu0 0.0
    %232 = vmatprep.subr.mxu0 0.0
    %233 = vmatpush1.msra.mxu0 0.0
    %234 = vmatprep.subr.mxu0 0.0
    %235 = vmatpush1.msra.mxu0 0.0
    %236 = vmatprep.subr.mxu0 0.0
    %237 = vmatpush1.msra.mxu0 0.0
    %238 = vmatprep.subr.mxu0 0.0
    %239 = vmatpush1.msra.mxu0 0.0
    %240 = vmatprep.subr.mxu0 0.0
    %241 = vmatpush1.msra.mxu0 0.0
    %242 = vmatprep.subr.mxu0 0.0
    %243 = vmatpush1.msra.mxu0 0.0
    %244 = vmatprep.subr.mxu0 0.0
    %245 = vmatpush1.msra.mxu0 0.0
    %246 = vmatprep.subr.mxu0 0.0
    %247 = vmatpush1.msra.mxu0 0.0
    %248 = vmatprep.subr.mxu0 0.0
    %249 = vmatpush1.msra.mxu0 0.0
    %250 = vmatprep.mubr.f32.mxu0 0.0
    %251 = vmatmul.mubr.f32.gmra.mrb[0].mxu0 %v82
    %v252 = vpop.f32.mrb[0].mxu0
    %v253 = vadd.f32 0.0, %v252
    %v254 = vpop.f32.mrb[0].mxu0
    %v255 = vadd.f32 0.0, %v254
    %256 = vmatprep.mubr.f32.mxu0 0.0
    %257 = vmatmul.mubr.f32.gmra.mrb[0].mxu0 %v83
    %v258 = vpop.f32.mrb[0].mxu0
    %v259 = vadd.f32 0.0, %v258
    %v260 = vpop.f32.mrb[0].mxu0
    %v261 = vadd.f32 0.0, %v260
    %262 = vmatprep.mubr.f32.mxu0 0.0
    %263 = vmatmul.mubr.f32.gmra.mrb[0].mxu0 %v84
    %v264 = vpop.f32.mrb[0].mxu0
    %v265 = vadd.f32 0.0, %v264
    %v266 = vpop.f32.mrb[0].mxu0
    %v267 = vadd.f32 0.0, %v266
    %268 = vmatprep.mubr.f32.mxu0 0.0
    %269 = vmatmul.mubr.f32.gmra.mrb[0].mxu0 %v85
    %v270 = vpop.f32.mrb[0].mxu0
    %v271 = vadd.f32 0.0, %v270
    %v272 = vpop.f32.mrb[0].mxu0
    %v273 = vadd.f32 0.0, %v272
    %274 = vmatprep.mubr.f32.mxu0 0.0
    %275 = vmatmul.mubr.f32.gmra.mrb[0].mxu0 %v86
    %v276 = vpop.f32.mrb[0].mxu0
    %v277 = vadd.f32 0.0, %v276
    %v278 = vpop.f32.mrb[0].mxu0
    %v279 = vadd.f32 0.0, %v278
    %280 = vmatprep.mubr.f32.mxu0 0.0
    %281 = vmatmul.mubr.f32.gmra.mrb[0].mxu0 %v87
    %v282 = vpop.f32.mrb[0].mxu0
    %v283 = vadd.f32 0.0, %v282
    %v284 = vpop.f32.mrb[0].mxu0
    %v285 = vadd.f32 0.0, %v284
    %286 = vmatprep.mubr.f32.mxu0 0.0
    %287 = vmatmul.mubr.f32.gmra.mrb[0].mxu0 %v88
    %v288 = vpop.f32.mrb[0].mxu0
    %v289 = vadd.f32 0.0, %v288
    %v290 = vpop.f32.mrb[0].mxu0
    %v291 = vadd.f32 0.0, %v290
    %292 = vmatprep.mubr.f32.mxu0 0.0
    %293 = vmatmul.mubr.f32.gmra.mrb[0].mxu0 %v89
    %v294 = vpop.f32.mrb[0].mxu0
    %v295 = vadd.f32 0.0, %v294
    %v296 = vpop.f32.mrb[0].mxu0
    %v297 = vadd.f32 0.0, %v296
    %298 = vdwg.mxu0
    %299 = vmatprep.subr.mxu0 %v93
    %300 = vmatpush1.msra.mxu0 %v92
    %301 = vmatprep.subr.mxu0 %v99
    %302 = vmatpush1.msra.mxu0 %v98
    %303 = vmatprep.subr.mxu0 %v105
    %304 = vmatpush1.msra.mxu0 %v104
    %305 = vmatprep.subr.mxu0 %v111
    %306 = vmatpush1.msra.mxu0 %v110
    %307 = vmatprep.subr.mxu0 %v117
    %308 = vmatpush1.msra.mxu0 %v116
    %309 = vmatprep.subr.mxu0 %v123
    %310 = vmatpush1.msra.mxu0 %v122
    %311 = vmatprep.subr.mxu0 %v129
    %312 = vmatpush1.msra.mxu0 %v128
    %313 = vmatprep.subr.mxu0 %v135
    %314 = vmatpush1.msra.mxu0 %v134
    %315 = vmatprep.subr.mxu0 %v141
    %316 = vmatpush1.msra.mxu0 %v140
    %317 = vmatprep.subr.mxu0 %v147
    %318 = vmatpush1.msra.mxu0 %v146
    %319 = vmatprep.subr.mxu0 %v153
    %320 = vmatpush1.msra.mxu0 %v152
    %321 = vmatprep.subr.mxu0 %v159
    %322 = vmatpush1.msra.mxu0 %v158
    %323 = vmatprep.subr.mxu0 %v165
    %324 = vmatpush1.msra.mxu0 %v164
    %325 = vmatprep.subr.mxu0 %v171
    %326 = vmatpush1.msra.mxu0 %v170
    %327 = vmatprep.subr.mxu0 %v177
    %328 = vmatpush1.msra.mxu0 %v176
    %329 = vmatprep.subr.mxu0 %v183
    %330 = vmatpush1.msra.mxu0 %v182
    %331 = vmatprep.subr.mxu0 0.0
    %332 = vmatpush1.msra.mxu0 0.0
    %333 = vmatprep.subr.mxu0 0.0
    %334 = vmatpush1.msra.mxu0 0.0
    %335 = vmatprep.subr.mxu0 0.0
    %336 = vmatpush1.msra.mxu0 0.0
    %337 = vmatprep.subr.mxu0 0.0
    %338 = vmatpush1.msra.mxu0 0.0
    %339 = vmatprep.subr.mxu0 0.0
    %340 = vmatpush1.msra.mxu0 0.0
    %341 = vmatprep.subr.mxu0 0.0
    %342 = vmatpush1.msra.mxu0 0.0
    %343 = vmatprep.subr.mxu0 0.0
    %344 = vmatpush1.msra.mxu0 0.0
    %345 = vmatprep.subr.mxu0 0.0
    %346 = vmatpush1.msra.mxu0 0.0
    %347 = vmatprep.subr.mxu0 0.0
    %348 = vmatpush1.msra.mxu0 0.0
    %349 = vmatprep.subr.mxu0 0.0
    %350 = vmatpush1.msra.mxu0 0.0
    %351 = vmatprep.subr.mxu0 0.0
    %352 = vmatpush1.msra.mxu0 0.0
    %353 = vmatprep.subr.mxu0 0.0
    %354 = vmatpush1.msra.mxu0 0.0
    %355 = vmatprep.subr.mxu0 0.0
    %356 = vmatpush1.msra.mxu0 0.0
    %357 = vmatprep.subr.mxu0 0.0
    %358 = vmatpush1.msra.mxu0 0.0
    %359 = vmatprep.subr.mxu0 0.0
    %360 = vmatpush1.msra.mxu0 0.0
    %361 = vmatprep.subr.mxu0 0.0
    %362 = vmatpush1.msra.mxu0 0.0
    %363 = vmatprep.mubr.f32.mxu0 0.0
    %364 = vmatmul.mubr.f32.gmra.mrb[0].mxu0 %v82
    %v365 = vpop.f32.mrb[0].mxu0
    %v366 = vadd.f32 0.0, %v365
    %v367 = vpop.f32.mrb[0].mxu0
    %v368 = vadd.f32 0.0, %v367
    %369 = vmatprep.mubr.f32.mxu0 0.0
    %370 = vmatmul.mubr.f32.gmra.mrb[0].mxu0 %v83
    %v371 = vpop.f32.mrb[0].mxu0
    %v372 = vadd.f32 0.0, %v371
    %v373 = vpop.f32.mrb[0].mxu0
    %v374 = vadd.f32 0.0, %v373
    %375 = vmatprep.mubr.f32.mxu0 0.0
    %376 = vmatmul.mubr.f32.gmra.mrb[0].mxu0 %v84
    %v377 = vpop.f32.mrb[0].mxu0
    %v378 = vadd.f32 0.0, %v377
    %v379 = vpop.f32.mrb[0].mxu0
    %v380 = vadd.f32 0.0, %v379
    %381 = vmatprep.mubr.f32.mxu0 0.0
    %382 = vmatmul.mubr.f32.gmra.mrb[0].mxu0 %v85
    %v383 = vpop.f32.mrb[0].mxu0
    %v384 = vadd.f32 0.0, %v383
    %v385 = vpop.f32.mrb[0].mxu0
    %v386 = vadd.f32 0.0, %v385
    %387 = vmatprep.mubr.f32.mxu0 0.0
    %388 = vmatmul.mubr.f32.gmra.mrb[0].mxu0 %v86
    %v389 = vpop.f32.mrb[0].mxu0
    %v390 = vadd.f32 0.0, %v389
    %v391 = vpop.f32.mrb[0].mxu0
    %v392 = vadd.f32 0.0, %v391
    %393 = vmatprep.mubr.f32.mxu0 0.0
    %394 = vmatmul.mubr.f32.gmra.mrb[0].mxu0 %v87
    %v395 = vpop.f32.mrb[0].mxu0
    %v396 = vadd.f32 0.0, %v395
    %v397 = vpop.f32.mrb[0].mxu0
    %v398 = vadd.f32 0.0, %v397
    %399 = vmatprep.mubr.f32.mxu0 0.0
    %400 = vmatmul.mubr.f32.gmra.mrb[0].mxu0 %v88
    %v401 = vpop.f32.mrb[0].mxu0
    %v402 = vadd.f32 0.0, %v401
    %v403 = vpop.f32.mrb[0].mxu0
    %v404 = vadd.f32 0.0, %v403
    %405 = vmatprep.mubr.f32.mxu0 0.0
    %406 = vmatmul.mubr.f32.gmra.mrb[0].mxu0 %v89
    %v407 = vpop.f32.mrb[0].mxu0
    %v408 = vadd.f32 0.0, %v407
    %v409 = vpop.f32.mrb[0].mxu0
    %v410 = vadd.f32 0.0, %v409
    %411 = vdwg.mxu0
    %412 = vmatprep.subr.mxu0 %v95
    %413 = vmatpush1.msra.mxu0 %v94
    %414 = vmatprep.subr.mxu0 %v101
    %415 = vmatpush1.msra.mxu0 %v100
    %416 = vmatprep.subr.mxu0 %v107
    %417 = vmatpush1.msra.mxu0 %v106
    %418 = vmatprep.subr.mxu0 %v113
    %419 = vmatpush1.msra.mxu0 %v112
    %420 = vmatprep.subr.mxu0 %v119
    %421 = vmatpush1.msra.mxu0 %v118
    %422 = vmatprep.subr.mxu0 %v125
    %423 = vmatpush1.msra.mxu0 %v124
    %424 = vmatprep.subr.mxu0 %v131
    %425 = vmatpush1.msra.mxu0 %v130
    %426 = vmatprep.subr.mxu0 %v137
    %427 = vmatpush1.msra.mxu0 %v136
    %428 = vmatprep.subr.mxu0 %v143
    %429 = vmatpush1.msra.mxu0 %v142
    %430 = vmatprep.subr.mxu0 %v149
    %431 = vmatpush1.msra.mxu0 %v148
    %432 = vmatprep.subr.mxu0 %v155
    %433 = vmatpush1.msra.mxu0 %v154
    %434 = vmatprep.subr.mxu0 %v161
    %435 = vmatpush1.msra.mxu0 %v160
    %436 = vmatprep.subr.mxu0 %v167
    %437 = vmatpush1.msra.mxu0 %v166
    %438 = vmatprep.subr.mxu0 %v173
    %439 = vmatpush1.msra.mxu0 %v172
    %440 = vmatprep.subr.mxu0 %v179
    %441 = vmatpush1.msra.mxu0 %v178
    %442 = vmatprep.subr.mxu0 %v185
    %443 = vmatpush1.msra.mxu0 %v184
    %444 = vmatprep.subr.mxu0 0.0
    %445 = vmatpush1.msra.mxu0 0.0
    %446 = vmatprep.subr.mxu0 0.0
    %447 = vmatpush1.msra.mxu0 0.0
    %448 = vmatprep.subr.mxu0 0.0
    %449 = vmatpush1.msra.mxu0 0.0
    %450 = vmatprep.subr.mxu0 0.0
    %451 = vmatpush1.msra.mxu0 0.0
    %452 = vmatprep.subr.mxu0 0.0
    %453 = vmatpush1.msra.mxu0 0.0
    %454 = vmatprep.subr.mxu0 0.0
    %455 = vmatpush1.msra.mxu0 0.0
    %456 = vmatprep.subr.mxu0 0.0
    %457 = vmatpush1.msra.mxu0 0.0
    %458 = vmatprep.subr.mxu0 0.0
    %459 = vmatpush1.msra.mxu0 0.0
    %460 = vmatprep.subr.mxu0 0.0
    %461 = vmatpush1.msra.mxu0 0.0
    %462 = vmatprep.subr.mxu0 0.0
    %463 = vmatpush1.msra.mxu0 0.0
    %464 = vmatprep.subr.mxu0 0.0
    %465 = vmatpush1.msra.mxu0 0.0
    %466 = vmatprep.subr.mxu0 0.0
    %467 = vmatpush1.msra.mxu0 0.0
    %468 = vmatprep.subr.mxu0 0.0
    %469 = vmatpush1.msra.mxu0 0.0
    %470 = vmatprep.subr.mxu0 0.0
    %471 = vmatpush1.msra.mxu0 0.0
    %472 = vmatprep.subr.mxu0 0.0
    %473 = vmatpush1.msra.mxu0 0.0
    %474 = vmatprep.subr.mxu0 0.0
    %475 = vmatpush1.msra.mxu0 0.0
    %476 = vmatprep.mubr.f32.mxu0 0.0
    %477 = vmatmul.mubr.f32.gmra.mrb[0].mxu0 %v82
    %v478 = vpop.f32.mrb[0].mxu0
    %v479 = vadd.f32 0.0, %v478
    %v480 = vpop.f32.mrb[0].mxu0
    %v481 = vadd.f32 0.0, %v480
    %482 = vmatprep.mubr.f32.mxu0 0.0
    %483 = vmatmul.mubr.f32.gmra.mrb[0].mxu0 %v83
    %v484 = vpop.f32.mrb[0].mxu0
    %v485 = vadd.f32 0.0, %v484
    %v486 = vpop.f32.mrb[0].mxu0
    %v487 = vadd.f32 0.0, %v486
    %488 = vmatprep.mubr.f32.mxu0 0.0
    %489 = vmatmul.mubr.f32.gmra.mrb[0].mxu0 %v84
    %v490 = vpop.f32.mrb[0].mxu0
    %v491 = vadd.f32 0.0, %v490
    %v492 = vpop.f32.mrb[0].mxu0
    %v493 = vadd.f32 0.0, %v492
    %494 = vmatprep.mubr.f32.mxu0 0.0
    %495 = vmatmul.mubr.f32.gmra.mrb[0].mxu0 %v85
    %v496 = vpop.f32.mrb[0].mxu0
    %v497 = vadd.f32 0.0, %v496
    %v498 = vpop.f32.mrb[0].mxu0
    %v499 = vadd.f32 0.0, %v498
    %500 = vmatprep.mubr.f32.mxu0 0.0
    %501 = vmatmul.mubr.f32.gmra.mrb[0].mxu0 %v86
    %v502 = vpop.f32.mrb[0].mxu0
    %v503 = vadd.f32 0.0, %v502
    %v504 = vpop.f32.mrb[0].mxu0
    %v505 = vadd.f32 0.0, %v504
    %506 = vmatprep.mubr.f32.mxu0 0.0
    %507 = vmatmul.mubr.f32.gmra.mrb[0].mxu0 %v87
    %v508 = vpop.f32.mrb[0].mxu0
    %v509 = vadd.f32 0.0, %v508
    %v510 = vpop.f32.mrb[0].mxu0
    %v511 = vadd.f32 0.0, %v510
    %512 = vmatprep.mubr.f32.mxu0 0.0
    %513 = vmatmul.mubr.f32.gmra.mrb[0].mxu0 %v88
    %v514 = vpop.f32.mrb[0].mxu0
    %v515 = vadd.f32 0.0, %v514
    %v516 = vpop.f32.mrb[0].mxu0
    %v517 = vadd.f32 0.0, %v516
    %518 = vmatprep.mubr.f32.mxu0 0.0
    %519 = vmatmul.mubr.f32.gmra.mrb[0].mxu0 %v89
    %v520 = vpop.f32.mrb[0].mxu0
    %v521 = vadd.f32 0.0, %v520
    %v522 = vpop.f32.mrb[0].mxu0
    %v523 = vadd.f32 0.0, %v522
    %524 = vdwg.mxu0
    %525 = vst [vmem:[#allocation2] sm:$0xff] %v253
    %526 = vst [vmem:[#allocation2 + $0x8] sm:$0xff] %v255
    %527 = vst [vmem:[#allocation2 + $0x10] sm:$0xff] %v366
    %528 = vst [vmem:[#allocation2 + $0x18] sm:$0xff] %v368
    %529 = vst [vmem:[#allocation2 + $0x20] sm:$0xff] %v479
    %530 = vst [vmem:[#allocation2 + $0x28] sm:$0xff] %v481
    %531 = vst [vmem:[#allocation2 + $0x30] sm:$0xff] %v259
    %532 = vst [vmem:[#allocation2 + $0x38] sm:$0xff] %v261
    %533 = vst [vmem:[#allocation2 + $0x40] sm:$0xff] %v372
    %534 = vst [vmem:[#allocation2 + $0x48] sm:$0xff] %v374
    %535 = vst [vmem:[#allocation2 + $0x50] sm:$0xff] %v485
    %536 = vst [vmem:[#allocation2 + $0x58] sm:$0xff] %v487
    %537 = vst [vmem:[#allocation2 + $0x60] sm:$0xff] %v265
    %538 = vst [vmem:[#allocation2 + $0x68] sm:$0xff] %v267
    %539 = vst [vmem:[#allocation2 + $0x70] sm:$0xff] %v378
    %540 = vst [vmem:[#allocation2 + $0x78] sm:$0xff] %v380
    %541 = vst [vmem:[#allocation2 + $0x80] sm:$0xff] %v491
    %542 = vst [vmem:[#allocation2 + $0x88] sm:$0xff] %v493
    %543 = vst [vmem:[#allocation2 + $0x90] sm:$0xff] %v271
    %544 = vst [vmem:[#allocation2 + $0x98] sm:$0xff] %v273
    %545 = vst [vmem:[#allocation2 + $0xa0] sm:$0xff] %v384
    %546 = vst [vmem:[#allocation2 + $0xa8] sm:$0xff] %v386
    %547 = vst [vmem:[#allocation2 + $0xb0] sm:$0xff] %v497
    %548 = vst [vmem:[#allocation2 + $0xb8] sm:$0xff] %v499
    %549 = vst [vmem:[#allocation2 + $0xc0] sm:$0xff] %v277
    %550 = vst [vmem:[#allocation2 + $0xc8] sm:$0xff] %v279
    %551 = vst [vmem:[#allocation2 + $0xd0] sm:$0xff] %v390
    %552 = vst [vmem:[#allocation2 + $0xd8] sm:$0xff] %v392
    %553 = vst [vmem:[#allocation2 + $0xe0] sm:$0xff] %v503
    %554 = vst [vmem:[#allocation2 + $0xe8] sm:$0xff] %v505
    %555 = vst [vmem:[#allocation2 + $0xf0] sm:$0xff] %v283
    %556 = vst [vmem:[#allocation2 + $0xf8] sm:$0xff] %v285
    %557 = vst [vmem:[#allocation2 + $0x100] sm:$0xff] %v396
    %558 = vst [vmem:[#allocation2 + $0x108] sm:$0xff] %v398
    %559 = vst [vmem:[#allocation2 + $0x110] sm:$0xff] %v509
    %560 = vst [vmem:[#allocation2 + $0x118] sm:$0xff] %v511
    %561 = vst [vmem:[#allocation2 + $0x120] sm:$0xff] %v289
    %562 = vst [vmem:[#allocation2 + $0x128] sm:$0xff] %v291
    %563 = vst [vmem:[#allocation2 + $0x130] sm:$0xff] %v402
    %564 = vst [vmem:[#allocation2 + $0x138] sm:$0xff] %v404
    %565 = vst [vmem:[#allocation2 + $0x140] sm:$0xff] %v515
    %566 = vst [vmem:[#allocation2 + $0x148] sm:$0xff] %v517
    %567 = vst [vmem:[#allocation2 + $0x150] sm:$0xff] %v295
    %568 = vst [vmem:[#allocation2 + $0x158] sm:$0xff] %v297
    %569 = vst [vmem:[#allocation2 + $0x160] sm:$0xff] %v408
    %570 = vst [vmem:[#allocation2 + $0x168] sm:$0xff] %v410
    %571 = vst [vmem:[#allocation2 + $0x170] sm:$0xff] %v521
    %572 = vst [vmem:[#allocation2 + $0x178] sm:$0xff] %v523
    %v573 = vld [vmem:[#allocation8] sm:$0xff]
    %v574 = vld [vmem:[#allocation8 + $0x8] sm:$0xff]
    %v575 = vld [vmem:[#allocation8 + $0x10] sm:$0xff]
    %v576 = vld [vmem:[#allocation8 + $0x18] sm:$0xff]
    %v577 = vld [vmem:[#allocation8 + $0x20] sm:$0xff]
    %v578 = vld [vmem:[#allocation8 + $0x28] sm:$0xff]
    %v579 = vld [vmem:[#allocation8 + $0x30] sm:$0xff]
    %v580 = vld [vmem:[#allocation8 + $0x38] sm:$0xff]
    %v581 = vld [vmem:[#allocation8 + $0x40] sm:$0xff]
    %v582 = vld [vmem:[#allocation8 + $0x48] sm:$0xff]
    %v583 = vld [vmem:[#allocation8 + $0x50] sm:$0xff]
    %v584 = vld [vmem:[#allocation8 + $0x58] sm:$0xff]
    %v585 = vld [vmem:[#allocation8 + $0x60] sm:$0xff]
    %v586 = vld [vmem:[#allocation8 + $0x68] sm:$0xff]
    %v587 = vld [vmem:[#allocation8 + $0x70] sm:$0xff]
    %v588 = vld [vmem:[#allocation8 + $0x78] sm:$0xff]
    %v589 = vld [vmem:[#allocation8 + $0x80] sm:$0xff]
    %v590 = vld [vmem:[#allocation8 + $0x88] sm:$0xff]
    %v591 = vld [vmem:[#allocation8 + $0x90] sm:$0xff]
    %v592 = vld [vmem:[#allocation8 + $0x98] sm:$0xff]
    %v593 = vld [vmem:[#allocation8 + $0xa0] sm:$0xff]
    %v594 = vld [vmem:[#allocation8 + $0xa8] sm:$0xff]
    %v595 = vld [vmem:[#allocation8 + $0xb0] sm:$0xff]
    %v596 = vld [vmem:[#allocation8 + $0xb8] sm:$0xff]
    %v597 = vld [vmem:[#allocation8 + $0xc0] sm:$0xff]
    %v598 = vld [vmem:[#allocation8 + $0xc8] sm:$0xff]
    %v599 = vld [vmem:[#allocation8 + $0xd0] sm:$0xff]
    %v600 = vld [vmem:[#allocation8 + $0xd8] sm:$0xff]
    %v601 = vld [vmem:[#allocation8 + $0xe0] sm:$0xff]
    %v602 = vld [vmem:[#allocation8 + $0xe8] sm:$0xff]
    %v603 = vld [vmem:[#allocation8 + $0xf0] sm:$0xff]
    %v604 = vld [vmem:[#allocation8 + $0xf8] sm:$0xff]
    %v605 = vld [vmem:[#allocation8 + $0x100] sm:$0xff]
    %v606 = vld [vmem:[#allocation8 + $0x108] sm:$0xff]
    %v607 = vld [vmem:[#allocation8 + $0x110] sm:$0xff]
    %v608 = vld [vmem:[#allocation8 + $0x118] sm:$0xff]
    %v609 = vld [vmem:[#allocation8 + $0x120] sm:$0xff]
    %v610 = vld [vmem:[#allocation8 + $0x128] sm:$0xff]
    %v611 = vld [vmem:[#allocation8 + $0x130] sm:$0xff]
    %v612 = vld [vmem:[#allocation8 + $0x138] sm:$0xff]
    %v613 = vld [vmem:[#allocation8 + $0x140] sm:$0xff]
    %v614 = vld [vmem:[#allocation8 + $0x148] sm:$0xff]
    %v615 = vld [vmem:[#allocation8 + $0x150] sm:$0xff]
    %v616 = vld [vmem:[#allocation8 + $0x158] sm:$0xff]
    %v617 = vld [vmem:[#allocation8 + $0x160] sm:$0xff]
    %v618 = vld [vmem:[#allocation8 + $0x168] sm:$0xff]
    %v619 = vld [vmem:[#allocation8 + $0x170] sm:$0xff]
    %v620 = vld [vmem:[#allocation8 + $0x178] sm:$0xff]
    %v621 = vld [vmem:[#allocation9] sm:$0xff]
    %v622 = vld [vmem:[#allocation9 + $0x8] sm:$0xff]
    %v623 = vld [vmem:[#allocation9 + $0x10] sm:$0xff]
    %v624 = vld [vmem:[#allocation9 + $0x18] sm:$0xff]
    %v625 = vld [vmem:[#allocation9 + $0x20] sm:$0xff]
    %v626 = vld [vmem:[#allocation9 + $0x28] sm:$0xff]
    %v627 = vld [vmem:[#allocation9 + $0x30] sm:$0xff]
    %v628 = vld [vmem:[#allocation9 + $0x38] sm:$0xff]
    %v629 = vld [vmem:[#allocation9 + $0x40] sm:$0xff]
    %v630 = vld [vmem:[#allocation9 + $0x48] sm:$0xff]
    %v631 = vld [vmem:[#allocation9 + $0x50] sm:$0xff]
    %v632 = vld [vmem:[#allocation9 + $0x58] sm:$0xff]
    %v633 = vld [vmem:[#allocation9 + $0x60] sm:$0xff]
    %v634 = vld [vmem:[#allocation9 + $0x68] sm:$0xff]
    %v635 = vld [vmem:[#allocation9 + $0x70] sm:$0xff]
    %v636 = vld [vmem:[#allocation9 + $0x78] sm:$0xff]
    %v637 = vld [vmem:[#allocation9 + $0x80] sm:$0xff]
    %v638 = vld [vmem:[#allocation9 + $0x88] sm:$0xff]
    %v639 = vld [vmem:[#allocation9 + $0x90] sm:$0xff]
    %v640 = vld [vmem:[#allocation9 + $0x98] sm:$0xff]
    %v641 = vld [vmem:[#allocation9 + $0xa0] sm:$0xff]
    %v642 = vld [vmem:[#allocation9 + $0xa8] sm:$0xff]
    %v643 = vld [vmem:[#allocation9 + $0xb0] sm:$0xff]
    %v644 = vld [vmem:[#allocation9 + $0xb8] sm:$0xff]
    %v645 = vld [vmem:[#allocation9 + $0xc0] sm:$0xff]
    %v646 = vld [vmem:[#allocation9 + $0xc8] sm:$0xff]
    %v647 = vld [vmem:[#allocation9 + $0xd0] sm:$0xff]
    %v648 = vld [vmem:[#allocation9 + $0xd8] sm:$0xff]
    %v649 = vld [vmem:[#allocation9 + $0xe0] sm:$0xff]
    %v650 = vld [vmem:[#allocation9 + $0xe8] sm:$0xff]
    %v651 = vld [vmem:[#allocation9 + $0xf0] sm:$0xff]
    %v652 = vld [vmem:[#allocation9 + $0xf8] sm:$0xff]
    %v653 = vld [vmem:[#allocation9 + $0x100] sm:$0xff]
    %v654 = vld [vmem:[#allocation9 + $0x108] sm:$0xff]
    %v655 = vld [vmem:[#allocation9 + $0x110] sm:$0xff]
    %v656 = vld [vmem:[#allocation9 + $0x118] sm:$0xff]
    %v657 = vld [vmem:[#allocation9 + $0x120] sm:$0xff]
    %v658 = vld [vmem:[#allocation9 + $0x128] sm:$0xff]
    %v659 = vld [vmem:[#allocation9 + $0x130] sm:$0xff]
    %v660 = vld [vmem:[#allocation9 + $0x138] sm:$0xff]
    %v661 = vld [vmem:[#allocation9 + $0x140] sm:$0xff]
    %v662 = vld [vmem:[#allocation9 + $0x148] sm:$0xff]
    %v663 = vld [vmem:[#allocation9 + $0x150] sm:$0xff]
    %v664 = vld [vmem:[#allocation9 + $0x158] sm:$0xff]
    %v665 = vld [vmem:[#allocation9 + $0x160] sm:$0xff]
    %v666 = vld [vmem:[#allocation9 + $0x168] sm:$0xff]
    %v667 = vld [vmem:[#allocation9 + $0x170] sm:$0xff]
    %v668 = vld [vmem:[#allocation9 + $0x178] sm:$0xff]
    %v669 = vld [vmem:[%s4] sm:$0x1]
    %v671 = vlaneseq
    %v672 = vshrl.u32 %v671, 7
    %v673 = vsub.s32 0, %v672
    %v674 = vrot.slane %v669, %v673
    %v676 = vld [vmem:[%s5] sm:$0x1]
    %v678 = vlaneseq
    %v679 = vshrl.u32 %v678, 7
    %v680 = vsub.s32 0, %v679
    %v681 = vrot.slane %v676, %v680
    %s683 = smul.u32 0, 6
    %s684 = smul.addr %s683, 8
    %s685 = scalar_lea.vmem [#allocation2], %s684
    %v686 = vld [vmem:[%s685] sm:$0xff]
    %v687 = vld [vmem:[%s685 + $0x8] sm:$0xff]
    %v688 = vld [vmem:[%s685 + $0x10] sm:$0xff]
    %689 = vmatprep.subr.mxu0 %v574
    %690 = vmatpush1.msra.mxu0 %v573
    %691 = vmatprep.subr.mxu0 %v577
    %692 = vmatpush1.msra.mxu0 %v576
    %693 = vmatprep.subr.mxu0 %v580
    %694 = vmatpush1.msra.mxu0 %v579
    %695 = vmatprep.subr.mxu0 %v583
    %696 = vmatpush1.msra.mxu0 %v582
    %697 = vmatprep.subr.mxu0 %v586
    %698 = vmatpush1.msra.mxu0 %v585
    %699 = vmatprep.subr.mxu0 %v589
    %700 = vmatpush1.msra.mxu0 %v588
    %701 = vmatprep.subr.mxu0 %v592
    %702 = vmatpush1.msra.mxu0 %v591
    %703 = vmatprep.subr.mxu0 %v595
    %704 = vmatpush1.msra.mxu0 %v594
    %705 = vmatprep.subr.mxu0 %v598
    %706 = vmatpush1.msra.mxu0 %v597
    %707 = vmatprep.subr.mxu0 %v601
    %708 = vmatpush1.msra.mxu0 %v600
    %709 = vmatprep.subr.mxu0 %v604
    %710 = vmatpush1.msra.mxu0 %v603
    %711 = vmatprep.subr.mxu0 %v607
    %712 = vmatpush1.msra.mxu0 %v606
    %713 = vmatprep.subr.mxu0 %v610
    %714 = vmatpush1.msra.mxu0 %v609
    %715 = vmatprep.subr.mxu0 %v613
    %716 = vmatpush1.msra.mxu0 %v612
    %717 = vmatprep.subr.mxu0 %v616
    %718 = vmatpush1.msra.mxu0 %v615
    %719 = vmatprep.subr.mxu0 %v619
    %720 = vmatpush1.msra.mxu0 %v618
    %721 = vmatprep.subr.mxu0 0.0
    %722 = vmatpush1.msra.mxu0 0.0
    %723 = vmatprep.subr.mxu0 0.0
    %724 = vmatpush1.msra.mxu0 0.0
    %725 = vmatprep.subr.mxu0 0.0
    %726 = vmatpush1.msra.mxu0 0.0
    %727 = vmatprep.subr.mxu0 0.0
    %728 = vmatpush1.msra.mxu0 0.0
    %729 = vmatprep.subr.mxu0 0.0
    %730 = vmatpush1.msra.mxu0 0.0
    %731 = vmatprep.subr.mxu0 0.0
    %732 = vmatpush1.msra.mxu0 0.0
    %733 = vmatprep.subr.mxu0 0.0
    %734 = vmatpush1.msra.mxu0 0.0
    %735 = vmatprep.subr.mxu0 0.0
    %736 = vmatpush1.msra.mxu0 0.0
    %737 = vmatprep.subr.mxu0 0.0
    %738 = vmatpush1.msra.mxu0 0.0
    %739 = vmatprep.subr.mxu0 0.0
    %740 = vmatpush1.msra.mxu0 0.0
    %741 = vmatprep.subr.mxu0 0.0
    %742 = vmatpush1.msra.mxu0 0.0
    %743 = vmatprep.subr.mxu0 0.0
    %744 = vmatpush1.msra.mxu0 0.0
    %745 = vmatprep.subr.mxu0 0.0
    %746 = vmatpush1.msra.mxu0 0.0
    %747 = vmatprep.subr.mxu0 0.0
    %748 = vmatpush1.msra.mxu0 0.0
    %749 = vmatprep.subr.mxu0 0.0
    %750 = vmatpush1.msra.mxu0 0.0
    %751 = vmatprep.subr.mxu0 0.0
    %752 = vmatpush1.msra.mxu0 0.0
    %753 = vmatprep.mubr.f32.mxu0 0.0
    %754 = vmatmul.mubr.f32.gmra.mrb[0].mxu0 0.0
    %v755 = vpop.f32.mrb[0].mxu0
    %v756 = vadd.f32 0.0, %v755
    %v757 = vpop.f32.mrb[0].mxu0
    %v758 = vadd.f32 0.0, %v757
    %759 = vdwg.mxu0
    %760 = vmatprep.subr.mxu0 0.0
    %761 = vmatpush1.msra.mxu0 %v575
    %762 = vmatprep.subr.mxu0 0.0
    %763 = vmatpush1.msra.mxu0 %v578
    %764 = vmatprep.subr.mxu0 0.0
    %765 = vmatpush1.msra.mxu0 %v581
    %766 = vmatprep.subr.mxu0 0.0
    %767 = vmatpush1.msra.mxu0 %v584
    %768 = vmatprep.subr.mxu0 0.0
    %769 = vmatpush1.msra.mxu0 %v587
    %770 = vmatprep.subr.mxu0 0.0
    %771 = vmatpush1.msra.mxu0 %v590
    %772 = vmatprep.subr.mxu0 0.0
    %773 = vmatpush1.msra.mxu0 %v593
    %774 = vmatprep.subr.mxu0 0.0
    %775 = vmatpush1.msra.mxu0 %v596
    %776 = vmatprep.subr.mxu0 0.0
    %777 = vmatpush1.msra.mxu0 %v599
    %778 = vmatprep.subr.mxu0 0.0
    %779 = vmatpush1.msra.mxu0 %v602
    %780 = vmatprep.subr.mxu0 0.0
    %781 = vmatpush1.msra.mxu0 %v605
    %782 = vmatprep.subr.mxu0 0.0
    %783 = vmatpush1.msra.mxu0 %v608
    %784 = vmatprep.subr.mxu0 0.0
    %785 = vmatpush1.msra.mxu0 %v611
    %786 = vmatprep.subr.mxu0 0.0
    %787 = vmatpush1.msra.mxu0 %v614
    %788 = vmatprep.subr.mxu0 0.0
    %789 = vmatpush1.msra.mxu0 %v617
    %790 = vmatprep.subr.mxu0 0.0
    %791 = vmatpush1.msra.mxu0 %v620
    %792 = vmatprep.subr.mxu0 0.0
    %793 = vmatpush1.msra.mxu0 0.0
    %794 = vmatprep.subr.mxu0 0.0
    %795 = vmatpush1.msra.mxu0 0.0
    %796 = vmatprep.subr.mxu0 0.0
    %797 = vmatpush1.msra.mxu0 0.0
    %798 = vmatprep.subr.mxu0 0.0
    %799 = vmatpush1.msra.mxu0 0.0
    %800 = vmatprep.subr.mxu0 0.0
    %801 = vmatpush1.msra.mxu0 0.0
    %802 = vmatprep.subr.mxu0 0.0
    %803 = vmatpush1.msra.mxu0 0.0
    %804 = vmatprep.subr.mxu0 0.0
    %805 = vmatpush1.msra.mxu0 0.0
    %806 = vmatprep.subr.mxu0 0.0
    %807 = vmatpush1.msra.mxu0 0.0
    %808 = vmatprep.subr.mxu0 0.0
    %809 = vmatpush1.msra.mxu0 0.0
    %810 = vmatprep.subr.mxu0 0.0
    %811 = vmatpush1.msra.mxu0 0.0
    %812 = vmatprep.subr.mxu0 0.0
    %813 = vmatpush1.msra.mxu0 0.0
    %814 = vmatprep.subr.mxu0 0.0
    %815 = vmatpush1.msra.mxu0 0.0
    %816 = vmatprep.subr.mxu0 0.0
    %817 = vmatpush1.msra.mxu0 0.0
    %818 = vmatprep.subr.mxu0 0.0
    %819 = vmatpush1.msra.mxu0 0.0
    %820 = vmatprep.subr.mxu0 0.0
    %821 = vmatpush1.msra.mxu0 0.0
    %822 = vmatprep.subr.mxu0 0.0
    %823 = vmatpush1.msra.mxu0 0.0
    %824 = vmatprep.mubr.f32.mxu0 0.0
    %825 = vmatmul.mubr.f32.gmra.mrb[0].mxu0 0.0
    %v826 = vpop.f32.mrb[0].mxu0
    %v827 = vadd.f32 0.0, %v826
    %v828 = vpop.f32.mrb[0].mxu0
    %829 = vdwg.mxu0
    %v830 = vadd.f32 %v686, %v756
    %v831 = vmul.f32 %v830, 0.5
    %v832 = vtanh.pop %v831
    %v833 = vadd.f32 %v832, 1.0
    %v834 = vmul.f32 %v833, 0.5
    %v835 = vadd.f32 %v687, %v758
    %v836 = vmul.f32 %v835, 0.5
    %v837 = vtanh.pop %v836
    %v838 = vadd.f32 %v837, 1.0
    %v839 = vmul.f32 %v838, 0.5
    %v840 = vadd.f32 %v827, %v674
    %v841 = vmul.f32 %v834, %v840
    %v842 = vadd.f32 %v688, %v841
    %v843 = vtanh.pop %v842
    %v844 = vsub.f32 1.0, %v839
    %v845 = vmul.f32 %v844, %v843
    %v846 = vmul.f32 %v839, 0.0
    %v847 = vadd.f32 %v845, %v846
    %s848 = smul.u32 7, 6
    %s849 = smul.addr %s848, 8
    %s850 = scalar_lea.vmem [#allocation2], %s849
    %v851 = vld [vmem:[%s850 + $0x18] sm:$0xff]
    %v852 = vld [vmem:[%s850 + $0x20] sm:$0xff]
    %v853 = vld [vmem:[%s850 + $0x28] sm:$0xff]
    %854 = vmatprep.subr.mxu0 %v622
    %855 = vmatpush1.msra.mxu0 %v621
    %856 = vmatprep.subr.mxu0 %v625
    %857 = vmatpush1.msra.mxu0 %v624
    %858 = vmatprep.subr.mxu0 %v628
    %859 = vmatpush1.msra.mxu0 %v627
    %860 = vmatprep.subr.mxu0 %v631
    %861 = vmatpush1.msra.mxu0 %v630
    %862 = vmatprep.subr.mxu0 %v634
    %863 = vmatpush1.msra.mxu0 %v633
    %864 = vmatprep.subr.mxu0 %v637
    %865 = vmatpush1.msra.mxu0 %v636
    %866 = vmatprep.subr.mxu0 %v640
    %867 = vmatpush1.msra.mxu0 %v639
    %868 = vmatprep.subr.mxu0 %v643
    %869 = vmatpush1.msra.mxu0 %v642
    %870 = vmatprep.subr.mxu0 %v646
    %871 = vmatpush1.msra.mxu0 %v645
    %872 = vmatprep.subr.mxu0 %v649
    %873 = vmatpush1.msra.mxu0 %v648
    %874 = vmatprep.subr.mxu0 %v652
    %875 = vmatpush1.msra.mxu0 %v651
    %876 = vmatprep.subr.mxu0 %v655
    %877 = vmatpush1.msra.mxu0 %v654
    %878 = vmatprep.subr.mxu0 %v658
    %879 = vmatpush1.msra.mxu0 %v657
    %880 = vmatprep.subr.mxu0 %v661
    %881 = vmatpush1.msra.mxu0 %v660
    %882 = vmatprep.subr.mxu0 %v664
    %883 = vmatpush1.msra.mxu0 %v663
    %884 = vmatprep.subr.mxu0 %v667
    %885 = vmatpush1.msra.mxu0 %v666
    %886 = vmatprep.subr.mxu0 0.0
    %887 = vmatpush1.msra.mxu0 0.0
    %888 = vmatprep.subr.mxu0 0.0
    %889 = vmatpush1.msra.mxu0 0.0
    %890 = vmatprep.subr.mxu0 0.0
    %891 = vmatpush1.msra.mxu0 0.0
    %892 = vmatprep.subr.mxu0 0.0
    %893 = vmatpush1.msra.mxu0 0.0
    %894 = vmatprep.subr.mxu0 0.0
    %895 = vmatpush1.msra.mxu0 0.0
    %896 = vmatprep.subr.mxu0 0.0
    %897 = vmatpush1.msra.mxu0 0.0
    %898 = vmatprep.subr.mxu0 0.0
    %899 = vmatpush1.msra.mxu0 0.0
    %900 = vmatprep.subr.mxu0 0.0
    %901 = vmatpush1.msra.mxu0 0.0
    %902 = vmatprep.subr.mxu0 0.0
    %903 = vmatpush1.msra.mxu0 0.0
    %904 = vmatprep.subr.mxu0 0.0
    %905 = vmatpush1.msra.mxu0 0.0
    %906 = vmatprep.subr.mxu0 0.0
    %907 = vmatpush1.msra.mxu0 0.0
    %908 = vmatprep.subr.mxu0 0.0
    %909 = vmatpush1.msra.mxu0 0.0
    %910 = vmatprep.subr.mxu0 0.0
    %911 = vmatpush1.msra.mxu0 0.0
    %912 = vmatprep.subr.mxu0 0.0
    %913 = vmatpush1.msra.mxu0 0.0
    %914 = vmatprep.subr.mxu0 0.0
    %915 = vmatpush1.msra.mxu0 0.0
    %916 = vmatprep.subr.mxu0 0.0
    %917 = vmatpush1.msra.mxu0 0.0
    %918 = vmatprep.mubr.f32.mxu0 0.0
    %919 = vmatmul.mubr.f32.gmra.mrb[0].mxu0 0.0
    %v920 = vpop.f32.mrb[0].mxu0
    %v921 = vadd.f32 0.0, %v920
    %v922 = vpop.f32.mrb[0].mxu0
    %v923 = vadd.f32 0.0, %v922
    %924 = vdwg.mxu0
    %925 = vmatprep.subr.mxu0 0.0
    %926 = vmatpush1.msra.mxu0 %v623
    %927 = vmatprep.subr.mxu0 0.0
    %928 = vmatpush1.msra.mxu0 %v626
    %929 = vmatprep.subr.mxu0 0.0
    %930 = vmatpush1.msra.mxu0 %v629
    %931 = vmatprep.subr.mxu0 0.0
    %932 = vmatpush1.msra.mxu0 %v632
    %933 = vmatprep.subr.mxu0 0.0
    %934 = vmatpush1.msra.mxu0 %v635
    %935 = vmatprep.subr.mxu0 0.0
    %936 = vmatpush1.msra.mxu0 %v638
    %937 = vmatprep.subr.mxu0 0.0
    %938 = vmatpush1.msra.mxu0 %v641
    %939 = vmatprep.subr.mxu0 0.0
    %940 = vmatpush1.msra.mxu0 %v644
    %941 = vmatprep.subr.mxu0 0.0
    %942 = vmatpush1.msra.mxu0 %v647
    %943 = vmatprep.subr.mxu0 0.0
    %944 = vmatpush1.msra.mxu0 %v650
    %945 = vmatprep.subr.mxu0 0.0
    %946 = vmatpush1.msra.mxu0 %v653
    %947 = vmatprep.subr.mxu0 0.0
    %948 = vmatpush1.msra.mxu0 %v656
    %949 = vmatprep.subr.mxu0 0.0
    %950 = vmatpush1.msra.mxu0 %v659
    %951 = vmatprep.subr.mxu0 0.0
    %952 = vmatpush1.msra.mxu0 %v662
    %953 = vmatprep.subr.mxu0 0.0
    %954 = vmatpush1.msra.mxu0 %v665
    %955 = vmatprep.subr.mxu0 0.0
    %956 = vmatpush1.msra.mxu0 %v668
    %957 = vmatprep.subr.mxu0 0.0
    %958 = vmatpush1.msra.mxu0 0.0
    %959 = vmatprep.subr.mxu0 0.0
    %960 = vmatpush1.msra.mxu0 0.0
    %961 = vmatprep.subr.mxu0 0.0
    %962 = vmatpush1.msra.mxu0 0.0
    %963 = vmatprep.subr.mxu0 0.0
    %964 = vmatpush1.msra.mxu0 0.0
    %965 = vmatprep.subr.mxu0 0.0
    %966 = vmatpush1.msra.mxu0 0.0
    %967 = vmatprep.subr.mxu0 0.0
    %968 = vmatpush1.msra.mxu0 0.0
    %969 = vmatprep.subr.mxu0 0.0
    %970 = vmatpush1.msra.mxu0 0.0
    %971 = vmatprep.subr.mxu0 0.0
    %972 = vmatpush1.msra.mxu0 0.0
    %973 = vmatprep.subr.mxu0 0.0
    %974 = vmatpush1.msra.mxu0 0.0
    %975 = vmatprep.subr.mxu0 0.0
    %976 = vmatpush1.msra.mxu0 0.0
    %977 = vmatprep.subr.mxu0 0.0
    %978 = vmatpush1.msra.mxu0 0.0
    %979 = vmatprep.subr.mxu0 0.0
    %980 = vmatpush1.msra.mxu0 0.0
    %981 = vmatprep.subr.mxu0 0.0
    %982 = vmatpush1.msra.mxu0 0.0
    %983 = vmatprep.subr.mxu0 0.0
    %984 = vmatpush1.msra.mxu0 0.0
    %985 = vmatprep.subr.mxu0 0.0
    %986 = vmatpush1.msra.mxu0 0.0
    %987 = vmatprep.subr.mxu0 0.0
    %988 = vmatpush1.msra.mxu0 0.0
    %989 = vmatprep.mubr.f32.mxu0 0.0
    %990 = vmatmul.mubr.f32.gmra.mrb[0].mxu0 0.0
    %v991 = vpop.f32.mrb[0].mxu0
    %v992 = vadd.f32 0.0, %v991
    %v993 = vpop.f32.mrb[0].mxu0
    %994 = vdwg.mxu0
    %v995 = vadd.f32 %v851, %v921
    %v996 = vmul.f32 %v995, 0.5
    %v997 = vtanh.pop %v996
    %v998 = vadd.f32 %v997, 1.0
    %v999 = vmul.f32 %v998, 0.5
    %v1000 = vadd.f32 %v852, %v923
    %v1001 = vmul.f32 %v1000, 0.5
    %v1002 = vtanh.pop %v1001
    %v1003 = vadd.f32 %v1002, 1.0
    %v1004 = vmul.f32 %v1003, 0.5
    %v1005 = vadd.f32 %v992, %v681
    %v1006 = vmul.f32 %v999, %v1005
    %v1007 = vadd.f32 %v853, %v1006
    %v1008 = vtanh.pop %v1007
    %v1009 = vsub.f32 1.0, %v1004
    %v1010 = vmul.f32 %v1009, %v1008
    %v1011 = vmul.f32 %v1004, 0.0
    %v1012 = vadd.f32 %v1010, %v1011
    %1013 = vst [vmem:[#allocation11] sm:$0xff] %v847
    %s1014 = scalar_lea.vmem [#allocation11], 56
    %1015 = vst [vmem:[%s1014] sm:$0xff] %v1012
    %s1016 = smul.u32 1, 6
    %s1017 = smul.addr %s1016, 8
    %s1018 = scalar_lea.vmem [#allocation2], %s1017
    %v1019 = vld [vmem:[%s1018] sm:$0xff]
    %v1020 = vld [vmem:[%s1018 + $0x8] sm:$0xff]
    %v1021 = vld [vmem:[%s1018 + $0x10] sm:$0xff]
    %1022 = vmatprep.subr.mxu0 %v574
    %1023 = vmatpush1.msra.mxu0 %v573
    %1024 = vmatprep.subr.mxu0 %v577
    %1025 = vmatpush1.msra.mxu0 %v576
    %1026 = vmatprep.subr.mxu0 %v580
    %1027 = vmatpush1.msra.mxu0 %v579
    %1028 = vmatprep.subr.mxu0 %v583
    %1029 = vmatpush1.msra.mxu0 %v582
    %1030 = vmatprep.subr.mxu0 %v586
    %1031 = vmatpush1.msra.mxu0 %v585
    %1032 = vmatprep.subr.mxu0 %v589
    %1033 = vmatpush1.msra.mxu0 %v588
    %1034 = vmatprep.subr.mxu0 %v592
    %1035 = vmatpush1.msra.mxu0 %v591
    %1036 = vmatprep.subr.mxu0 %v595
    %1037 = vmatpush1.msra.mxu0 %v594
    %1038 = vmatprep.subr.mxu0 %v598
    %1039 = vmatpush1.msra.mxu0 %v597
    %1040 = vmatprep.subr.mxu0 %v601
    %1041 = vmatpush1.msra.mxu0 %v600
    %1042 = vmatprep.subr.mxu0 %v604
    %1043 = vmatpush1.msra.mxu0 %v603
    %1044 = vmatprep.subr.mxu0 %v607
    %1045 = vmatpush1.msra.mxu0 %v606
    %1046 = vmatprep.subr.mxu0 %v610
    %1047 = vmatpush1.msra.mxu0 %v609
    %1048 = vmatprep.subr.mxu0 %v613
    %1049 = vmatpush1.msra.mxu0 %v612
    %1050 = vmatprep.subr.mxu0 %v616
    %1051 = vmatpush1.msra.mxu0 %v615
    %1052 = vmatprep.subr.mxu0 %v619
    %1053 = vmatpush1.msra.mxu0 %v618
    %1054 = vmatprep.subr.mxu0 0.0
    %1055 = vmatpush1.msra.mxu0 0.0
    %1056 = vmatprep.subr.mxu0 0.0
    %1057 = vmatpush1.msra.mxu0 0.0
    %1058 = vmatprep.subr.mxu0 0.0
    %1059 = vmatpush1.msra.mxu0 0.0
    %1060 = vmatprep.subr.mxu0 0.0
    %1061 = vmatpush1.msra.mxu0 0.0
    %1062 = vmatprep.subr.mxu0 0.0
    %1063 = vmatpush1.msra.mxu0 0.0
    %1064 = vmatprep.subr.mxu0 0.0
    %1065 = vmatpush1.msra.mxu0 0.0
    %1066 = vmatprep.subr.mxu0 0.0
    %1067 = vmatpush1.msra.mxu0 0.0
    %1068 = vmatprep.subr.mxu0 0.0
    %1069 = vmatpush1.msra.mxu0 0.0
    %1070 = vmatprep.subr.mxu0 0.0
    %1071 = vmatpush1.msra.mxu0 0.0
    %1072 = vmatprep.subr.mxu0 0.0
    %1073 = vmatpush1.msra.mxu0 0.0
    %1074 = vmatprep.subr.mxu0 0.0
    %1075 = vmatpush1.msra.mxu0 0.0
    %1076 = vmatprep.subr.mxu0 0.0
    %1077 = vmatpush1.msra.mxu0 0.0
    %1078 = vmatprep.subr.mxu0 0.0
    %1079 = vmatpush1.msra.mxu0 0.0
    %1080 = vmatprep.subr.mxu0 0.0
    %1081 = vmatpush1.msra.mxu0 0.0
    %1082 = vmatprep.subr.mxu0 0.0
    %1083 = vmatpush1.msra.mxu0 0.0
    %1084 = vmatprep.subr.mxu0 0.0
    %1085 = vmatpush1.msra.mxu0 0.0
    %1086 = vmatprep.mubr.f32.mxu0 0.0
    %1087 = vmatmul.mubr.f32.gmra.mrb[0].mxu0 %v847
    %v1088 = vpop.f32.mrb[0].mxu0
    %v1089 = vadd.f32 0.0, %v1088
    %v1090 = vpop.f32.mrb[0].mxu0
    %v1091 = vadd.f32 0.0, %v1090
    %1092 = vdwg.mxu0
    %1093 = vmatprep.subr.mxu0 0.0
    %1094 = vmatpush1.msra.mxu0 %v575
    %1095 = vmatprep.subr.mxu0 0.0
    %1096 = vmatpush1.msra.mxu0 %v578
    %1097 = vmatprep.subr.mxu0 0.0
    %1098 = vmatpush1.msra.mxu0 %v581
    %1099 = vmatprep.subr.mxu0 0.0
    %1100 = vmatpush1.msra.mxu0 %v584
    %1101 = vmatprep.subr.mxu0 0.0
    %1102 = vmatpush1.msra.mxu0 %v587
    %1103 = vmatprep.subr.mxu0 0.0
    %1104 = vmatpush1.msra.mxu0 %v590
    %1105 = vmatprep.subr.mxu0 0.0
    %1106 = vmatpush1.msra.mxu0 %v593
    %1107 = vmatprep.subr.mxu0 0.0
    %1108 = vmatpush1.msra.mxu0 %v596
    %1109 = vmatprep.subr.mxu0 0.0
    %1110 = vmatpush1.msra.mxu0 %v599
    %1111 = vmatprep.subr.mxu0 0.0
    %1112 = vmatpush1.msra.mxu0 %v602
    %1113 = vmatprep.subr.mxu0 0.0
    %1114 = vmatpush1.msra.mxu0 %v605
    %1115 = vmatprep.subr.mxu0 0.0
    %1116 = vmatpush1.msra.mxu0 %v608
    %1117 = vmatprep.subr.mxu0 0.0
    %1118 = vmatpush1.msra.mxu0 %v611
    %1119 = vmatprep.subr.mxu0 0.0
    %1120 = vmatpush1.msra.mxu0 %v614
    %1121 = vmatprep.subr.mxu0 0.0
    %1122 = vmatpush1.msra.mxu0 %v617
    %1123 = vmatprep.subr.mxu0 0.0
    %1124 = vmatpush1.msra.mxu0 %v620
    %1125 = vmatprep.subr.mxu0 0.0
    %1126 = vmatpush1.msra.mxu0 0.0
    %1127 = vmatprep.subr.mxu0 0.0
    %1128 = vmatpush1.msra.mxu0 0.0
    %1129 = vmatprep.subr.mxu0 0.0
    %1130 = vmatpush1.msra.mxu0 0.0
    %1131 = vmatprep.subr.mxu0 0.0
    %1132 = vmatpush1.msra.mxu0 0.0
    %1133 = vmatprep.subr.mxu0 0.0
    %1134 = vmatpush1.msra.mxu0 0.0
    %1135 = vmatprep.subr.mxu0 0.0
    %1136 = vmatpush1.msra.mxu0 0.0
    %1137 = vmatprep.subr.mxu0 0.0
    %1138 = vmatpush1.msra.mxu0 0.0
    %1139 = vmatprep.subr.mxu0 0.0
    %1140 = vmatpush1.msra.mxu0 0.0
    %1141 = vmatprep.subr.mxu0 0.0
    %1142 = vmatpush1.msra.mxu0 0.0
    %1143 = vmatprep.subr.mxu0 0.0
    %1144 = vmatpush1.msra.mxu0 0.0
    %1145 = vmatprep.subr.mxu0 0.0
    %1146 = vmatpush1.msra.mxu0 0.0
    %1147 = vmatprep.subr.mxu0 0.0
    %1148 = vmatpush1.msra.mxu0 0.0
    %1149 = vmatprep.subr.mxu0 0.0
    %1150 = vmatpush1.msra.mxu0 0.0
    %1151 = vmatprep.subr.mxu0 0.0
    %1152 = vmatpush1.msra.mxu0 0.0
    %1153 = vmatprep.subr.mxu0 0.0
    %1154 = vmatpush1.msra.mxu0 0.0
    %1155 = vmatprep.subr.mxu0 0.0
    %1156 = vmatpush1.msra.mxu0 0.0
    %1157 = vmatprep.mubr.f32.mxu0 0.0
    %1158 = vmatmul.mubr.f32.gmra.mrb[0].mxu0 %v847
    %v1159 = vpop.f32.mrb[0].mxu0
    %v1160 = vadd.f32 0.0, %v1159
    %v1161 = vpop.f32.mrb[0].mxu0
    %1162 = vdwg.mxu0
    %v1163 = vadd.f32 %v1019, %v1089
    %v1164 = vmul.f32 %v1163, 0.5
    %v1165 = vtanh.pop %v1164
    %v1166 = vadd.f32 %v1165, 1.0
    %v1167 = vmul.f32 %v1166, 0.5
    %v1168 = vadd.f32 %v1020, %v1091
    %v1169 = vmul.f32 %v1168, 0.5
    %v1170 = vtanh.pop %v1169
    %v1171 = vadd.f32 %v1170, 1.0
    %v1172 = vmul.f32 %v1171, 0.5
    %v1173 = vadd.f32 %v1160, %v674
    %v1174 = vmul.f32 %v1167, %v1173
    %v1175 = vadd.f32 %v1021, %v1174
    %v1176 = vtanh.pop %v1175
    %v1177 = vsub.f32 1.0, %v1172
    %v1178 = vmul.f32 %v1177, %v1176
    %v1179 = vmul.f32 %v1172, %v847
    %v1180 = vadd.f32 %v1178, %v1179
    %s1181 = smul.u32 6, 6
    %s1182 = smul.addr %s1181, 8
    %s1183 = scalar_lea.vmem [#allocation2], %s1182
    %v1184 = vld [vmem:[%s1183 + $0x18] sm:$0xff]
    %v1185 = vld [vmem:[%s1183 + $0x20] sm:$0xff]
    %v1186 = vld [vmem:[%s1183 + $0x28] sm:$0xff]
    %1187 = vmatprep.subr.mxu0 %v622
    %1188 = vmatpush1.msra.mxu0 %v621
    %1189 = vmatprep.subr.mxu0 %v625
    %1190 = vmatpush1.msra.mxu0 %v624
    %1191 = vmatprep.subr.mxu0 %v628
    %1192 = vmatpush1.msra.mxu0 %v627
    %1193 = vmatprep.subr.mxu0 %v631
    %1194 = vmatpush1.msra.mxu0 %v630
    %1195 = vmatprep.subr.mxu0 %v634
    %1196 = vmatpush1.msra.mxu0 %v633
    %1197 = vmatprep.subr.mxu0 %v637
    %1198 = vmatpush1.msra.mxu0 %v636
    %1199 = vmatprep.subr.mxu0 %v640
    %1200 = vmatpush1.msra.mxu0 %v639
    %1201 = vmatprep.subr.mxu0 %v643
    %1202 = vmatpush1.msra.mxu0 %v642
    %1203 = vmatprep.subr.mxu0 %v646
    %1204 = vmatpush1.msra.mxu0 %v645
    %1205 = vmatprep.subr.mxu0 %v649
    %1206 = vmatpush1.msra.mxu0 %v648
    %1207 = vmatprep.subr.mxu0 %v652
    %1208 = vmatpush1.msra.mxu0 %v651
    %1209 = vmatprep.subr.mxu0 %v655
    %1210 = vmatpush1.msra.mxu0 %v654
    %1211 = vmatprep.subr.mxu0 %v658
    %1212 = vmatpush1.msra.mxu0 %v657
    %1213 = vmatprep.subr.mxu0 %v661
    %1214 = vmatpush1.msra.mxu0 %v660
    %1215 = vmatprep.subr.mxu0 %v664
    %1216 = vmatpush1.msra.mxu0 %v663
    %1217 = vmatprep.subr.mxu0 %v667
    %1218 = vmatpush1.msra.mxu0 %v666
    %1219 = vmatprep.subr.mxu0 0.0
    %1220 = vmatpush1.msra.mxu0 0.0
    %1221 = vmatprep.subr.mxu0 0.0
    %1222 = vmatpush1.msra.mxu0 0.0
    %1223 = vmatprep.subr.mxu0 0.0
    %1224 = vmatpush1.msra.mxu0 0.0
    %1225 = vmatprep.subr.mxu0 0.0
    %1226 = vmatpush1.msra.mxu0 0.0
    %1227 = vmatprep.subr.mxu0 0.0
    %1228 = vmatpush1.msra.mxu0 0.0
    %1229 = vmatprep.subr.mxu0 0.0
    %1230 = vmatpush1.msra.mxu0 0.0
    %1231 = vmatprep.subr.mxu0 0.0
    %1232 = vmatpush1.msra.mxu0 0.0
    %1233 = vmatprep.subr.mxu0 0.0
    %1234 = vmatpush1.msra.mxu0 0.0
    %1235 = vmatprep.subr.mxu0 0.0
    %1236 = vmatpush1.msra.mxu0 0.0
    %1237 = vmatprep.subr.mxu0 0.0
    %1238 = vmatpush1.msra.mxu0 0.0
    %1239 = vmatprep.subr.mxu0 0.0
    %1240 = vmatpush1.msra.mxu0 0.0
    %1241 = vmatprep.subr.mxu0 0.0
    %1242 = vmatpush1.msra.mxu0 0.0
    %1243 = vmatprep.subr.mxu0 0.0
    %1244 = vmatpush1.msra.mxu0 0.0
    %1245 = vmatprep.subr.mxu0 0.0
    %1246 = vmatpush1.msra.mxu0 0.0
    %1247 = vmatprep.subr.mxu0 0.0
    %1248 = vmatpush1.msra.mxu0 0.0
    %1249 = vmatprep.subr.mxu0 0.0
    %1250 = vmatpush1.msra.mxu0 0.0
    %1251 = vmatprep.mubr.f32.mxu0 0.0
    %1252 = vmatmul.mubr.f32.gmra.mrb[0].mxu0 %v1012
    %v1253 = vpop.f32.mrb[0].mxu0
    %v1254 = vadd.f32 0.0, %v1253
    %v1255 = vpop.f32.mrb[0].mxu0
    %v1256 = vadd.f32 0.0, %v1255
    %1257 = vdwg.mxu0
    %1258 = vmatprep.subr.mxu0 0.0
    %1259 = vmatpush1.msra.mxu0 %v623
    %1260 = vmatprep.subr.mxu0 0.0
    %1261 = vmatpush1.msra.mxu0 %v626
    %1262 = vmatprep.subr.mxu0 0.0
    %1263 = vmatpush1.msra.mxu0 %v629
    %1264 = vmatprep.subr.mxu0 0.0
    %1265 = vmatpush1.msra.mxu0 %v632
    %1266 = vmatprep.subr.mxu0 0.0
    %1267 = vmatpush1.msra.mxu0 %v635
    %1268 = vmatprep.subr.mxu0 0.0
    %1269 = vmatpush1.msra.mxu0 %v638
    %1270 = vmatprep.subr.mxu0 0.0
    %1271 = vmatpush1.msra.mxu0 %v641
    %1272 = vmatprep.subr.mxu0 0.0
    %1273 = vmatpush1.msra.mxu0 %v644
    %1274 = vmatprep.subr.mxu0 0.0
    %1275 = vmatpush1.msra.mxu0 %v647
    %1276 = vmatprep.subr.mxu0 0.0
    %1277 = vmatpush1.msra.mxu0 %v650
    %1278 = vmatprep.subr.mxu0 0.0
    %1279 = vmatpush1.msra.mxu0 %v653
    %1280 = vmatprep.subr.mxu0 0.0
    %1281 = vmatpush1.msra.mxu0 %v656
    %1282 = vmatprep.subr.mxu0 0.0
    %1283 = vmatpush1.msra.mxu0 %v659
    %1284 = vmatprep.subr.mxu0 0.0
    %1285 = vmatpush1.msra.mxu0 %v662
    %1286 = vmatprep.subr.mxu0 0.0
    %1287 = vmatpush1.msra.mxu0 %v665
    %1288 = vmatprep.subr.mxu0 0.0
    %1289 = vmatpush1.msra.mxu0 %v668
    %1290 = vmatprep.subr.mxu0 0.0
    %1291 = vmatpush1.msra.mxu0 0.0
    %1292 = vmatprep.subr.mxu0 0.0
    %1293 = vmatpush1.msra.mxu0 0.0
    %1294 = vmatprep.subr.mxu0 0.0
    %1295 = vmatpush1.msra.mxu0 0.0
    %1296 = vmatprep.subr.mxu0 0.0
    %1297 = vmatpush1.msra.mxu0 0.0
    %1298 = vmatprep.subr.mxu0 0.0
    %1299 = vmatpush1.msra.mxu0 0.0
    %1300 = vmatprep.subr.mxu0 0.0
    %1301 = vmatpush1.msra.mxu0 0.0
    %1302 = vmatprep.subr.mxu0 0.0
    %1303 = vmatpush1.msra.mxu0 0.0
    %1304 = vmatprep.subr.mxu0 0.0
    %1305 = vmatpush1.msra.mxu0 0.0
    %1306 = vmatprep.subr.mxu0 0.0
    %1307 = vmatpush1.msra.mxu0 0.0
    %1308 = vmatprep.subr.mxu0 0.0
    %1309 = vmatpush1.msra.mxu0 0.0
    %1310 = vmatprep.subr.mxu0 0.0
    %1311 = vmatpush1.msra.mxu0 0.0
    %1312 = vmatprep.subr.mxu0 0.0
    %1313 = vmatpush1.msra.mxu0 0.0
    %1314 = vmatprep.subr.mxu0 0.0
    %1315 = vmatpush1.msra.mxu0 0.0
    %1316 = vmatprep.subr.mxu0 0.0
    %1317 = vmatpush1.msra.mxu0 0.0
    %1318 = vmatprep.subr.mxu0 0.0
    %1319 = vmatpush1.msra.mxu0 0.0
    %1320 = vmatprep.subr.mxu0 0.0
    %1321 = vmatpush1.msra.mxu0 0.0
    %1322 = vmatprep.mubr.f32.mxu0 0.0
    %1323 = vmatmul.mubr.f32.gmra.mrb[0].mxu0 %v1012
    %v1324 = vpop.f32.mrb[0].mxu0
    %v1325 = vadd.f32 0.0, %v1324
    %v1326 = vpop.f32.mrb[0].mxu0
    %1327 = vdwg.mxu0
    %v1328 = vadd.f32 %v1184, %v1254
    %v1329 = vmul.f32 %v1328, 0.5
    %v1330 = vtanh.pop %v1329
    %v1331 = vadd.f32 %v1330, 1.0
    %v1332 = vmul.f32 %v1331, 0.5
    %v1333 = vadd.f32 %v1185, %v1256
    %v1334 = vmul.f32 %v1333, 0.5
    %v1335 = vtanh.pop %v1334
    %v1336 = vadd.f32 %v1335, 1.0
    %v1337 = vmul.f32 %v1336, 0.5
    %v1338 = vadd.f32 %v1325, %v681
    %v1339 = vmul.f32 %v1332, %v1338
    %v1340 = vadd.f32 %v1186, %v1339
    %v1341 = vtanh.pop %v1340
    %v1342 = vsub.f32 1.0, %v1337
    %v1343 = vmul.f32 %v1342, %v1341
    %v1344 = vmul.f32 %v1337, %v1012
    %v1345 = vadd.f32 %v1343, %v1344
    %s1346 = scalar_lea.vmem [#allocation11], 8
    %1347 = vst [vmem:[%s1346] sm:$0xff] %v1180
    %s1348 = scalar_lea.vmem [#allocation11], 48
    %1349 = vst [vmem:[%s1348] sm:$0xff] %v1345
    %s1350 = smul.u32 2, 6
    %s1351 = smul.addr %s1350, 8
    %s1352 = scalar_lea.vmem [#allocation2], %s1351
    %v1353 = vld [vmem:[%s1352] sm:$0xff]
    %v1354 = vld [vmem:[%s1352 + $0x8] sm:$0xff]
    %v1355 = vld [vmem:[%s1352 + $0x10] sm:$0xff]
    %1356 = vmatprep.subr.mxu0 %v574
    %1357 = vmatpush1.msra.mxu0 %v573
    %1358 = vmatprep.subr.mxu0 %v577
    %1359 = vmatpush1.msra.mxu0 %v576
    %1360 = vmatprep.subr.mxu0 %v580
    %1361 = vmatpush1.msra.mxu0 %v579
    %1362 = vmatprep.subr.mxu0 %v583
    %1363 = vmatpush1.msra.mxu0 %v582
    %1364 = vmatprep.subr.mxu0 %v586
    %1365 = vmatpush1.msra.mxu0 %v585
    %1366 = vmatprep.subr.mxu0 %v589
    %1367 = vmatpush1.msra.mxu0 %v588
    %1368 = vmatprep.subr.mxu0 %v592
    %1369 = vmatpush1.msra.mxu0 %v591
    %1370 = vmatprep.subr.mxu0 %v595
    %1371 = vmatpush1.msra.mxu0 %v594
    %1372 = vmatprep.subr.mxu0 %v598
    %1373 = vmatpush1.msra.mxu0 %v597
    %1374 = vmatprep.subr.mxu0 %v601
    %1375 = vmatpush1.msra.mxu0 %v600
    %1376 = vmatprep.subr.mxu0 %v604
    %1377 = vmatpush1.msra.mxu0 %v603
    %1378 = vmatprep.subr.mxu0 %v607
    %1379 = vmatpush1.msra.mxu0 %v606
    %1380 = vmatprep.subr.mxu0 %v610
    %1381 = vmatpush1.msra.mxu0 %v609
    %1382 = vmatprep.subr.mxu0 %v613
    %1383 = vmatpush1.msra.mxu0 %v612
    %1384 = vmatprep.subr.mxu0 %v616
    %1385 = vmatpush1.msra.mxu0 %v615
    %1386 = vmatprep.subr.mxu0 %v619
    %1387 = vmatpush1.msra.mxu0 %v618
    %1388 = vmatprep.subr.mxu0 0.0
    %1389 = vmatpush1.msra.mxu0 0.0
    %1390 = vmatprep.subr.mxu0 0.0
    %1391 = vmatpush1.msra.mxu0 0.0
    %1392 = vmatprep.subr.mxu0 0.0
    %1393 = vmatpush1.msra.mxu0 0.0
    %1394 = vmatprep.subr.mxu0 0.0
    %1395 = vmatpush1.msra.mxu0 0.0
    %1396 = vmatprep.subr.mxu0 0.0
    %1397 = vmatpush1.msra.mxu0 0.0
    %1398 = vmatprep.subr.mxu0 0.0
    %1399 = vmatpush1.msra.mxu0 0.0
    %1400 = vmatprep.subr.mxu0 0.0
    %1401 = vmatpush1.msra.mxu0 0.0
    %1402 = vmatprep.subr.mxu0 0.0
    %1403 = vmatpush1.msra.mxu0 0.0
    %1404 = vmatprep.subr.mxu0 0.0
    %1405 = vmatpush1.msra.mxu0 0.0
    %1406 = vmatprep.subr.mxu0 0.0
    %1407 = vmatpush1.msra.mxu0 0.0
    %1408 = vmatprep.subr.mxu0 0.0
    %1409 = vmatpush1.msra.mxu0 0.0
    %1410 = vmatprep.subr.mxu0 0.0
    %1411 = vmatpush1.msra.mxu0 0.0
    %1412 = vmatprep.subr.mxu0 0.0
    %1413 = vmatpush1.msra.mxu0 0.0
    %1414 = vmatprep.subr.mxu0 0.0
    %1415 = vmatpush1.msra.mxu0 0.0
    %1416 = vmatprep.subr.mxu0 0.0
    %1417 = vmatpush1.msra.mxu0 0.0
    %1418 = vmatprep.subr.mxu0 0.0
    %1419 = vmatpush1.msra.mxu0 0.0
    %1420 = vmatprep.mubr.f32.mxu0 0.0
    %1421 = vmatmul.mubr.f32.gmra.mrb[0].mxu0 %v1180
    %v1422 = vpop.f32.mrb[0].mxu0
    %v1423 = vadd.f32 0.0, %v1422
    %v1424 = vpop.f32.mrb[0].mxu0
    %v1425 = vadd.f32 0.0, %v1424
    %1426 = vdwg.mxu0
    %1427 = vmatprep.subr.mxu0 0.0
    %1428 = vmatpush1.msra.mxu0 %v575
    %1429 = vmatprep.subr.mxu0 0.0
    %1430 = vmatpush1.msra.mxu0 %v578
    %1431 = vmatprep.subr.mxu0 0.0
    %1432 = vmatpush1.msra.mxu0 %v581
    %1433 = vmatprep.subr.mxu0 0.0
    %1434 = vmatpush1.msra.mxu0 %v584
    %1435 = vmatprep.subr.mxu0 0.0
    %1436 = vmatpush1.msra.mxu0 %v587
    %1437 = vmatprep.subr.mxu0 0.0
    %1438 = vmatpush1.msra.mxu0 %v590
    %1439 = vmatprep.subr.mxu0 0.0
    %1440 = vmatpush1.msra.mxu0 %v593
    %1441 = vmatprep.subr.mxu0 0.0
    %1442 = vmatpush1.msra.mxu0 %v596
    %1443 = vmatprep.subr.mxu0 0.0
    %1444 = vmatpush1.msra.mxu0 %v599
    %1445 = vmatprep.subr.mxu0 0.0
    %1446 = vmatpush1.msra.mxu0 %v602
    %1447 = vmatprep.subr.mxu0 0.0
    %1448 = vmatpush1.msra.mxu0 %v605
    %1449 = vmatprep.subr.mxu0 0.0
    %1450 = vmatpush1.msra.mxu0 %v608
    %1451 = vmatprep.subr.mxu0 0.0
    %1452 = vmatpush1.msra.mxu0 %v611
    %1453 = vmatprep.subr.mxu0 0.0
    %1454 = vmatpush1.msra.mxu0 %v614
    %1455 = vmatprep.subr.mxu0 0.0
    %1456 = vmatpush1.msra.mxu0 %v617
    %1457 = vmatprep.subr.mxu0 0.0
    %1458 = vmatpush1.msra.mxu0 %v620
    %1459 = vmatprep.subr.mxu0 0.0
    %1460 = vmatpush1.msra.mxu0 0.0
    %1461 = vmatprep.subr.mxu0 0.0
    %1462 = vmatpush1.msra.mxu0 0.0
    %1463 = vmatprep.subr.mxu0 0.0
    %1464 = vmatpush1.msra.mxu0 0.0
    %1465 = vmatprep.subr.mxu0 0.0
    %1466 = vmatpush1.msra.mxu0 0.0
    %1467 = vmatprep.subr.mxu0 0.0
    %1468 = vmatpush1.msra.mxu0 0.0
    %1469 = vmatprep.subr.mxu0 0.0
    %1470 = vmatpush1.msra.mxu0 0.0
    %1471 = vmatprep.subr.mxu0 0.0
    %1472 = vmatpush1.msra.mxu0 0.0
    %1473 = vmatprep.subr.mxu0 0.0
    %1474 = vmatpush1.msra.mxu0 0.0
    %1475 = vmatprep.subr.mxu0 0.0
    %1476 = vmatpush1.msra.mxu0 0.0
    %1477 = vmatprep.subr.mxu0 0.0
    %1478 = vmatpush1.msra.mxu0 0.0
    %1479 = vmatprep.subr.mxu0 0.0
    %1480 = vmatpush1.msra.mxu0 0.0
    %1481 = vmatprep.subr.mxu0 0.0
    %1482 = vmatpush1.msra.mxu0 0.0
    %1483 = vmatprep.subr.mxu0 0.0
    %1484 = vmatpush1.msra.mxu0 0.0
    %1485 = vmatprep.subr.mxu0 0.0
    %1486 = vmatpush1.msra.mxu0 0.0
    %1487 = vmatprep.subr.mxu0 0.0
    %1488 = vmatpush1.msra.mxu0 0.0
    %1489 = vmatprep.subr.mxu0 0.0
    %1490 = vmatpush1.msra.mxu0 0.0
    %1491 = vmatprep.mubr.f32.mxu0 0.0
    %1492 = vmatmul.mubr.f32.gmra.mrb[0].mxu0 %v1180
    %v1493 = vpop.f32.mrb[0].mxu0
    %v1494 = vadd.f32 0.0, %v1493
    %v1495 = vpop.f32.mrb[0].mxu0
    %1496 = vdwg.mxu0
    %v1497 = vadd.f32 %v1353, %v1423
    %v1498 = vmul.f32 %v1497, 0.5
    %v1499 = vtanh.pop %v1498
    %v1500 = vadd.f32 %v1499, 1.0
    %v1501 = vmul.f32 %v1500, 0.5
    %v1502 = vadd.f32 %v1354, %v1425
    %v1503 = vmul.f32 %v1502, 0.5
    %v1504 = vtanh.pop %v1503
    %v1505 = vadd.f32 %v1504, 1.0
    %v1506 = vmul.f32 %v1505, 0.5
    %v1507 = vadd.f32 %v1494, %v674
    %v1508 = vmul.f32 %v1501, %v1507
    %v1509 = vadd.f32 %v1355, %v1508
    %v1510 = vtanh.pop %v1509
    %v1511 = vsub.f32 1.0, %v1506
    %v1512 = vmul.f32 %v1511, %v1510
    %v1513 = vmul.f32 %v1506, %v1180
    %v1514 = vadd.f32 %v1512, %v1513
    %s1515 = smul.u32 5, 6
    %s1516 = smul.addr %s1515, 8
    %s1517 = scalar_lea.vmem [#allocation2], %s1516
    %v1518 = vld [vmem:[%s1517 + $0x18] sm:$0xff]
    %v1519 = vld [vmem:[%s1517 + $0x20] sm:$0xff]
    %v1520 = vld [vmem:[%s1517 + $0x28] sm:$0xff]
    %1521 = vmatprep.subr.mxu0 %v622
    %1522 = vmatpush1.msra.mxu0 %v621
    %1523 = vmatprep.subr.mxu0 %v625
    %1524 = vmatpush1.msra.mxu0 %v624
    %1525 = vmatprep.subr.mxu0 %v628
    %1526 = vmatpush1.msra.mxu0 %v627
    %1527 = vmatprep.subr.mxu0 %v631
    %1528 = vmatpush1.msra.mxu0 %v630
    %1529 = vmatprep.subr.mxu0 %v634
    %1530 = vmatpush1.msra.mxu0 %v633
    %1531 = vmatprep.subr.mxu0 %v637
    %1532 = vmatpush1.msra.mxu0 %v636
    %1533 = vmatprep.subr.mxu0 %v640
    %1534 = vmatpush1.msra.mxu0 %v639
    %1535 = vmatprep.subr.mxu0 %v643
    %1536 = vmatpush1.msra.mxu0 %v642
    %1537 = vmatprep.subr.mxu0 %v646
    %1538 = vmatpush1.msra.mxu0 %v645
    %1539 = vmatprep.subr.mxu0 %v649
    %1540 = vmatpush1.msra.mxu0 %v648
    %1541 = vmatprep.subr.mxu0 %v652
    %1542 = vmatpush1.msra.mxu0 %v651
    %1543 = vmatprep.subr.mxu0 %v655
    %1544 = vmatpush1.msra.mxu0 %v654
    %1545 = vmatprep.subr.mxu0 %v658
    %1546 = vmatpush1.msra.mxu0 %v657
    %1547 = vmatprep.subr.mxu0 %v661
    %1548 = vmatpush1.msra.mxu0 %v660
    %1549 = vmatprep.subr.mxu0 %v664
    %1550 = vmatpush1.msra.mxu0 %v663
    %1551 = vmatprep.subr.mxu0 %v667
    %1552 = vmatpush1.msra.mxu0 %v666
    %1553 = vmatprep.subr.mxu0 0.0
    %1554 = vmatpush1.msra.mxu0 0.0
    %1555 = vmatprep.subr.mxu0 0.0
    %1556 = vmatpush1.msra.mxu0 0.0
    %1557 = vmatprep.subr.mxu0 0.0
    %1558 = vmatpush1.msra.mxu0 0.0
    %1559 = vmatprep.subr.mxu0 0.0
    %1560 = vmatpush1.msra.mxu0 0.0
    %1561 = vmatprep.subr.mxu0 0.0
    %1562 = vmatpush1.msra.mxu0 0.0
    %1563 = vmatprep.subr.mxu0 0.0
    %1564 = vmatpush1.msra.mxu0 0.0
    %1565 = vmatprep.subr.mxu0 0.0
    %1566 = vmatpush1.msra.mxu0 0.0
    %1567 = vmatprep.subr.mxu0 0.0
    %1568 = vmatpush1.msra.mxu0 0.0
    %1569 = vmatprep.subr.mxu0 0.0
    %1570 = vmatpush1.msra.mxu0 0.0
    %1571 = vmatprep.subr.mxu0 0.0
    %1572 = vmatpush1.msra.mxu0 0.0
    %1573 = vmatprep.subr.mxu0 0.0
    %1574 = vmatpush1.msra.mxu0 0.0
    %1575 = vmatprep.subr.mxu0 0.0
    %1576 = vmatpush1.msra.mxu0 0.0
    %1577 = vmatprep.subr.mxu0 0.0
    %1578 = vmatpush1.msra.mxu0 0.0
    %1579 = vmatprep.subr.mxu0 0.0
    %1580 = vmatpush1.msra.mxu0 0.0
    %1581 = vmatprep.subr.mxu0 0.0
    %1582 = vmatpush1.msra.mxu0 0.0
    %1583 = vmatprep.subr.mxu0 0.0
    %1584 = vmatpush1.msra.mxu0 0.0
    %1585 = vmatprep.mubr.f32.mxu0 0.0
    %1586 = vmatmul.mubr.f32.gmra.mrb[0].mxu0 %v1345
    %v1587 = vpop.f32.mrb[0].mxu0
    %v1588 = vadd.f32 0.0, %v1587
    %v1589 = vpop.f32.mrb[0].mxu0
    %v1590 = vadd.f32 0.0, %v1589
    %1591 = vdwg.mxu0
    %1592 = vmatprep.subr.mxu0 0.0
    %1593 = vmatpush1.msra.mxu0 %v623
    %1594 = vmatprep.subr.mxu0 0.0
    %1595 = vmatpush1.msra.mxu0 %v626
    %1596 = vmatprep.subr.mxu0 0.0
    %1597 = vmatpush1.msra.mxu0 %v629
    %1598 = vmatprep.subr.mxu0 0.0
    %1599 = vmatpush1.msra.mxu0 %v632
    %1600 = vmatprep.subr.mxu0 0.0
    %1601 = vmatpush1.msra.mxu0 %v635
    %1602 = vmatprep.subr.mxu0 0.0
    %1603 = vmatpush1.msra.mxu0 %v638
    %1604 = vmatprep.subr.mxu0 0.0
    %1605 = vmatpush1.msra.mxu0 %v641
    %1606 = vmatprep.subr.mxu0 0.0
    %1607 = vmatpush1.msra.mxu0 %v644
    %1608 = vmatprep.subr.mxu0 0.0
    %1609 = vmatpush1.msra.mxu0 %v647
    %1610 = vmatprep.subr.mxu0 0.0
    %1611 = vmatpush1.msra.mxu0 %v650
    %1612 = vmatprep.subr.mxu0 0.0
    %1613 = vmatpush1.msra.mxu0 %v653
    %1614 = vmatprep.subr.mxu0 0.0
    %1615 = vmatpush1.msra.mxu0 %v656
    %1616 = vmatprep.subr.mxu0 0.0
    %1617 = vmatpush1.msra.mxu0 %v659
    %1618 = vmatprep.subr.mxu0 0.0
    %1619 = vmatpush1.msra.mxu0 %v662
    %1620 = vmatprep.subr.mxu0 0.0
    %1621 = vmatpush1.msra.mxu0 %v665
    %1622 = vmatprep.subr.mxu0 0.0
    %1623 = vmatpush1.msra.mxu0 %v668
    %1624 = vmatprep.subr.mxu0 0.0
    %1625 = vmatpush1.msra.mxu0 0.0
    %1626 = vmatprep.subr.mxu0 0.0
    %1627 = vmatpush1.msra.mxu0 0.0
    %1628 = vmatprep.subr.mxu0 0.0
    %1629 = vmatpush1.msra.mxu0 0.0
    %1630 = vmatprep.subr.mxu0 0.0
    %1631 = vmatpush1.msra.mxu0 0.0
    %1632 = vmatprep.subr.mxu0 0.0
    %1633 = vmatpush1.msra.mxu0 0.0
    %1634 = vmatprep.subr.mxu0 0.0
    %1635 = vmatpush1.msra.mxu0 0.0
    %1636 = vmatprep.subr.mxu0 0.0
    %1637 = vmatpush1.msra.mxu0 0.0
    %1638 = vmatprep.subr.mxu0 0.0
    %1639 = vmatpush1.msra.mxu0 0.0
    %1640 = vmatprep.subr.mxu0 0.0
    %1641 = vmatpush1.msra.mxu0 0.0
    %1642 = vmatprep.subr.mxu0 0.0
    %1643 = vmatpush1.msra.mxu0 0.0
    %1644 = vmatprep.subr.mxu0 0.0
    %1645 = vmatpush1.msra.mxu0 0.0
    %1646 = vmatprep.subr.mxu0 0.0
    %1647 = vmatpush1.msra.mxu0 0.0
    %1648 = vmatprep.subr.mxu0 0.0
    %1649 = vmatpush1.msra.mxu0 0.0
    %1650 = vmatprep.subr.mxu0 0.0
    %1651 = vmatpush1.msra.mxu0 0.0
    %1652 = vmatprep.subr.mxu0 0.0
    %1653 = vmatpush1.msra.mxu0 0.0
    %1654 = vmatprep.subr.mxu0 0.0
    %1655 = vmatpush1.msra.mxu0 0.0
    %1656 = vmatprep.mubr.f32.mxu0 0.0
    %1657 = vmatmul.mubr.f32.gmra.mrb[0].mxu0 %v1345
    %v1658 = vpop.f32.mrb[0].mxu0
    %v1659 = vadd.f32 0.0, %v1658
    %v1660 = vpop.f32.mrb[0].mxu0
    %1661 = vdwg.mxu0
    %v1662 = vadd.f32 %v1518, %v1588
    %v1663 = vmul.f32 %v1662, 0.5
    %v1664 = vtanh.pop %v1663
    %v1665 = vadd.f32 %v1664, 1.0
    %v1666 = vmul.f32 %v1665, 0.5
    %v1667 = vadd.f32 %v1519, %v1590
    %v1668 = vmul.f32 %v1667, 0.5
    %v1669 = vtanh.pop %v1668
    %v1670 = vadd.f32 %v1669, 1.0
    %v1671 = vmul.f32 %v1670, 0.5
    %v1672 = vadd.f32 %v1659, %v681
    %v1673 = vmul.f32 %v1666, %v1672
    %v1674 = vadd.f32 %v1520, %v1673
    %v1675 = vtanh.pop %v1674
    %v1676 = vsub.f32 1.0, %v1671
    %v1677 = vmul.f32 %v1676, %v1675
    %v1678 = vmul.f32 %v1671, %v1345
    %v1679 = vadd.f32 %v1677, %v1678
    %s1680 = scalar_lea.vmem [#allocation11], 16
    %1681 = vst [vmem:[%s1680] sm:$0xff] %v1514
    %s1682 = scalar_lea.vmem [#allocation11], 40
    %1683 = vst [vmem:[%s1682] sm:$0xff] %v1679
    %s1684 = smul.u32 3, 6
    %s1685 = smul.addr %s1684, 8
    %s1686 = scalar_lea.vmem [#allocation2], %s1685
    %v1687 = vld [vmem:[%s1686] sm:$0xff]
    %v1688 = vld [vmem:[%s1686 + $0x8] sm:$0xff]
    %v1689 = vld [vmem:[%s1686 + $0x10] sm:$0xff]
    %1690 = vmatprep.subr.mxu0 %v574
    %1691 = vmatpush1.msra.mxu0 %v573
    %1692 = vmatprep.subr.mxu0 %v577
    %1693 = vmatpush1.msra.mxu0 %v576
    %1694 = vmatprep.subr.mxu0 %v580
    %1695 = vmatpush1.msra.mxu0 %v579
    %1696 = vmatprep.subr.mxu0 %v583
    %1697 = vmatpush1.msra.mxu0 %v582
    %1698 = vmatprep.subr.mxu0 %v586
    %1699 = vmatpush1.msra.mxu0 %v585
    %1700 = vmatprep.subr.mxu0 %v589
    %1701 = vmatpush1.msra.mxu0 %v588
    %1702 = vmatprep.subr.mxu0 %v592
    %1703 = vmatpush1.msra.mxu0 %v591
    %1704 = vmatprep.subr.mxu0 %v595
    %1705 = vmatpush1.msra.mxu0 %v594
    %1706 = vmatprep.subr.mxu0 %v598
    %1707 = vmatpush1.msra.mxu0 %v597
    %1708 = vmatprep.subr.mxu0 %v601
    %1709 = vmatpush1.msra.mxu0 %v600
    %1710 = vmatprep.subr.mxu0 %v604
    %1711 = vmatpush1.msra.mxu0 %v603
    %1712 = vmatprep.subr.mxu0 %v607
    %1713 = vmatpush1.msra.mxu0 %v606
    %1714 = vmatprep.subr.mxu0 %v610
    %1715 = vmatpush1.msra.mxu0 %v609
    %1716 = vmatprep.subr.mxu0 %v613
    %1717 = vmatpush1.msra.mxu0 %v612
    %1718 = vmatprep.subr.mxu0 %v616
    %1719 = vmatpush1.msra.mxu0 %v615
    %1720 = vmatprep.subr.mxu0 %v619
    %1721 = vmatpush1.msra.mxu0 %v618
    %1722 = vmatprep.subr.mxu0 0.0
    %1723 = vmatpush1.msra.mxu0 0.0
    %1724 = vmatprep.subr.mxu0 0.0
    %1725 = vmatpush1.msra.mxu0 0.0
    %1726 = vmatprep.subr.mxu0 0.0
    %1727 = vmatpush1.msra.mxu0 0.0
    %1728 = vmatprep.subr.mxu0 0.0
    %1729 = vmatpush1.msra.mxu0 0.0
    %1730 = vmatprep.subr.mxu0 0.0
    %1731 = vmatpush1.msra.mxu0 0.0
    %1732 = vmatprep.subr.mxu0 0.0
    %1733 = vmatpush1.msra.mxu0 0.0
    %1734 = vmatprep.subr.mxu0 0.0
    %1735 = vmatpush1.msra.mxu0 0.0
    %1736 = vmatprep.subr.mxu0 0.0
    %1737 = vmatpush1.msra.mxu0 0.0
    %1738 = vmatprep.subr.mxu0 0.0
    %1739 = vmatpush1.msra.mxu0 0.0
    %1740 = vmatprep.subr.mxu0 0.0
    %1741 = vmatpush1.msra.mxu0 0.0
    %1742 = vmatprep.subr.mxu0 0.0
    %1743 = vmatpush1.msra.mxu0 0.0
    %1744 = vmatprep.subr.mxu0 0.0
    %1745 = vmatpush1.msra.mxu0 0.0
    %1746 = vmatprep.subr.mxu0 0.0
    %1747 = vmatpush1.msra.mxu0 0.0
    %1748 = vmatprep.subr.mxu0 0.0
    %1749 = vmatpush1.msra.mxu0 0.0
    %1750 = vmatprep.subr.mxu0 0.0
    %1751 = vmatpush1.msra.mxu0 0.0
    %1752 = vmatprep.subr.mxu0 0.0
    %1753 = vmatpush1.msra.mxu0 0.0
    %1754 = vmatprep.mubr.f32.mxu0 0.0
    %1755 = vmatmul.mubr.f32.gmra.mrb[0].mxu0 %v1514
    %v1756 = vpop.f32.mrb[0].mxu0
    %v1757 = vadd.f32 0.0, %v1756
    %v1758 = vpop.f32.mrb[0].mxu0
    %v1759 = vadd.f32 0.0, %v1758
    %1760 = vdwg.mxu0
    %1761 = vmatprep.subr.mxu0 0.0
    %1762 = vmatpush1.msra.mxu0 %v575
    %1763 = vmatprep.subr.mxu0 0.0
    %1764 = vmatpush1.msra.mxu0 %v578
    %1765 = vmatprep.subr.mxu0 0.0
    %1766 = vmatpush1.msra.mxu0 %v581
    %1767 = vmatprep.subr.mxu0 0.0
    %1768 = vmatpush1.msra.mxu0 %v584
    %1769 = vmatprep.subr.mxu0 0.0
    %1770 = vmatpush1.msra.mxu0 %v587
    %1771 = vmatprep.subr.mxu0 0.0
    %1772 = vmatpush1.msra.mxu0 %v590
    %1773 = vmatprep.subr.mxu0 0.0
    %1774 = vmatpush1.msra.mxu0 %v593
    %1775 = vmatprep.subr.mxu0 0.0
    %1776 = vmatpush1.msra.mxu0 %v596
    %1777 = vmatprep.subr.mxu0 0.0
    %1778 = vmatpush1.msra.mxu0 %v599
    %1779 = vmatprep.subr.mxu0 0.0
    %1780 = vmatpush1.msra.mxu0 %v602
    %1781 = vmatprep.subr.mxu0 0.0
    %1782 = vmatpush1.msra.mxu0 %v605
    %1783 = vmatprep.subr.mxu0 0.0
    %1784 = vmatpush1.msra.mxu0 %v608
    %1785 = vmatprep.subr.mxu0 0.0
    %1786 = vmatpush1.msra.mxu0 %v611
    %1787 = vmatprep.subr.mxu0 0.0
    %1788 = vmatpush1.msra.mxu0 %v614
    %1789 = vmatprep.subr.mxu0 0.0
    %1790 = vmatpush1.msra.mxu0 %v617
    %1791 = vmatprep.subr.mxu0 0.0
    %1792 = vmatpush1.msra.mxu0 %v620
    %1793 = vmatprep.subr.mxu0 0.0
    %1794 = vmatpush1.msra.mxu0 0.0
    %1795 = vmatprep.subr.mxu0 0.0
    %1796 = vmatpush1.msra.mxu0 0.0
    %1797 = vmatprep.subr.mxu0 0.0
    %1798 = vmatpush1.msra.mxu0 0.0
    %1799 = vmatprep.subr.mxu0 0.0
    %1800 = vmatpush1.msra.mxu0 0.0
    %1801 = vmatprep.subr.mxu0 0.0
    %1802 = vmatpush1.msra.mxu0 0.0
    %1803 = vmatprep.subr.mxu0 0.0
    %1804 = vmatpush1.msra.mxu0 0.0
    %1805 = vmatprep.subr.mxu0 0.0
    %1806 = vmatpush1.msra.mxu0 0.0
    %1807 = vmatprep.subr.mxu0 0.0
    %1808 = vmatpush1.msra.mxu0 0.0
    %1809 = vmatprep.subr.mxu0 0.0
    %1810 = vmatpush1.msra.mxu0 0.0
    %1811 = vmatprep.subr.mxu0 0.0
    %1812 = vmatpush1.msra.mxu0 0.0
    %1813 = vmatprep.subr.mxu0 0.0
    %1814 = vmatpush1.msra.mxu0 0.0
    %1815 = vmatprep.subr.mxu0 0.0
    %1816 = vmatpush1.msra.mxu0 0.0
    %1817 = vmatprep.subr.mxu0 0.0
    %1818 = vmatpush1.msra.mxu0 0.0
    %1819 = vmatprep.subr.mxu0 0.0
    %1820 = vmatpush1.msra.mxu0 0.0
    %1821 = vmatprep.subr.mxu0 0.0
    %1822 = vmatpush1.msra.mxu0 0.0
    %1823 = vmatprep.subr.mxu0 0.0
    %1824 = vmatpush1.msra.mxu0 0.0
    %1825 = vmatprep.mubr.f32.mxu0 0.0
    %1826 = vmatmul.mubr.f32.gmra.mrb[0].mxu0 %v1514
    %v1827 = vpop.f32.mrb[0].mxu0
    %v1828 = vadd.f32 0.0, %v1827
    %v1829 = vpop.f32.mrb[0].mxu0
    %1830 = vdwg.mxu0
    %v1831 = vadd.f32 %v1687, %v1757
    %v1832 = vmul.f32 %v1831, 0.5
    %v1833 = vtanh.pop %v1832
    %v1834 = vadd.f32 %v1833, 1.0
    %v1835 = vmul.f32 %v1834, 0.5
    %v1836 = vadd.f32 %v1688, %v1759
    %v1837 = vmul.f32 %v1836, 0.5
    %v1838 = vtanh.pop %v1837
    %v1839 = vadd.f32 %v1838, 1.0
    %v1840 = vmul.f32 %v1839, 0.5
    %v1841 = vadd.f32 %v1828, %v674
    %v1842 = vmul.f32 %v1835, %v1841
    %v1843 = vadd.f32 %v1689, %v1842
    %v1844 = vtanh.pop %v1843
    %v1845 = vsub.f32 1.0, %v1840
    %v1846 = vmul.f32 %v1845, %v1844
    %v1847 = vmul.f32 %v1840, %v1514
    %v1848 = vadd.f32 %v1846, %v1847
    %s1849 = smul.u32 4, 6
    %s1850 = smul.addr %s1849, 8
    %s1851 = scalar_lea.vmem [#allocation2], %s1850
    %v1852 = vld [vmem:[%s1851 + $0x18] sm:$0xff]
    %v1853 = vld [vmem:[%s1851 + $0x20] sm:$0xff]
    %v1854 = vld [vmem:[%s1851 + $0x28] sm:$0xff]
    %1855 = vmatprep.subr.mxu0 %v622
    %1856 = vmatpush1.msra.mxu0 %v621
    %1857 = vmatprep.subr.mxu0 %v625
    %1858 = vmatpush1.msra.mxu0 %v624
    %1859 = vmatprep.subr.mxu0 %v628
    %1860 = vmatpush1.msra.mxu0 %v627
    %1861 = vmatprep.subr.mxu0 %v631
    %1862 = vmatpush1.msra.mxu0 %v630
    %1863 = vmatprep.subr.mxu0 %v634
    %1864 = vmatpush1.msra.mxu0 %v633
    %1865 = vmatprep.subr.mxu0 %v637
    %1866 = vmatpush1.msra.mxu0 %v636
    %1867 = vmatprep.subr.mxu0 %v640
    %1868 = vmatpush1.msra.mxu0 %v639
    %1869 = vmatprep.subr.mxu0 %v643
    %1870 = vmatpush1.msra.mxu0 %v642
    %1871 = vmatprep.subr.mxu0 %v646
    %1872 = vmatpush1.msra.mxu0 %v645
    %1873 = vmatprep.subr.mxu0 %v649
    %1874 = vmatpush1.msra.mxu0 %v648
    %1875 = vmatprep.subr.mxu0 %v652
    %1876 = vmatpush1.msra.mxu0 %v651
    %1877 = vmatprep.subr.mxu0 %v655
    %1878 = vmatpush1.msra.mxu0 %v654
    %1879 = vmatprep.subr.mxu0 %v658
    %1880 = vmatpush1.msra.mxu0 %v657
    %1881 = vmatprep.subr.mxu0 %v661
    %1882 = vmatpush1.msra.mxu0 %v660
    %1883 = vmatprep.subr.mxu0 %v664
    %1884 = vmatpush1.msra.mxu0 %v663
    %1885 = vmatprep.subr.mxu0 %v667
    %1886 = vmatpush1.msra.mxu0 %v666
    %1887 = vmatprep.subr.mxu0 0.0
    %1888 = vmatpush1.msra.mxu0 0.0
    %1889 = vmatprep.subr.mxu0 0.0
    %1890 = vmatpush1.msra.mxu0 0.0
    %1891 = vmatprep.subr.mxu0 0.0
    %1892 = vmatpush1.msra.mxu0 0.0
    %1893 = vmatprep.subr.mxu0 0.0
    %1894 = vmatpush1.msra.mxu0 0.0
    %1895 = vmatprep.subr.mxu0 0.0
    %1896 = vmatpush1.msra.mxu0 0.0
    %1897 = vmatprep.subr.mxu0 0.0
    %1898 = vmatpush1.msra.mxu0 0.0
    %1899 = vmatprep.subr.mxu0 0.0
    %1900 = vmatpush1.msra.mxu0 0.0
    %1901 = vmatprep.subr.mxu0 0.0
    %1902 = vmatpush1.msra.mxu0 0.0
    %1903 = vmatprep.subr.mxu0 0.0
    %1904 = vmatpush1.msra.mxu0 0.0
    %1905 = vmatprep.subr.mxu0 0.0
    %1906 = vmatpush1.msra.mxu0 0.0
    %1907 = vmatprep.subr.mxu0 0.0
    %1908 = vmatpush1.msra.mxu0 0.0
    %1909 = vmatprep.subr.mxu0 0.0
    %1910 = vmatpush1.msra.mxu0 0.0
    %1911 = vmatprep.subr.mxu0 0.0
    %1912 = vmatpush1.msra.mxu0 0.0
    %1913 = vmatprep.subr.mxu0 0.0
    %1914 = vmatpush1.msra.mxu0 0.0
    %1915 = vmatprep.subr.mxu0 0.0
    %1916 = vmatpush1.msra.mxu0 0.0
    %1917 = vmatprep.subr.mxu0 0.0
    %1918 = vmatpush1.msra.mxu0 0.0
    %1919 = vmatprep.mubr.f32.mxu0 0.0
    %1920 = vmatmul.mubr.f32.gmra.mrb[0].mxu0 %v1679
    %v1921 = vpop.f32.mrb[0].mxu0
    %v1922 = vadd.f32 0.0, %v1921
    %v1923 = vpop.f32.mrb[0].mxu0
    %v1924 = vadd.f32 0.0, %v1923
    %1925 = vdwg.mxu0
    %1926 = vmatprep.subr.mxu0 0.0
    %1927 = vmatpush1.msra.mxu0 %v623
    %1928 = vmatprep.subr.mxu0 0.0
    %1929 = vmatpush1.msra.mxu0 %v626
    %1930 = vmatprep.subr.mxu0 0.0
    %1931 = vmatpush1.msra.mxu0 %v629
    %1932 = vmatprep.subr.mxu0 0.0
    %1933 = vmatpush1.msra.mxu0 %v632
    %1934 = vmatprep.subr.mxu0 0.0
    %1935 = vmatpush1.msra.mxu0 %v635
    %1936 = vmatprep.subr.mxu0 0.0
    %1937 = vmatpush1.msra.mxu0 %v638
    %1938 = vmatprep.subr.mxu0 0.0
    %1939 = vmatpush1.msra.mxu0 %v641
    %1940 = vmatprep.subr.mxu0 0.0
    %1941 = vmatpush1.msra.mxu0 %v644
    %1942 = vmatprep.subr.mxu0 0.0
    %1943 = vmatpush1.msra.mxu0 %v647
    %1944 = vmatprep.subr.mxu0 0.0
    %1945 = vmatpush1.msra.mxu0 %v650
    %1946 = vmatprep.subr.mxu0 0.0
    %1947 = vmatpush1.msra.mxu0 %v653
    %1948 = vmatprep.subr.mxu0 0.0
    %1949 = vmatpush1.msra.mxu0 %v656
    %1950 = vmatprep.subr.mxu0 0.0
    %1951 = vmatpush1.msra.mxu0 %v659
    %1952 = vmatprep.subr.mxu0 0.0
    %1953 = vmatpush1.msra.mxu0 %v662
    %1954 = vmatprep.subr.mxu0 0.0
    %1955 = vmatpush1.msra.mxu0 %v665
    %1956 = vmatprep.subr.mxu0 0.0
    %1957 = vmatpush1.msra.mxu0 %v668
    %1958 = vmatprep.subr.mxu0 0.0
    %1959 = vmatpush1.msra.mxu0 0.0
    %1960 = vmatprep.subr.mxu0 0.0
    %1961 = vmatpush1.msra.mxu0 0.0
    %1962 = vmatprep.subr.mxu0 0.0
    %1963 = vmatpush1.msra.mxu0 0.0
    %1964 = vmatprep.subr.mxu0 0.0
    %1965 = vmatpush1.msra.mxu0 0.0
    %1966 = vmatprep.subr.mxu0 0.0
    %1967 = vmatpush1.msra.mxu0 0.0
    %1968 = vmatprep.subr.mxu0 0.0
    %1969 = vmatpush1.msra.mxu0 0.0
    %1970 = vmatprep.subr.mxu0 0.0
    %1971 = vmatpush1.msra.mxu0 0.0
    %1972 = vmatprep.subr.mxu0 0.0
    %1973 = vmatpush1.msra.mxu0 0.0
    %1974 = vmatprep.subr.mxu0 0.0
    %1975 = vmatpush1.msra.mxu0 0.0
    %1976 = vmatprep.subr.mxu0 0.0
    %1977 = vmatpush1.msra.mxu0 0.0
    %1978 = vmatprep.subr.mxu0 0.0
    %1979 = vmatpush1.msra.mxu0 0.0
    %1980 = vmatprep.subr.mxu0 0.0
    %1981 = vmatpush1.msra.mxu0 0.0
    %1982 = vmatprep.subr.mxu0 0.0
    %1983 = vmatpush1.msra.mxu0 0.0
    %1984 = vmatprep.subr.mxu0 0.0
    %1985 = vmatpush1.msra.mxu0 0.0
    %1986 = vmatprep.subr.mxu0 0.0
    %1987 = vmatpush1.msra.mxu0 0.0
    %1988 = vmatprep.subr.mxu0 0.0
    %1989 = vmatpush1.msra.mxu0 0.0
    %1990 = vmatprep.mubr.f32.mxu0 0.0
    %1991 = vmatmul.mubr.f32.gmra.mrb[0].mxu0 %v1679
    %v1992 = vpop.f32.mrb[0].mxu0
    %v1993 = vadd.f32 0.0, %v1992
    %v1994 = vpop.f32.mrb[0].mxu0
    %1995 = vdwg.mxu0
    %v1996 = vadd.f32 %v1852, %v1922
    %v1997 = vmul.f32 %v1996, 0.5
    %v1998 = vtanh.pop %v1997
    %v1999 = vadd.f32 %v1998, 1.0
    %v2000 = vmul.f32 %v1999, 0.5
    %v2001 = vadd.f32 %v1853, %v1924
    %v2002 = vmul.f32 %v2001, 0.5
    %v2003 = vtanh.pop %v2002
    %v2004 = vadd.f32 %v2003, 1.0
    %v2005 = vmul.f32 %v2004, 0.5
    %v2006 = vadd.f32 %v1993, %v681
    %v2007 = vmul.f32 %v2000, %v2006
    %v2008 = vadd.f32 %v1854, %v2007
    %v2009 = vtanh.pop %v2008
    %v2010 = vsub.f32 1.0, %v2005
    %v2011 = vmul.f32 %v2010, %v2009
    %v2012 = vmul.f32 %v2005, %v1679
    %v2013 = vadd.f32 %v2011, %v2012
    %s2014 = scalar_lea.vmem [#allocation11], 24
    %2015 = vst [vmem:[%s2014] sm:$0xff] %v1848
    %s2016 = scalar_lea.vmem [#allocation11], 32
    %2017 = vst [vmem:[%s2016] sm:$0xff] %v2013
    %v2018 = vld [vmem:[%s1851] sm:$0xff]
    %v2019 = vld [vmem:[%s1851 + $0x8] sm:$0xff]
    %v2020 = vld [vmem:[%s1851 + $0x10] sm:$0xff]
    %2021 = vmatprep.subr.mxu0 %v574
    %2022 = vmatpush1.msra.mxu0 %v573
    %2023 = vmatprep.subr.mxu0 %v577
    %2024 = vmatpush1.msra.mxu0 %v576
    %2025 = vmatprep.subr.mxu0 %v580
    %2026 = vmatpush1.msra.mxu0 %v579
    %2027 = vmatprep.subr.mxu0 %v583
    %2028 = vmatpush1.msra.mxu0 %v582
    %2029 = vmatprep.subr.mxu0 %v586
    %2030 = vmatpush1.msra.mxu0 %v585
    %2031 = vmatprep.subr.mxu0 %v589
    %2032 = vmatpush1.msra.mxu0 %v588
    %2033 = vmatprep.subr.mxu0 %v592
    %2034 = vmatpush1.msra.mxu0 %v591
    %2035 = vmatprep.subr.mxu0 %v595
    %2036 = vmatpush1.msra.mxu0 %v594
    %2037 = vmatprep.subr.mxu0 %v598
    %2038 = vmatpush1.msra.mxu0 %v597
    %2039 = vmatprep.subr.mxu0 %v601
    %2040 = vmatpush1.msra.mxu0 %v600
    %2041 = vmatprep.subr.mxu0 %v604
    %2042 = vmatpush1.msra.mxu0 %v603
    %2043 = vmatprep.subr.mxu0 %v607
    %2044 = vmatpush1.msra.mxu0 %v606
    %2045 = vmatprep.subr.mxu0 %v610
    %2046 = vmatpush1.msra.mxu0 %v609
    %2047 = vmatprep.subr.mxu0 %v613
    %2048 = vmatpush1.msra.mxu0 %v612
    %2049 = vmatprep.subr.mxu0 %v616
    %2050 = vmatpush1.msra.mxu0 %v615
    %2051 = vmatprep.subr.mxu0 %v619
    %2052 = vmatpush1.msra.mxu0 %v618
    %2053 = vmatprep.subr.mxu0 0.0
    %2054 = vmatpush1.msra.mxu0 0.0
    %2055 = vmatprep.subr.mxu0 0.0
    %2056 = vmatpush1.msra.mxu0 0.0
    %2057 = vmatprep.subr.mxu0 0.0
    %2058 = vmatpush1.msra.mxu0 0.0
    %2059 = vmatprep.subr.mxu0 0.0
    %2060 = vmatpush1.msra.mxu0 0.0
    %2061 = vmatprep.subr.mxu0 0.0
    %2062 = vmatpush1.msra.mxu0 0.0
    %2063 = vmatprep.subr.mxu0 0.0
    %2064 = vmatpush1.msra.mxu0 0.0
    %2065 = vmatprep.subr.mxu0 0.0
    %2066 = vmatpush1.msra.mxu0 0.0
    %2067 = vmatprep.subr.mxu0 0.0
    %2068 = vmatpush1.msra.mxu0 0.0
    %2069 = vmatprep.subr.mxu0 0.0
    %2070 = vmatpush1.msra.mxu0 0.0
    %2071 = vmatprep.subr.mxu0 0.0
    %2072 = vmatpush1.msra.mxu0 0.0
    %2073 = vmatprep.subr.mxu0 0.0
    %2074 = vmatpush1.msra.mxu0 0.0
    %2075 = vmatprep.subr.mxu0 0.0
    %2076 = vmatpush1.msra.mxu0 0.0
    %2077 = vmatprep.subr.mxu0 0.0
    %2078 = vmatpush1.msra.mxu0 0.0
    %2079 = vmatprep.subr.mxu0 0.0
    %2080 = vmatpush1.msra.mxu0 0.0
    %2081 = vmatprep.subr.mxu0 0.0
    %2082 = vmatpush1.msra.mxu0 0.0
    %2083 = vmatprep.subr.mxu0 0.0
    %2084 = vmatpush1.msra.mxu0 0.0
    %2085 = vmatprep.mubr.f32.mxu0 0.0
    %2086 = vmatmul.mubr.f32.gmra.mrb[0].mxu0 %v1848
    %v2087 = vpop.f32.mrb[0].mxu0
    %v2088 = vadd.f32 0.0, %v2087
    %v2089 = vpop.f32.mrb[0].mxu0
    %v2090 = vadd.f32 0.0, %v2089
    %2091 = vdwg.mxu0
    %2092 = vmatprep.subr.mxu0 0.0
    %2093 = vmatpush1.msra.mxu0 %v575
    %2094 = vmatprep.subr.mxu0 0.0
    %2095 = vmatpush1.msra.mxu0 %v578
    %2096 = vmatprep.subr.mxu0 0.0
    %2097 = vmatpush1.msra.mxu0 %v581
    %2098 = vmatprep.subr.mxu0 0.0
    %2099 = vmatpush1.msra.mxu0 %v584
    %2100 = vmatprep.subr.mxu0 0.0
    %2101 = vmatpush1.msra.mxu0 %v587
    %2102 = vmatprep.subr.mxu0 0.0
    %2103 = vmatpush1.msra.mxu0 %v590
    %2104 = vmatprep.subr.mxu0 0.0
    %2105 = vmatpush1.msra.mxu0 %v593
    %2106 = vmatprep.subr.mxu0 0.0
    %2107 = vmatpush1.msra.mxu0 %v596
    %2108 = vmatprep.subr.mxu0 0.0
    %2109 = vmatpush1.msra.mxu0 %v599
    %2110 = vmatprep.subr.mxu0 0.0
    %2111 = vmatpush1.msra.mxu0 %v602
    %2112 = vmatprep.subr.mxu0 0.0
    %2113 = vmatpush1.msra.mxu0 %v605
    %2114 = vmatprep.subr.mxu0 0.0
    %2115 = vmatpush1.msra.mxu0 %v608
    %2116 = vmatprep.subr.mxu0 0.0
    %2117 = vmatpush1.msra.mxu0 %v611
    %2118 = vmatprep.subr.mxu0 0.0
    %2119 = vmatpush1.msra.mxu0 %v614
    %2120 = vmatprep.subr.mxu0 0.0
    %2121 = vmatpush1.msra.mxu0 %v617
    %2122 = vmatprep.subr.mxu0 0.0
    %2123 = vmatpush1.msra.mxu0 %v620
    %2124 = vmatprep.subr.mxu0 0.0
    %2125 = vmatpush1.msra.mxu0 0.0
    %2126 = vmatprep.subr.mxu0 0.0
    %2127 = vmatpush1.msra.mxu0 0.0
    %2128 = vmatprep.subr.mxu0 0.0
    %2129 = vmatpush1.msra.mxu0 0.0
    %2130 = vmatprep.subr.mxu0 0.0
    %2131 = vmatpush1.msra.mxu0 0.0
    %2132 = vmatprep.subr.mxu0 0.0
    %2133 = vmatpush1.msra.mxu0 0.0
    %2134 = vmatprep.subr.mxu0 0.0
    %2135 = vmatpush1.msra.mxu0 0.0
    %2136 = vmatprep.subr.mxu0 0.0
    %2137 = vmatpush1.msra.mxu0 0.0
    %2138 = vmatprep.subr.mxu0 0.0
    %2139 = vmatpush1.msra.mxu0 0.0
    %2140 = vmatprep.subr.mxu0 0.0
    %2141 = vmatpush1.msra.mxu0 0.0
    %2142 = vmatprep.subr.mxu0 0.0
    %2143 = vmatpush1.msra.mxu0 0.0
    %2144 = vmatprep.subr.mxu0 0.0
    %2145 = vmatpush1.msra.mxu0 0.0
    %2146 = vmatprep.subr.mxu0 0.0
    %2147 = vmatpush1.msra.mxu0 0.0
    %2148 = vmatprep.subr.mxu0 0.0
    %2149 = vmatpush1.msra.mxu0 0.0
    %2150 = vmatprep.subr.mxu0 0.0
    %2151 = vmatpush1.msra.mxu0 0.0
    %2152 = vmatprep.subr.mxu0 0.0
    %2153 = vmatpush1.msra.mxu0 0.0
    %2154 = vmatprep.subr.mxu0 0.0
    %2155 = vmatpush1.msra.mxu0 0.0
    %2156 = vmatprep.mubr.f32.mxu0 0.0
    %2157 = vmatmul.mubr.f32.gmra.mrb[0].mxu0 %v1848
    %v2158 = vpop.f32.mrb[0].mxu0
    %v2159 = vadd.f32 0.0, %v2158
    %v2160 = vpop.f32.mrb[0].mxu0
    %2161 = vdwg.mxu0
    %v2162 = vadd.f32 %v2018, %v2088
    %v2163 = vmul.f32 %v2162, 0.5
    %v2164 = vtanh.pop %v2163
    %v2165 = vadd.f32 %v2164, 1.0
    %v2166 = vmul.f32 %v2165, 0.5
    %v2167 = vadd.f32 %v2019, %v2090
    %v2168 = vmul.f32 %v2167, 0.5
    %v2169 = vtanh.pop %v2168
    %v2170 = vadd.f32 %v2169, 1.0
    %v2171 = vmul.f32 %v2170, 0.5
    %v2172 = vadd.f32 %v2159, %v674
    %v2173 = vmul.f32 %v2166, %v2172
    %v2174 = vadd.f32 %v2020, %v2173
    %v2175 = vtanh.pop %v2174
    %v2176 = vsub.f32 1.0, %v2171
    %v2177 = vmul.f32 %v2176, %v2175
    %v2178 = vmul.f32 %v2171, %v1848
    %v2179 = vadd.f32 %v2177, %v2178
    %v2180 = vld [vmem:[%s1686 + $0x18] sm:$0xff]
    %v2181 = vld [vmem:[%s1686 + $0x20] sm:$0xff]
    %v2182 = vld [vmem:[%s1686 + $0x28] sm:$0xff]
    %2183 = vmatprep.subr.mxu0 %v622
    %2184 = vmatpush1.msra.mxu0 %v621
    %2185 = vmatprep.subr.mxu0 %v625
    %2186 = vmatpush1.msra.mxu0 %v624
    %2187 = vmatprep.subr.mxu0 %v628
    %2188 = vmatpush1.msra.mxu0 %v627
    %2189 = vmatprep.subr.mxu0 %v631
    %2190 = vmatpush1.msra.mxu0 %v630
    %2191 = vmatprep.subr.mxu0 %v634
    %2192 = vmatpush1.msra.mxu0 %v633
    %2193 = vmatprep.subr.mxu0 %v637
    %2194 = vmatpush1.msra.mxu0 %v636
    %2195 = vmatprep.subr.mxu0 %v640
    %2196 = vmatpush1.msra.mxu0 %v639
    %2197 = vmatprep.subr.mxu0 %v643
    %2198 = vmatpush1.msra.mxu0 %v642
    %2199 = vmatprep.subr.mxu0 %v646
    %2200 = vmatpush1.msra.mxu0 %v645
    %2201 = vmatprep.subr.mxu0 %v649
    %2202 = vmatpush1.msra.mxu0 %v648
    %2203 = vmatprep.subr.mxu0 %v652
    %2204 = vmatpush1.msra.mxu0 %v651
    %2205 = vmatprep.subr.mxu0 %v655
    %2206 = vmatpush1.msra.mxu0 %v654
    %2207 = vmatprep.subr.mxu0 %v658
    %2208 = vmatpush1.msra.mxu0 %v657
    %2209 = vmatprep.subr.mxu0 %v661
    %2210 = vmatpush1.msra.mxu0 %v660
    %2211 = vmatprep.subr.mxu0 %v664
    %2212 = vmatpush1.msra.mxu0 %v663
    %2213 = vmatprep.subr.mxu0 %v667
    %2214 = vmatpush1.msra.mxu0 %v666
    %2215 = vmatprep.subr.mxu0 0.0
    %2216 = vmatpush1.msra.mxu0 0.0
    %2217 = vmatprep.subr.mxu0 0.0
    %2218 = vmatpush1.msra.mxu0 0.0
    %2219 = vmatprep.subr.mxu0 0.0
    %2220 = vmatpush1.msra.mxu0 0.0
    %2221 = vmatprep.subr.mxu0 0.0
    %2222 = vmatpush1.msra.mxu0 0.0
    %2223 = vmatprep.subr.mxu0 0.0
    %2224 = vmatpush1.msra.mxu0 0.0
    %2225 = vmatprep.subr.mxu0 0.0
    %2226 = vmatpush1.msra.mxu0 0.0
    %2227 = vmatprep.subr.mxu0 0.0
    %2228 = vmatpush1.msra.mxu0 0.0
    %2229 = vmatprep.subr.mxu0 0.0
    %2230 = vmatpush1.msra.mxu0 0.0
    %2231 = vmatprep.subr.mxu0 0.0
    %2232 = vmatpush1.msra.mxu0 0.0
    %2233 = vmatprep.subr.mxu0 0.0
    %2234 = vmatpush1.msra.mxu0 0.0
    %2235 = vmatprep.subr.mxu0 0.0
    %2236 = vmatpush1.msra.mxu0 0.0
    %2237 = vmatprep.subr.mxu0 0.0
    %2238 = vmatpush1.msra.mxu0 0.0
    %2239 = vmatprep.subr.mxu0 0.0
    %2240 = vmatpush1.msra.mxu0 0.0
    %2241 = vmatprep.subr.mxu0 0.0
    %2242 = vmatpush1.msra.mxu0 0.0
    %2243 = vmatprep.subr.mxu0 0.0
    %2244 = vmatpush1.msra.mxu0 0.0
    %2245 = vmatprep.subr.mxu0 0.0
    %2246 = vmatpush1.msra.mxu0 0.0
    %2247 = vmatprep.mubr.f32.mxu0 0.0
    %2248 = vmatmul.mubr.f32.gmra.mrb[0].mxu0 %v2013
    %v2249 = vpop.f32.mrb[0].mxu0
    %v2250 = vadd.f32 0.0, %v2249
    %v2251 = vpop.f32.mrb[0].mxu0
    %v2252 = vadd.f32 0.0, %v2251
    %2253 = vdwg.mxu0
    %2254 = vmatprep.subr.mxu0 0.0
    %2255 = vmatpush1.msra.mxu0 %v623
    %2256 = vmatprep.subr.mxu0 0.0
    %2257 = vmatpush1.msra.mxu0 %v626
    %2258 = vmatprep.subr.mxu0 0.0
    %2259 = vmatpush1.msra.mxu0 %v629
    %2260 = vmatprep.subr.mxu0 0.0
    %2261 = vmatpush1.msra.mxu0 %v632
    %2262 = vmatprep.subr.mxu0 0.0
    %2263 = vmatpush1.msra.mxu0 %v635
    %2264 = vmatprep.subr.mxu0 0.0
    %2265 = vmatpush1.msra.mxu0 %v638
    %2266 = vmatprep.subr.mxu0 0.0
    %2267 = vmatpush1.msra.mxu0 %v641
    %2268 = vmatprep.subr.mxu0 0.0
    %2269 = vmatpush1.msra.mxu0 %v644
    %2270 = vmatprep.subr.mxu0 0.0
    %2271 = vmatpush1.msra.mxu0 %v647
    %2272 = vmatprep.subr.mxu0 0.0
    %2273 = vmatpush1.msra.mxu0 %v650
    %2274 = vmatprep.subr.mxu0 0.0
    %2275 = vmatpush1.msra.mxu0 %v653
    %2276 = vmatprep.subr.mxu0 0.0
    %2277 = vmatpush1.msra.mxu0 %v656
    %2278 = vmatprep.subr.mxu0 0.0
    %2279 = vmatpush1.msra.mxu0 %v659
    %2280 = vmatprep.subr.mxu0 0.0
    %2281 = vmatpush1.msra.mxu0 %v662
    %2282 = vmatprep.subr.mxu0 0.0
    %2283 = vmatpush1.msra.mxu0 %v665
    %2284 = vmatprep.subr.mxu0 0.0
    %2285 = vmatpush1.msra.mxu0 %v668
    %2286 = vmatprep.subr.mxu0 0.0
    %2287 = vmatpush1.msra.mxu0 0.0
    %2288 = vmatprep.subr.mxu0 0.0
    %2289 = vmatpush1.msra.mxu0 0.0
    %2290 = vmatprep.subr.mxu0 0.0
    %2291 = vmatpush1.msra.mxu0 0.0
    %2292 = vmatprep.subr.mxu0 0.0
    %2293 = vmatpush1.msra.mxu0 0.0
    %2294 = vmatprep.subr.mxu0 0.0
    %2295 = vmatpush1.msra.mxu0 0.0
    %2296 = vmatprep.subr.mxu0 0.0
    %2297 = vmatpush1.msra.mxu0 0.0
    %2298 = vmatprep.subr.mxu0 0.0
    %2299 = vmatpush1.msra.mxu0 0.0
    %2300 = vmatprep.subr.mxu0 0.0
    %2301 = vmatpush1.msra.mxu0 0.0
    %2302 = vmatprep.subr.mxu0 0.0
    %2303 = vmatpush1.msra.mxu0 0.0
    %2304 = vmatprep.subr.mxu0 0.0
    %2305 = vmatpush1.msra.mxu0 0.0
    %2306 = vmatprep.subr.mxu0 0.0
    %2307 = vmatpush1.msra.mxu0 0.0
    %2308 = vmatprep.subr.mxu0 0.0
    %2309 = vmatpush1.msra.mxu0 0.0
    %2310 = vmatprep.subr.mxu0 0.0
    %2311 = vmatpush1.msra.mxu0 0.0
    %2312 = vmatprep.subr.mxu0 0.0
    %2313 = vmatpush1.msra.mxu0 0.0
    %2314 = vmatprep.subr.mxu0 0.0
    %2315 = vmatpush1.msra.mxu0 0.0
    %2316 = vmatprep.subr.mxu0 0.0
    %2317 = vmatpush1.msra.mxu0 0.0
    %2318 = vmatprep.mubr.f32.mxu0 0.0
    %2319 = vmatmul.mubr.f32.gmra.mrb[0].mxu0 %v2013
    %v2320 = vpop.f32.mrb[0].mxu0
    %v2321 = vadd.f32 0.0, %v2320
    %v2322 = vpop.f32.mrb[0].mxu0
    %2323 = vdwg.mxu0
    %v2324 = vadd.f32 %v2180, %v2250
    %v2325 = vmul.f32 %v2324, 0.5
    %v2326 = vtanh.pop %v2325
    %v2327 = vadd.f32 %v2326, 1.0
    %v2328 = vmul.f32 %v2327, 0.5
    %v2329 = vadd.f32 %v2181, %v2252
    %v2330 = vmul.f32 %v2329, 0.5
    %v2331 = vtanh.pop %v2330
    %v2332 = vadd.f32 %v2331, 1.0
    %v2333 = vmul.f32 %v2332, 0.5
    %v2334 = vadd.f32 %v2321, %v681
    %v2335 = vmul.f32 %v2328, %v2334
    %v2336 = vadd.f32 %v2182, %v2335
    %v2337 = vtanh.pop %v2336
    %v2338 = vsub.f32 1.0, %v2333
    %v2339 = vmul.f32 %v2338, %v2337
    %v2340 = vmul.f32 %v2333, %v2013
    %v2341 = vadd.f32 %v2339, %v2340
    %v2342 = vld [vmem:[%s2016] sm:$0xff]
    %v2343 = vadd.f32 %v2342, %v2179
    %2344 = vst [vmem:[%s2016] sm:$0xff] %v2343
    %v2345 = vld [vmem:[%s2014] sm:$0xff]
    %v2346 = vadd.f32 %v2345, %v2341
    %2347 = vst [vmem:[%s2014] sm:$0xff] %v2346
    %v2348 = vld [vmem:[%s1517] sm:$0xff]
    %v2349 = vld [vmem:[%s1517 + $0x8] sm:$0xff]
    %v2350 = vld [vmem:[%s1517 + $0x10] sm:$0xff]
    %2351 = vmatprep.subr.mxu0 %v574
    %2352 = vmatpush1.msra.mxu0 %v573
    %2353 = vmatprep.subr.mxu0 %v577
    %2354 = vmatpush1.msra.mxu0 %v576
    %2355 = vmatprep.subr.mxu0 %v580
    %2356 = vmatpush1.msra.mxu0 %v579
    %2357 = vmatprep.subr.mxu0 %v583
    %2358 = vmatpush1.msra.mxu0 %v582
    %2359 = vmatprep.subr.mxu0 %v586
    %2360 = vmatpush1.msra.mxu0 %v585
    %2361 = vmatprep.subr.mxu0 %v589
    %2362 = vmatpush1.msra.mxu0 %v588
    %2363 = vmatprep.subr.mxu0 %v592
    %2364 = vmatpush1.msra.mxu0 %v591
    %2365 = vmatprep.subr.mxu0 %v595
    %2366 = vmatpush1.msra.mxu0 %v594
    %2367 = vmatprep.subr.mxu0 %v598
    %2368 = vmatpush1.msra.mxu0 %v597
    %2369 = vmatprep.subr.mxu0 %v601
    %2370 = vmatpush1.msra.mxu0 %v600
    %2371 = vmatprep.subr.mxu0 %v604
    %2372 = vmatpush1.msra.mxu0 %v603
    %2373 = vmatprep.subr.mxu0 %v607
    %2374 = vmatpush1.msra.mxu0 %v606
    %2375 = vmatprep.subr.mxu0 %v610
    %2376 = vmatpush1.msra.mxu0 %v609
    %2377 = vmatprep.subr.mxu0 %v613
    %2378 = vmatpush1.msra.mxu0 %v612
    %2379 = vmatprep.subr.mxu0 %v616
    %2380 = vmatpush1.msra.mxu0 %v615
    %2381 = vmatprep.subr.mxu0 %v619
    %2382 = vmatpush1.msra.mxu0 %v618
    %2383 = vmatprep.subr.mxu0 0.0
    %2384 = vmatpush1.msra.mxu0 0.0
    %2385 = vmatprep.subr.mxu0 0.0
    %2386 = vmatpush1.msra.mxu0 0.0
    %2387 = vmatprep.subr.mxu0 0.0
    %2388 = vmatpush1.msra.mxu0 0.0
    %2389 = vmatprep.subr.mxu0 0.0
    %2390 = vmatpush1.msra.mxu0 0.0
    %2391 = vmatprep.subr.mxu0 0.0
    %2392 = vmatpush1.msra.mxu0 0.0
    %2393 = vmatprep.subr.mxu0 0.0
    %2394 = vmatpush1.msra.mxu0 0.0
    %2395 = vmatprep.subr.mxu0 0.0
    %2396 = vmatpush1.msra.mxu0 0.0
    %2397 = vmatprep.subr.mxu0 0.0
    %2398 = vmatpush1.msra.mxu0 0.0
    %2399 = vmatprep.subr.mxu0 0.0
    %2400 = vmatpush1.msra.mxu0 0.0
    %2401 = vmatprep.subr.mxu0 0.0
    %2402 = vmatpush1.msra.mxu0 0.0
    %2403 = vmatprep.subr.mxu0 0.0
    %2404 = vmatpush1.msra.mxu0 0.0
    %2405 = vmatprep.subr.mxu0 0.0
    %2406 = vmatpush1.msra.mxu0 0.0
    %2407 = vmatprep.subr.mxu0 0.0
    %2408 = vmatpush1.msra.mxu0 0.0
    %2409 = vmatprep.subr.mxu0 0.0
    %2410 = vmatpush1.msra.mxu0 0.0
    %2411 = vmatprep.subr.mxu0 0.0
    %2412 = vmatpush1.msra.mxu0 0.0
    %2413 = vmatprep.subr.mxu0 0.0
    %2414 = vmatpush1.msra.mxu0 0.0
    %2415 = vmatprep.mubr.f32.mxu0 0.0
    %2416 = vmatmul.mubr.f32.gmra.mrb[0].mxu0 %v2179
    %v2417 = vpop.f32.mrb[0].mxu0
    %v2418 = vadd.f32 0.0, %v2417
    %v2419 = vpop.f32.mrb[0].mxu0
    %v2420 = vadd.f32 0.0, %v2419
    %2421 = vdwg.mxu0
    %2422 = vmatprep.subr.mxu0 0.0
    %2423 = vmatpush1.msra.mxu0 %v575
    %2424 = vmatprep.subr.mxu0 0.0
    %2425 = vmatpush1.msra.mxu0 %v578
    %2426 = vmatprep.subr.mxu0 0.0
    %2427 = vmatpush1.msra.mxu0 %v581
    %2428 = vmatprep.subr.mxu0 0.0
    %2429 = vmatpush1.msra.mxu0 %v584
    %2430 = vmatprep.subr.mxu0 0.0
    %2431 = vmatpush1.msra.mxu0 %v587
    %2432 = vmatprep.subr.mxu0 0.0
    %2433 = vmatpush1.msra.mxu0 %v590
    %2434 = vmatprep.subr.mxu0 0.0
    %2435 = vmatpush1.msra.mxu0 %v593
    %2436 = vmatprep.subr.mxu0 0.0
    %2437 = vmatpush1.msra.mxu0 %v596
    %2438 = vmatprep.subr.mxu0 0.0
    %2439 = vmatpush1.msra.mxu0 %v599
    %2440 = vmatprep.subr.mxu0 0.0
    %2441 = vmatpush1.msra.mxu0 %v602
    %2442 = vmatprep.subr.mxu0 0.0
    %2443 = vmatpush1.msra.mxu0 %v605
    %2444 = vmatprep.subr.mxu0 0.0
    %2445 = vmatpush1.msra.mxu0 %v608
    %2446 = vmatprep.subr.mxu0 0.0
    %2447 = vmatpush1.msra.mxu0 %v611
    %2448 = vmatprep.subr.mxu0 0.0
    %2449 = vmatpush1.msra.mxu0 %v614
    %2450 = vmatprep.subr.mxu0 0.0
    %2451 = vmatpush1.msra.mxu0 %v617
    %2452 = vmatprep.subr.mxu0 0.0
    %2453 = vmatpush1.msra.mxu0 %v620
    %2454 = vmatprep.subr.mxu0 0.0
    %2455 = vmatpush1.msra.mxu0 0.0
    %2456 = vmatprep.subr.mxu0 0.0
    %2457 = vmatpush1.msra.mxu0 0.0
    %2458 = vmatprep.subr.mxu0 0.0
    %2459 = vmatpush1.msra.mxu0 0.0
    %2460 = vmatprep.subr.mxu0 0.0
    %2461 = vmatpush1.msra.mxu0 0.0
    %2462 = vmatprep.subr.mxu0 0.0
    %2463 = vmatpush1.msra.mxu0 0.0
    %2464 = vmatprep.subr.mxu0 0.0
    %2465 = vmatpush1.msra.mxu0 0.0
    %2466 = vmatprep.subr.mxu0 0.0
    %2467 = vmatpush1.msra.mxu0 0.0
    %2468 = vmatprep.subr.mxu0 0.0
    %2469 = vmatpush1.msra.mxu0 0.0
    %2470 = vmatprep.subr.mxu0 0.0
    %2471 = vmatpush1.msra.mxu0 0.0
    %2472 = vmatprep.subr.mxu0 0.0
    %2473 = vmatpush1.msra.mxu0 0.0
    %2474 = vmatprep.subr.mxu0 0.0
    %2475 = vmatpush1.msra.mxu0 0.0
    %2476 = vmatprep.subr.mxu0 0.0
    %2477 = vmatpush1.msra.mxu0 0.0
    %2478 = vmatprep.subr.mxu0 0.0
    %2479 = vmatpush1.msra.mxu0 0.0
    %2480 = vmatprep.subr.mxu0 0.0
    %2481 = vmatpush1.msra.mxu0 0.0
    %2482 = vmatprep.subr.mxu0 0.0
    %2483 = vmatpush1.msra.mxu0 0.0
    %2484 = vmatprep.subr.mxu0 0.0
    %2485 = vmatpush1.msra.mxu0 0.0
    %2486 = vmatprep.mubr.f32.mxu0 0.0
    %2487 = vmatmul.mubr.f32.gmra.mrb[0].mxu0 %v2179
    %v2488 = vpop.f32.mrb[0].mxu0
    %v2489 = vadd.f32 0.0, %v2488
    %v2490 = vpop.f32.mrb[0].mxu0
    %2491 = vdwg.mxu0
    %v2492 = vadd.f32 %v2348, %v2418
    %v2493 = vmul.f32 %v2492, 0.5
    %v2494 = vtanh.pop %v2493
    %v2495 = vadd.f32 %v2494, 1.0
    %v2496 = vmul.f32 %v2495, 0.5
    %v2497 = vadd.f32 %v2349, %v2420
    %v2498 = vmul.f32 %v2497, 0.5
    %v2499 = vtanh.pop %v2498
    %v2500 = vadd.f32 %v2499, 1.0
    %v2501 = vmul.f32 %v2500, 0.5
    %v2502 = vadd.f32 %v2489, %v674
    %v2503 = vmul.f32 %v2496, %v2502
    %v2504 = vadd.f32 %v2350, %v2503
    %v2505 = vtanh.pop %v2504
    %v2506 = vsub.f32 1.0, %v2501
    %v2507 = vmul.f32 %v2506, %v2505
    %v2508 = vmul.f32 %v2501, %v2179
    %v2509 = vadd.f32 %v2507, %v2508
    %v2510 = vld [vmem:[%s1352 + $0x18] sm:$0xff]
    %v2511 = vld [vmem:[%s1352 + $0x20] sm:$0xff]
    %v2512 = vld [vmem:[%s1352 + $0x28] sm:$0xff]
    %2513 = vmatprep.subr.mxu0 %v622
    %2514 = vmatpush1.msra.mxu0 %v621
    %2515 = vmatprep.subr.mxu0 %v625
    %2516 = vmatpush1.msra.mxu0 %v624
    %2517 = vmatprep.subr.mxu0 %v628
    %2518 = vmatpush1.msra.mxu0 %v627
    %2519 = vmatprep.subr.mxu0 %v631
    %2520 = vmatpush1.msra.mxu0 %v630
    %2521 = vmatprep.subr.mxu0 %v634
    %2522 = vmatpush1.msra.mxu0 %v633
    %2523 = vmatprep.subr.mxu0 %v637
    %2524 = vmatpush1.msra.mxu0 %v636
    %2525 = vmatprep.subr.mxu0 %v640
    %2526 = vmatpush1.msra.mxu0 %v639
    %2527 = vmatprep.subr.mxu0 %v643
    %2528 = vmatpush1.msra.mxu0 %v642
    %2529 = vmatprep.subr.mxu0 %v646
    %2530 = vmatpush1.msra.mxu0 %v645
    %2531 = vmatprep.subr.mxu0 %v649
    %2532 = vmatpush1.msra.mxu0 %v648
    %2533 = vmatprep.subr.mxu0 %v652
    %2534 = vmatpush1.msra.mxu0 %v651
    %2535 = vmatprep.subr.mxu0 %v655
    %2536 = vmatpush1.msra.mxu0 %v654
    %2537 = vmatprep.subr.mxu0 %v658
    %2538 = vmatpush1.msra.mxu0 %v657
    %2539 = vmatprep.subr.mxu0 %v661
    %2540 = vmatpush1.msra.mxu0 %v660
    %2541 = vmatprep.subr.mxu0 %v664
    %2542 = vmatpush1.msra.mxu0 %v663
    %2543 = vmatprep.subr.mxu0 %v667
    %2544 = vmatpush1.msra.mxu0 %v666
    %2545 = vmatprep.subr.mxu0 0.0
    %2546 = vmatpush1.msra.mxu0 0.0
    %2547 = vmatprep.subr.mxu0 0.0
    %2548 = vmatpush1.msra.mxu0 0.0
    %2549 = vmatprep.subr.mxu0 0.0
    %2550 = vmatpush1.msra.mxu0 0.0
    %2551 = vmatprep.subr.mxu0 0.0
    %2552 = vmatpush1.msra.mxu0 0.0
    %2553 = vmatprep.subr.mxu0 0.0
    %2554 = vmatpush1.msra.mxu0 0.0
    %2555 = vmatprep.subr.mxu0 0.0
    %2556 = vmatpush1.msra.mxu0 0.0
    %2557 = vmatprep.subr.mxu0 0.0
    %2558 = vmatpush1.msra.mxu0 0.0
    %2559 = vmatprep.subr.mxu0 0.0
    %2560 = vmatpush1.msra.mxu0 0.0
    %2561 = vmatprep.subr.mxu0 0.0
    %2562 = vmatpush1.msra.mxu0 0.0
    %2563 = vmatprep.subr.mxu0 0.0
    %2564 = vmatpush1.msra.mxu0 0.0
    %2565 = vmatprep.subr.mxu0 0.0
    %2566 = vmatpush1.msra.mxu0 0.0
    %2567 = vmatprep.subr.mxu0 0.0
    %2568 = vmatpush1.msra.mxu0 0.0
    %2569 = vmatprep.subr.mxu0 0.0
    %2570 = vmatpush1.msra.mxu0 0.0
    %2571 = vmatprep.subr.mxu0 0.0
    %2572 = vmatpush1.msra.mxu0 0.0
    %2573 = vmatprep.subr.mxu0 0.0
    %2574 = vmatpush1.msra.mxu0 0.0
    %2575 = vmatprep.subr.mxu0 0.0
    %2576 = vmatpush1.msra.mxu0 0.0
    %2577 = vmatprep.mubr.f32.mxu0 0.0
    %2578 = vmatmul.mubr.f32.gmra.mrb[0].mxu0 %v2341
    %v2579 = vpop.f32.mrb[0].mxu0
    %v2580 = vadd.f32 0.0, %v2579
    %v2581 = vpop.f32.mrb[0].mxu0
    %v2582 = vadd.f32 0.0, %v2581
    %2583 = vdwg.mxu0
    %2584 = vmatprep.subr.mxu0 0.0
    %2585 = vmatpush1.msra.mxu0 %v623
    %2586 = vmatprep.subr.mxu0 0.0
    %2587 = vmatpush1.msra.mxu0 %v626
    %2588 = vmatprep.subr.mxu0 0.0
    %2589 = vmatpush1.msra.mxu0 %v629
    %2590 = vmatprep.subr.mxu0 0.0
    %2591 = vmatpush1.msra.mxu0 %v632
    %2592 = vmatprep.subr.mxu0 0.0
    %2593 = vmatpush1.msra.mxu0 %v635
    %2594 = vmatprep.subr.mxu0 0.0
    %2595 = vmatpush1.msra.mxu0 %v638
    %2596 = vmatprep.subr.mxu0 0.0
    %2597 = vmatpush1.msra.mxu0 %v641
    %2598 = vmatprep.subr.mxu0 0.0
    %2599 = vmatpush1.msra.mxu0 %v644
    %2600 = vmatprep.subr.mxu0 0.0
    %2601 = vmatpush1.msra.mxu0 %v647
    %2602 = vmatprep.subr.mxu0 0.0
    %2603 = vmatpush1.msra.mxu0 %v650
    %2604 = vmatprep.subr.mxu0 0.0
    %2605 = vmatpush1.msra.mxu0 %v653
    %2606 = vmatprep.subr.mxu0 0.0
    %2607 = vmatpush1.msra.mxu0 %v656
    %2608 = vmatprep.subr.mxu0 0.0
    %2609 = vmatpush1.msra.mxu0 %v659
    %2610 = vmatprep.subr.mxu0 0.0
    %2611 = vmatpush1.msra.mxu0 %v662
    %2612 = vmatprep.subr.mxu0 0.0
    %2613 = vmatpush1.msra.mxu0 %v665
    %2614 = vmatprep.subr.mxu0 0.0
    %2615 = vmatpush1.msra.mxu0 %v668
    %2616 = vmatprep.subr.mxu0 0.0
    %2617 = vmatpush1.msra.mxu0 0.0
    %2618 = vmatprep.subr.mxu0 0.0
    %2619 = vmatpush1.msra.mxu0 0.0
    %2620 = vmatprep.subr.mxu0 0.0
    %2621 = vmatpush1.msra.mxu0 0.0
    %2622 = vmatprep.subr.mxu0 0.0
    %2623 = vmatpush1.msra.mxu0 0.0
    %2624 = vmatprep.subr.mxu0 0.0
    %2625 = vmatpush1.msra.mxu0 0.0
    %2626 = vmatprep.subr.mxu0 0.0
    %2627 = vmatpush1.msra.mxu0 0.0
    %2628 = vmatprep.subr.mxu0 0.0
    %2629 = vmatpush1.msra.mxu0 0.0
    %2630 = vmatprep.subr.mxu0 0.0
    %2631 = vmatpush1.msra.mxu0 0.0
    %2632 = vmatprep.subr.mxu0 0.0
    %2633 = vmatpush1.msra.mxu0 0.0
    %2634 = vmatprep.subr.mxu0 0.0
    %2635 = vmatpush1.msra.mxu0 0.0
    %2636 = vmatprep.subr.mxu0 0.0
    %2637 = vmatpush1.msra.mxu0 0.0
    %2638 = vmatprep.subr.mxu0 0.0
    %2639 = vmatpush1.msra.mxu0 0.0
    %2640 = vmatprep.subr.mxu0 0.0
    %2641 = vmatpush1.msra.mxu0 0.0
    %2642 = vmatprep.subr.mxu0 0.0
    %2643 = vmatpush1.msra.mxu0 0.0
    %2644 = vmatprep.subr.mxu0 0.0
    %2645 = vmatpush1.msra.mxu0 0.0
    %2646 = vmatprep.subr.mxu0 0.0
    %2647 = vmatpush1.msra.mxu0 0.0
    %2648 = vmatprep.mubr.f32.mxu0 0.0
    %2649 = vmatmul.mubr.f32.gmra.mrb[0].mxu0 %v2341
    %v2650 = vpop.f32.mrb[0].mxu0
    %v2651 = vadd.f32 0.0, %v2650
    %v2652 = vpop.f32.mrb[0].mxu0
    %2653 = vdwg.mxu0
    %v2654 = vadd.f32 %v2510, %v2580
    %v2655 = vmul.f32 %v2654, 0.5
    %v2656 = vtanh.pop %v2655
    %v2657 = vadd.f32 %v2656, 1.0
    %v2658 = vmul.f32 %v2657, 0.5
    %v2659 = vadd.f32 %v2511, %v2582
    %v2660 = vmul.f32 %v2659, 0.5
    %v2661 = vtanh.pop %v2660
    %v2662 = vadd.f32 %v2661, 1.0
    %v2663 = vmul.f32 %v2662, 0.5
    %v2664 = vadd.f32 %v2651, %v681
    %v2665 = vmul.f32 %v2658, %v2664
    %v2666 = vadd.f32 %v2512, %v2665
    %v2667 = vtanh.pop %v2666
    %v2668 = vsub.f32 1.0, %v2663
    %v2669 = vmul.f32 %v2668, %v2667
    %v2670 = vmul.f32 %v2663, %v2341
    %v2671 = vadd.f32 %v2669, %v2670
    %v2672 = vld [vmem:[%s1682] sm:$0xff]
    %v2673 = vadd.f32 %v2672, %v2509
    %2674 = vst [vmem:[%s1682] sm:$0xff] %v2673
    %v2675 = vld [vmem:[%s1680] sm:$0xff]
    %v2676 = vadd.f32 %v2675, %v2671
    %2677 = vst [vmem:[%s1680] sm:$0xff] %v2676
    %v2678 = vld [vmem:[%s1183] sm:$0xff]
    %v2679 = vld [vmem:[%s1183 + $0x8] sm:$0xff]
    %v2680 = vld [vmem:[%s1183 + $0x10] sm:$0xff]
    %2681 = vmatprep.subr.mxu0 %v574
    %2682 = vmatpush1.msra.mxu0 %v573
    %2683 = vmatprep.subr.mxu0 %v577
    %2684 = vmatpush1.msra.mxu0 %v576
    %2685 = vmatprep.subr.mxu0 %v580
    %2686 = vmatpush1.msra.mxu0 %v579
    %2687 = vmatprep.subr.mxu0 %v583
    %2688 = vmatpush1.msra.mxu0 %v582
    %2689 = vmatprep.subr.mxu0 %v586
    %2690 = vmatpush1.msra.mxu0 %v585
    %2691 = vmatprep.subr.mxu0 %v589
    %2692 = vmatpush1.msra.mxu0 %v588
    %2693 = vmatprep.subr.mxu0 %v592
    %2694 = vmatpush1.msra.mxu0 %v591
    %2695 = vmatprep.subr.mxu0 %v595
    %2696 = vmatpush1.msra.mxu0 %v594
    %2697 = vmatprep.subr.mxu0 %v598
    %2698 = vmatpush1.msra.mxu0 %v597
    %2699 = vmatprep.subr.mxu0 %v601
    %2700 = vmatpush1.msra.mxu0 %v600
    %2701 = vmatprep.subr.mxu0 %v604
    %2702 = vmatpush1.msra.mxu0 %v603
    %2703 = vmatprep.subr.mxu0 %v607
    %2704 = vmatpush1.msra.mxu0 %v606
    %2705 = vmatprep.subr.mxu0 %v610
    %2706 = vmatpush1.msra.mxu0 %v609
    %2707 = vmatprep.subr.mxu0 %v613
    %2708 = vmatpush1.msra.mxu0 %v612
    %2709 = vmatprep.subr.mxu0 %v616
    %2710 = vmatpush1.msra.mxu0 %v615
    %2711 = vmatprep.subr.mxu0 %v619
    %2712 = vmatpush1.msra.mxu0 %v618
    %2713 = vmatprep.subr.mxu0 0.0
    %2714 = vmatpush1.msra.mxu0 0.0
    %2715 = vmatprep.subr.mxu0 0.0
    %2716 = vmatpush1.msra.mxu0 0.0
    %2717 = vmatprep.subr.mxu0 0.0
    %2718 = vmatpush1.msra.mxu0 0.0
    %2719 = vmatprep.subr.mxu0 0.0
    %2720 = vmatpush1.msra.mxu0 0.0
    %2721 = vmatprep.subr.mxu0 0.0
    %2722 = vmatpush1.msra.mxu0 0.0
    %2723 = vmatprep.subr.mxu0 0.0
    %2724 = vmatpush1.msra.mxu0 0.0
    %2725 = vmatprep.subr.mxu0 0.0
    %2726 = vmatpush1.msra.mxu0 0.0
    %2727 = vmatprep.subr.mxu0 0.0
    %2728 = vmatpush1.msra.mxu0 0.0
    %2729 = vmatprep.subr.mxu0 0.0
    %2730 = vmatpush1.msra.mxu0 0.0
    %2731 = vmatprep.subr.mxu0 0.0
    %2732 = vmatpush1.msra.mxu0 0.0
    %2733 = vmatprep.subr.mxu0 0.0
    %2734 = vmatpush1.msra.mxu0 0.0
    %2735 = vmatprep.subr.mxu0 0.0
    %2736 = vmatpush1.msra.mxu0 0.0
    %2737 = vmatprep.subr.mxu0 0.0
    %2738 = vmatpush1.msra.mxu0 0.0
    %2739 = vmatprep.subr.mxu0 0.0
    %2740 = vmatpush1.msra.mxu0 0.0
    %2741 = vmatprep.subr.mxu0 0.0
    %2742 = vmatpush1.msra.mxu0 0.0
    %2743 = vmatprep.subr.mxu0 0.0
    %2744 = vmatpush1.msra.mxu0 0.0
    %2745 = vmatprep.mubr.f32.mxu0 0.0
    %2746 = vmatmul.mubr.f32.gmra.mrb[0].mxu0 %v2509
    %v2747 = vpop.f32.mrb[0].mxu0
    %v2748 = vadd.f32 0.0, %v2747
    %v2749 = vpop.f32.mrb[0].mxu0
    %v2750 = vadd.f32 0.0, %v2749
    %2751 = vdwg.mxu0
    %2752 = vmatprep.subr.mxu0 0.0
    %2753 = vmatpush1.msra.mxu0 %v575
    %2754 = vmatprep.subr.mxu0 0.0
    %2755 = vmatpush1.msra.mxu0 %v578
    %2756 = vmatprep.subr.mxu0 0.0
    %2757 = vmatpush1.msra.mxu0 %v581
    %2758 = vmatprep.subr.mxu0 0.0
    %2759 = vmatpush1.msra.mxu0 %v584
    %2760 = vmatprep.subr.mxu0 0.0
    %2761 = vmatpush1.msra.mxu0 %v587
    %2762 = vmatprep.subr.mxu0 0.0
    %2763 = vmatpush1.msra.mxu0 %v590
    %2764 = vmatprep.subr.mxu0 0.0
    %2765 = vmatpush1.msra.mxu0 %v593
    %2766 = vmatprep.subr.mxu0 0.0
    %2767 = vmatpush1.msra.mxu0 %v596
    %2768 = vmatprep.subr.mxu0 0.0
    %2769 = vmatpush1.msra.mxu0 %v599
    %2770 = vmatprep.subr.mxu0 0.0
    %2771 = vmatpush1.msra.mxu0 %v602
    %2772 = vmatprep.subr.mxu0 0.0
    %2773 = vmatpush1.msra.mxu0 %v605
    %2774 = vmatprep.subr.mxu0 0.0
    %2775 = vmatpush1.msra.mxu0 %v608
    %2776 = vmatprep.subr.mxu0 0.0
    %2777 = vmatpush1.msra.mxu0 %v611
    %2778 = vmatprep.subr.mxu0 0.0
    %2779 = vmatpush1.msra.mxu0 %v614
    %2780 = vmatprep.subr.mxu0 0.0
    %2781 = vmatpush1.msra.mxu0 %v617
    %2782 = vmatprep.subr.mxu0 0.0
    %2783 = vmatpush1.msra.mxu0 %v620
    %2784 = vmatprep.subr.mxu0 0.0
    %2785 = vmatpush1.msra.mxu0 0.0
    %2786 = vmatprep.subr.mxu0 0.0
    %2787 = vmatpush1.msra.mxu0 0.0
    %2788 = vmatprep.subr.mxu0 0.0
    %2789 = vmatpush1.msra.mxu0 0.0
    %2790 = vmatprep.subr.mxu0 0.0
    %2791 = vmatpush1.msra.mxu0 0.0
    %2792 = vmatprep.subr.mxu0 0.0
    %2793 = vmatpush1.msra.mxu0 0.0
    %2794 = vmatprep.subr.mxu0 0.0
    %2795 = vmatpush1.msra.mxu0 0.0
    %2796 = vmatprep.subr.mxu0 0.0
    %2797 = vmatpush1.msra.mxu0 0.0
    %2798 = vmatprep.subr.mxu0 0.0
    %2799 = vmatpush1.msra.mxu0 0.0
    %2800 = vmatprep.subr.mxu0 0.0
    %2801 = vmatpush1.msra.mxu0 0.0
    %2802 = vmatprep.subr.mxu0 0.0
    %2803 = vmatpush1.msra.mxu0 0.0
    %2804 = vmatprep.subr.mxu0 0.0
    %2805 = vmatpush1.msra.mxu0 0.0
    %2806 = vmatprep.subr.mxu0 0.0
    %2807 = vmatpush1.msra.mxu0 0.0
    %2808 = vmatprep.subr.mxu0 0.0
    %2809 = vmatpush1.msra.mxu0 0.0
    %2810 = vmatprep.subr.mxu0 0.0
    %2811 = vmatpush1.msra.mxu0 0.0
    %2812 = vmatprep.subr.mxu0 0.0
    %2813 = vmatpush1.msra.mxu0 0.0
    %2814 = vmatprep.subr.mxu0 0.0
    %2815 = vmatpush1.msra.mxu0 0.0
    %2816 = vmatprep.mubr.f32.mxu0 0.0
    %2817 = vmatmul.mubr.f32.gmra.mrb[0].mxu0 %v2509
    %v2818 = vpop.f32.mrb[0].mxu0
    %v2819 = vadd.f32 0.0, %v2818
    %v2820 = vpop.f32.mrb[0].mxu0
    %2821 = vdwg.mxu0
    %v2822 = vadd.f32 %v2678, %v2748
    %v2823 = vmul.f32 %v2822, 0.5
    %v2824 = vtanh.pop %v2823
    %v2825 = vadd.f32 %v2824, 1.0
    %v2826 = vmul.f32 %v2825, 0.5
    %v2827 = vadd.f32 %v2679, %v2750
    %v2828 = vmul.f32 %v2827, 0.5
    %v2829 = vtanh.pop %v2828
    %v2830 = vadd.f32 %v2829, 1.0
    %v2831 = vmul.f32 %v2830, 0.5
    %v2832 = vadd.f32 %v2819, %v674
    %v2833 = vmul.f32 %v2826, %v2832
    %v2834 = vadd.f32 %v2680, %v2833
    %v2835 = vtanh.pop %v2834
    %v2836 = vsub.f32 1.0, %v2831
    %v2837 = vmul.f32 %v2836, %v2835
    %v2838 = vmul.f32 %v2831, %v2509
    %v2839 = vadd.f32 %v2837, %v2838
    %v2840 = vld [vmem:[%s1018 + $0x18] sm:$0xff]
    %v2841 = vld [vmem:[%s1018 + $0x20] sm:$0xff]
    %v2842 = vld [vmem:[%s1018 + $0x28] sm:$0xff]
    %2843 = vmatprep.subr.mxu0 %v622
    %2844 = vmatpush1.msra.mxu0 %v621
    %2845 = vmatprep.subr.mxu0 %v625
    %2846 = vmatpush1.msra.mxu0 %v624
    %2847 = vmatprep.subr.mxu0 %v628
    %2848 = vmatpush1.msra.mxu0 %v627
    %2849 = vmatprep.subr.mxu0 %v631
    %2850 = vmatpush1.msra.mxu0 %v630
    %2851 = vmatprep.subr.mxu0 %v634
    %2852 = vmatpush1.msra.mxu0 %v633
    %2853 = vmatprep.subr.mxu0 %v637
    %2854 = vmatpush1.msra.mxu0 %v636
    %2855 = vmatprep.subr.mxu0 %v640
    %2856 = vmatpush1.msra.mxu0 %v639
    %2857 = vmatprep.subr.mxu0 %v643
    %2858 = vmatpush1.msra.mxu0 %v642
    %2859 = vmatprep.subr.mxu0 %v646
    %2860 = vmatpush1.msra.mxu0 %v645
    %2861 = vmatprep.subr.mxu0 %v649
    %2862 = vmatpush1.msra.mxu0 %v648
    %2863 = vmatprep.subr.mxu0 %v652
    %2864 = vmatpush1.msra.mxu0 %v651
    %2865 = vmatprep.subr.mxu0 %v655
    %2866 = vmatpush1.msra.mxu0 %v654
    %2867 = vmatprep.subr.mxu0 %v658
    %2868 = vmatpush1.msra.mxu0 %v657
    %2869 = vmatprep.subr.mxu0 %v661
    %2870 = vmatpush1.msra.mxu0 %v660
    %2871 = vmatprep.subr.mxu0 %v664
    %2872 = vmatpush1.msra.mxu0 %v663
    %2873 = vmatprep.subr.mxu0 %v667
    %2874 = vmatpush1.msra.mxu0 %v666
    %2875 = vmatprep.subr.mxu0 0.0
    %2876 = vmatpush1.msra.mxu0 0.0
    %2877 = vmatprep.subr.mxu0 0.0
    %2878 = vmatpush1.msra.mxu0 0.0
    %2879 = vmatprep.subr.mxu0 0.0
    %2880 = vmatpush1.msra.mxu0 0.0
    %2881 = vmatprep.subr.mxu0 0.0
    %2882 = vmatpush1.msra.mxu0 0.0
    %2883 = vmatprep.subr.mxu0 0.0
    %2884 = vmatpush1.msra.mxu0 0.0
    %2885 = vmatprep.subr.mxu0 0.0
    %2886 = vmatpush1.msra.mxu0 0.0
    %2887 = vmatprep.subr.mxu0 0.0
    %2888 = vmatpush1.msra.mxu0 0.0
    %2889 = vmatprep.subr.mxu0 0.0
    %2890 = vmatpush1.msra.mxu0 0.0
    %2891 = vmatprep.subr.mxu0 0.0
    %2892 = vmatpush1.msra.mxu0 0.0
    %2893 = vmatprep.subr.mxu0 0.0
    %2894 = vmatpush1.msra.mxu0 0.0
    %2895 = vmatprep.subr.mxu0 0.0
    %2896 = vmatpush1.msra.mxu0 0.0
    %2897 = vmatprep.subr.mxu0 0.0
    %2898 = vmatpush1.msra.mxu0 0.0
    %2899 = vmatprep.subr.mxu0 0.0
    %2900 = vmatpush1.msra.mxu0 0.0
    %2901 = vmatprep.subr.mxu0 0.0
    %2902 = vmatpush1.msra.mxu0 0.0
    %2903 = vmatprep.subr.mxu0 0.0
    %2904 = vmatpush1.msra.mxu0 0.0
    %2905 = vmatprep.subr.mxu0 0.0
    %2906 = vmatpush1.msra.mxu0 0.0
    %2907 = vmatprep.mubr.f32.mxu0 0.0
    %2908 = vmatmul.mubr.f32.gmra.mrb[0].mxu0 %v2671
    %v2909 = vpop.f32.mrb[0].mxu0
    %v2910 = vadd.f32 0.0, %v2909
    %v2911 = vpop.f32.mrb[0].mxu0
    %v2912 = vadd.f32 0.0, %v2911
    %2913 = vdwg.mxu0
    %2914 = vmatprep.subr.mxu0 0.0
    %2915 = vmatpush1.msra.mxu0 %v623
    %2916 = vmatprep.subr.mxu0 0.0
    %2917 = vmatpush1.msra.mxu0 %v626
    %2918 = vmatprep.subr.mxu0 0.0
    %2919 = vmatpush1.msra.mxu0 %v629
    %2920 = vmatprep.subr.mxu0 0.0
    %2921 = vmatpush1.msra.mxu0 %v632
    %2922 = vmatprep.subr.mxu0 0.0
    %2923 = vmatpush1.msra.mxu0 %v635
    %2924 = vmatprep.subr.mxu0 0.0
    %2925 = vmatpush1.msra.mxu0 %v638
    %2926 = vmatprep.subr.mxu0 0.0
    %2927 = vmatpush1.msra.mxu0 %v641
    %2928 = vmatprep.subr.mxu0 0.0
    %2929 = vmatpush1.msra.mxu0 %v644
    %2930 = vmatprep.subr.mxu0 0.0
    %2931 = vmatpush1.msra.mxu0 %v647
    %2932 = vmatprep.subr.mxu0 0.0
    %2933 = vmatpush1.msra.mxu0 %v650
    %2934 = vmatprep.subr.mxu0 0.0
    %2935 = vmatpush1.msra.mxu0 %v653
    %2936 = vmatprep.subr.mxu0 0.0
    %2937 = vmatpush1.msra.mxu0 %v656
    %2938 = vmatprep.subr.mxu0 0.0
    %2939 = vmatpush1.msra.mxu0 %v659
    %2940 = vmatprep.subr.mxu0 0.0
    %2941 = vmatpush1.msra.mxu0 %v662
    %2942 = vmatprep.subr.mxu0 0.0
    %2943 = vmatpush1.msra.mxu0 %v665
    %2944 = vmatprep.subr.mxu0 0.0
    %2945 = vmatpush1.msra.mxu0 %v668
    %2946 = vmatprep.subr.mxu0 0.0
    %2947 = vmatpush1.msra.mxu0 0.0
    %2948 = vmatprep.subr.mxu0 0.0
    %2949 = vmatpush1.msra.mxu0 0.0
    %2950 = vmatprep.subr.mxu0 0.0
    %2951 = vmatpush1.msra.mxu0 0.0
    %2952 = vmatprep.subr.mxu0 0.0
    %2953 = vmatpush1.msra.mxu0 0.0
    %2954 = vmatprep.subr.mxu0 0.0
    %2955 = vmatpush1.msra.mxu0 0.0
    %2956 = vmatprep.subr.mxu0 0.0
    %2957 = vmatpush1.msra.mxu0 0.0
    %2958 = vmatprep.subr.mxu0 0.0
    %2959 = vmatpush1.msra.mxu0 0.0
    %2960 = vmatprep.subr.mxu0 0.0
    %2961 = vmatpush1.msra.mxu0 0.0
    %2962 = vmatprep.subr.mxu0 0.0
    %2963 = vmatpush1.msra.mxu0 0.0
    %2964 = vmatprep.subr.mxu0 0.0
    %2965 = vmatpush1.msra.mxu0 0.0
    %2966 = vmatprep.subr.mxu0 0.0
    %2967 = vmatpush1.msra.mxu0 0.0
    %2968 = vmatprep.subr.mxu0 0.0
    %2969 = vmatpush1.msra.mxu0 0.0
    %2970 = vmatprep.subr.mxu0 0.0
    %2971 = vmatpush1.msra.mxu0 0.0
    %2972 = vmatprep.subr.mxu0 0.0
    %2973 = vmatpush1.msra.mxu0 0.0
    %2974 = vmatprep.subr.mxu0 0.0
    %2975 = vmatpush1.msra.mxu0 0.0
    %2976 = vmatprep.subr.mxu0 0.0
    %2977 = vmatpush1.msra.mxu0 0.0
    %2978 = vmatprep.mubr.f32.mxu0 0.0
    %2979 = vmatmul.mubr.f32.gmra.mrb[0].mxu0 %v2671
    %v2980 = vpop.f32.mrb[0].mxu0
    %v2981 = vadd.f32 0.0, %v2980
    %v2982 = vpop.f32.mrb[0].mxu0
    %2983 = vdwg.mxu0
    %v2984 = vadd.f32 %v2840, %v2910
    %v2985 = vmul.f32 %v2984, 0.5
    %v2986 = vtanh.pop %v2985
    %v2987 = vadd.f32 %v2986, 1.0
    %v2988 = vmul.f32 %v2987, 0.5
    %v2989 = vadd.f32 %v2841, %v2912
    %v2990 = vmul.f32 %v2989, 0.5
    %v2991 = vtanh.pop %v2990
    %v2992 = vadd.f32 %v2991, 1.0
    %v2993 = vmul.f32 %v2992, 0.5
    %v2994 = vadd.f32 %v2981, %v681
    %v2995 = vmul.f32 %v2988, %v2994
    %v2996 = vadd.f32 %v2842, %v2995
    %v2997 = vtanh.pop %v2996
    %v2998 = vsub.f32 1.0, %v2993
    %v2999 = vmul.f32 %v2998, %v2997
    %v3000 = vmul.f32 %v2993, %v2671
    %v3001 = vadd.f32 %v2999, %v3000
    %v3002 = vld [vmem:[%s1348] sm:$0xff]
    %v3003 = vadd.f32 %v3002, %v2839
    %3004 = vst [vmem:[%s1348] sm:$0xff] %v3003
    %v3005 = vld [vmem:[%s1346] sm:$0xff]
    %v3006 = vadd.f32 %v3005, %v3001
    %3007 = vst [vmem:[%s1346] sm:$0xff] %v3006
    %v3008 = vld [vmem:[%s850] sm:$0xff]
    %v3009 = vld [vmem:[%s850 + $0x8] sm:$0xff]
    %v3010 = vld [vmem:[%s850 + $0x10] sm:$0xff]
    %3011 = vmatprep.subr.mxu0 %v574
    %3012 = vmatpush1.msra.mxu0 %v573
    %3013 = vmatprep.subr.mxu0 %v577
    %3014 = vmatpush1.msra.mxu0 %v576
    %3015 = vmatprep.subr.mxu0 %v580
    %3016 = vmatpush1.msra.mxu0 %v579
    %3017 = vmatprep.subr.mxu0 %v583
    %3018 = vmatpush1.msra.mxu0 %v582
    %3019 = vmatprep.subr.mxu0 %v586
    %3020 = vmatpush1.msra.mxu0 %v585
    %3021 = vmatprep.subr.mxu0 %v589
    %3022 = vmatpush1.msra.mxu0 %v588
    %3023 = vmatprep.subr.mxu0 %v592
    %3024 = vmatpush1.msra.mxu0 %v591
    %3025 = vmatprep.subr.mxu0 %v595
    %3026 = vmatpush1.msra.mxu0 %v594
    %3027 = vmatprep.subr.mxu0 %v598
    %3028 = vmatpush1.msra.mxu0 %v597
    %3029 = vmatprep.subr.mxu0 %v601
    %3030 = vmatpush1.msra.mxu0 %v600
    %3031 = vmatprep.subr.mxu0 %v604
    %3032 = vmatpush1.msra.mxu0 %v603
    %3033 = vmatprep.subr.mxu0 %v607
    %3034 = vmatpush1.msra.mxu0 %v606
    %3035 = vmatprep.subr.mxu0 %v610
    %3036 = vmatpush1.msra.mxu0 %v609
    %3037 = vmatprep.subr.mxu0 %v613
    %3038 = vmatpush1.msra.mxu0 %v612
    %3039 = vmatprep.subr.mxu0 %v616
    %3040 = vmatpush1.msra.mxu0 %v615
    %3041 = vmatprep.subr.mxu0 %v619
    %3042 = vmatpush1.msra.mxu0 %v618
    %3043 = vmatprep.subr.mxu0 0.0
    %3044 = vmatpush1.msra.mxu0 0.0
    %3045 = vmatprep.subr.mxu0 0.0
    %3046 = vmatpush1.msra.mxu0 0.0
    %3047 = vmatprep.subr.mxu0 0.0
    %3048 = vmatpush1.msra.mxu0 0.0
    %3049 = vmatprep.subr.mxu0 0.0
    %3050 = vmatpush1.msra.mxu0 0.0
    %3051 = vmatprep.subr.mxu0 0.0
    %3052 = vmatpush1.msra.mxu0 0.0
    %3053 = vmatprep.subr.mxu0 0.0
    %3054 = vmatpush1.msra.mxu0 0.0
    %3055 = vmatprep.subr.mxu0 0.0
    %3056 = vmatpush1.msra.mxu0 0.0
    %3057 = vmatprep.subr.mxu0 0.0
    %3058 = vmatpush1.msra.mxu0 0.0
    %3059 = vmatprep.subr.mxu0 0.0
    %3060 = vmatpush1.msra.mxu0 0.0
    %3061 = vmatprep.subr.mxu0 0.0
    %3062 = vmatpush1.msra.mxu0 0.0
    %3063 = vmatprep.subr.mxu0 0.0
    %3064 = vmatpush1.msra.mxu0 0.0
    %3065 = vmatprep.subr.mxu0 0.0
    %3066 = vmatpush1.msra.mxu0 0.0
    %3067 = vmatprep.subr.mxu0 0.0
    %3068 = vmatpush1.msra.mxu0 0.0
    %3069 = vmatprep.subr.mxu0 0.0
    %3070 = vmatpush1.msra.mxu0 0.0
    %3071 = vmatprep.subr.mxu0 0.0
    %3072 = vmatpush1.msra.mxu0 0.0
    %3073 = vmatprep.subr.mxu0 0.0
    %3074 = vmatpush1.msra.mxu0 0.0
    %3075 = vmatprep.mubr.f32.mxu0 0.0
    %3076 = vmatmul.mubr.f32.gmra.mrb[0].mxu0 %v2839
    %v3077 = vpop.f32.mrb[0].mxu0
    %v3078 = vadd.f32 0.0, %v3077
    %v3079 = vpop.f32.mrb[0].mxu0
    %v3080 = vadd.f32 0.0, %v3079
    %3081 = vdwg.mxu0
    %3082 = vmatprep.subr.mxu0 0.0
    %3083 = vmatpush1.msra.mxu0 %v575
    %3084 = vmatprep.subr.mxu0 0.0
    %3085 = vmatpush1.msra.mxu0 %v578
    %3086 = vmatprep.subr.mxu0 0.0
    %3087 = vmatpush1.msra.mxu0 %v581
    %3088 = vmatprep.subr.mxu0 0.0
    %3089 = vmatpush1.msra.mxu0 %v584
    %3090 = vmatprep.subr.mxu0 0.0
    %3091 = vmatpush1.msra.mxu0 %v587
    %3092 = vmatprep.subr.mxu0 0.0
    %3093 = vmatpush1.msra.mxu0 %v590
    %3094 = vmatprep.subr.mxu0 0.0
    %3095 = vmatpush1.msra.mxu0 %v593
    %3096 = vmatprep.subr.mxu0 0.0
    %3097 = vmatpush1.msra.mxu0 %v596
    %3098 = vmatprep.subr.mxu0 0.0
    %3099 = vmatpush1.msra.mxu0 %v599
    %3100 = vmatprep.subr.mxu0 0.0
    %3101 = vmatpush1.msra.mxu0 %v602
    %3102 = vmatprep.subr.mxu0 0.0
    %3103 = vmatpush1.msra.mxu0 %v605
    %3104 = vmatprep.subr.mxu0 0.0
    %3105 = vmatpush1.msra.mxu0 %v608
    %3106 = vmatprep.subr.mxu0 0.0
    %3107 = vmatpush1.msra.mxu0 %v611
    %3108 = vmatprep.subr.mxu0 0.0
    %3109 = vmatpush1.msra.mxu0 %v614
    %3110 = vmatprep.subr.mxu0 0.0
    %3111 = vmatpush1.msra.mxu0 %v617
    %3112 = vmatprep.subr.mxu0 0.0
    %3113 = vmatpush1.msra.mxu0 %v620
    %3114 = vmatprep.subr.mxu0 0.0
    %3115 = vmatpush1.msra.mxu0 0.0
    %3116 = vmatprep.subr.mxu0 0.0
    %3117 = vmatpush1.msra.mxu0 0.0
    %3118 = vmatprep.subr.mxu0 0.0
    %3119 = vmatpush1.msra.mxu0 0.0
    %3120 = vmatprep.subr.mxu0 0.0
    %3121 = vmatpush1.msra.mxu0 0.0
    %3122 = vmatprep.subr.mxu0 0.0
    %3123 = vmatpush1.msra.mxu0 0.0
    %3124 = vmatprep.subr.mxu0 0.0
    %3125 = vmatpush1.msra.mxu0 0.0
    %3126 = vmatprep.subr.mxu0 0.0
    %3127 = vmatpush1.msra.mxu0 0.0
    %3128 = vmatprep.subr.mxu0 0.0
    %3129 = vmatpush1.msra.mxu0 0.0
    %3130 = vmatprep.subr.mxu0 0.0
    %3131 = vmatpush1.msra.mxu0 0.0
    %3132 = vmatprep.subr.mxu0 0.0
    %3133 = vmatpush1.msra.mxu0 0.0
    %3134 = vmatprep.subr.mxu0 0.0
    %3135 = vmatpush1.msra.mxu0 0.0
    %3136 = vmatprep.subr.mxu0 0.0
    %3137 = vmatpush1.msra.mxu0 0.0
    %3138 = vmatprep.subr.mxu0 0.0
    %3139 = vmatpush1.msra.mxu0 0.0
    %3140 = vmatprep.subr.mxu0 0.0
    %3141 = vmatpush1.msra.mxu0 0.0
    %3142 = vmatprep.subr.mxu0 0.0
    %3143 = vmatpush1.msra.mxu0 0.0
    %3144 = vmatprep.subr.mxu0 0.0
    %3145 = vmatpush1.msra.mxu0 0.0
    %3146 = vmatprep.mubr.f32.mxu0 0.0
    %3147 = vmatmul.mubr.f32.gmra.mrb[0].mxu0 %v2839
    %v3148 = vpop.f32.mrb[0].mxu0
    %v3149 = vadd.f32 0.0, %v3148
    %v3150 = vpop.f32.mrb[0].mxu0
    %3151 = vdwg.mxu0
    %v3152 = vadd.f32 %v3008, %v3078
    %v3153 = vmul.f32 %v3152, 0.5
    %v3154 = vtanh.pop %v3153
    %v3155 = vadd.f32 %v3154, 1.0
    %v3156 = vmul.f32 %v3155, 0.5
    %v3157 = vadd.f32 %v3009, %v3080
    %v3158 = vmul.f32 %v3157, 0.5
    %v3159 = vtanh.pop %v3158
    %v3160 = vadd.f32 %v3159, 1.0
    %v3161 = vmul.f32 %v3160, 0.5
    %v3162 = vadd.f32 %v3149, %v674
    %v3163 = vmul.f32 %v3156, %v3162
    %v3164 = vadd.f32 %v3010, %v3163
    %v3165 = vtanh.pop %v3164
    %v3166 = vsub.f32 1.0, %v3161
    %v3167 = vmul.f32 %v3166, %v3165
    %v3168 = vmul.f32 %v3161, %v2839
    %v3169 = vadd.f32 %v3167, %v3168
    %v3170 = vld [vmem:[%s685 + $0x18] sm:$0xff]
    %v3171 = vld [vmem:[%s685 + $0x20] sm:$0xff]
    %v3172 = vld [vmem:[%s685 + $0x28] sm:$0xff]
    %3173 = vmatprep.subr.mxu0 %v622
    %3174 = vmatpush1.msra.mxu0 %v621
    %3175 = vmatprep.subr.mxu0 %v625
    %3176 = vmatpush1.msra.mxu0 %v624
    %3177 = vmatprep.subr.mxu0 %v628
    %3178 = vmatpush1.msra.mxu0 %v627
    %3179 = vmatprep.subr.mxu0 %v631
    %3180 = vmatpush1.msra.mxu0 %v630
    %3181 = vmatprep.subr.mxu0 %v634
    %3182 = vmatpush1.msra.mxu0 %v633
    %3183 = vmatprep.subr.mxu0 %v637
    %3184 = vmatpush1.msra.mxu0 %v636
    %3185 = vmatprep.subr.mxu0 %v640
    %3186 = vmatpush1.msra.mxu0 %v639
    %3187 = vmatprep.subr.mxu0 %v643
    %3188 = vmatpush1.msra.mxu0 %v642
    %3189 = vmatprep.subr.mxu0 %v646
    %3190 = vmatpush1.msra.mxu0 %v645
    %3191 = vmatprep.subr.mxu0 %v649
    %3192 = vmatpush1.msra.mxu0 %v648
    %3193 = vmatprep.subr.mxu0 %v652
    %3194 = vmatpush1.msra.mxu0 %v651
    %3195 = vmatprep.subr.mxu0 %v655
    %3196 = vmatpush1.msra.mxu0 %v654
    %3197 = vmatprep.subr.mxu0 %v658
    %3198 = vmatpush1.msra.mxu0 %v657
    %3199 = vmatprep.subr.mxu0 %v661
    %3200 = vmatpush1.msra.mxu0 %v660
    %3201 = vmatprep.subr.mxu0 %v664
    %3202 = vmatpush1.msra.mxu0 %v663
    %3203 = vmatprep.subr.mxu0 %v667
    %3204 = vmatpush1.msra.mxu0 %v666
    %3205 = vmatprep.subr.mxu0 0.0
    %3206 = vmatpush1.msra.mxu0 0.0
    %3207 = vmatprep.subr.mxu0 0.0
    %3208 = vmatpush1.msra.mxu0 0.0
    %3209 = vmatprep.subr.mxu0 0.0
    %3210 = vmatpush1.msra.mxu0 0.0
    %3211 = vmatprep.subr.mxu0 0.0
    %3212 = vmatpush1.msra.mxu0 0.0
    %3213 = vmatprep.subr.mxu0 0.0
    %3214 = vmatpush1.msra.mxu0 0.0
    %3215 = vmatprep.subr.mxu0 0.0
    %3216 = vmatpush1.msra.mxu0 0.0
    %3217 = vmatprep.subr.mxu0 0.0
    %3218 = vmatpush1.msra.mxu0 0.0
    %3219 = vmatprep.subr.mxu0 0.0
    %3220 = vmatpush1.msra.mxu0 0.0
    %3221 = vmatprep.subr.mxu0 0.0
    %3222 = vmatpush1.msra.mxu0 0.0
    %3223 = vmatprep.subr.mxu0 0.0
    %3224 = vmatpush1.msra.mxu0 0.0
    %3225 = vmatprep.subr.mxu0 0.0
    %3226 = vmatpush1.msra.mxu0 0.0
    %3227 = vmatprep.subr.mxu0 0.0
    %3228 = vmatpush1.msra.mxu0 0.0
    %3229 = vmatprep.subr.mxu0 0.0
    %3230 = vmatpush1.msra.mxu0 0.0
    %3231 = vmatprep.subr.mxu0 0.0
    %3232 = vmatpush1.msra.mxu0 0.0
    %3233 = vmatprep.subr.mxu0 0.0
    %3234 = vmatpush1.msra.mxu0 0.0
    %3235 = vmatprep.subr.mxu0 0.0
    %3236 = vmatpush1.msra.mxu0 0.0
    %3237 = vmatprep.mubr.f32.mxu0 0.0
    %3238 = vmatmul.mubr.f32.gmra.mrb[0].mxu0 %v3001
    %v3239 = vpop.f32.mrb[0].mxu0
    %v3240 = vadd.f32 0.0, %v3239
    %v3241 = vpop.f32.mrb[0].mxu0
    %v3242 = vadd.f32 0.0, %v3241
    %3243 = vdwg.mxu0
    %3244 = vmatprep.subr.mxu0 0.0
    %3245 = vmatpush1.msra.mxu0 %v623
    %3246 = vmatprep.subr.mxu0 0.0
    %3247 = vmatpush1.msra.mxu0 %v626
    %3248 = vmatprep.subr.mxu0 0.0
    %3249 = vmatpush1.msra.mxu0 %v629
    %3250 = vmatprep.subr.mxu0 0.0
    %3251 = vmatpush1.msra.mxu0 %v632
    %3252 = vmatprep.subr.mxu0 0.0
    %3253 = vmatpush1.msra.mxu0 %v635
    %3254 = vmatprep.subr.mxu0 0.0
    %3255 = vmatpush1.msra.mxu0 %v638
    %3256 = vmatprep.subr.mxu0 0.0
    %3257 = vmatpush1.msra.mxu0 %v641
    %3258 = vmatprep.subr.mxu0 0.0
    %3259 = vmatpush1.msra.mxu0 %v644
    %3260 = vmatprep.subr.mxu0 0.0
    %3261 = vmatpush1.msra.mxu0 %v647
    %3262 = vmatprep.subr.mxu0 0.0
    %3263 = vmatpush1.msra.mxu0 %v650
    %3264 = vmatprep.subr.mxu0 0.0
    %3265 = vmatpush1.msra.mxu0 %v653
    %3266 = vmatprep.subr.mxu0 0.0
    %3267 = vmatpush1.msra.mxu0 %v656
    %3268 = vmatprep.subr.mxu0 0.0
    %3269 = vmatpush1.msra.mxu0 %v659
    %3270 = vmatprep.subr.mxu0 0.0
    %3271 = vmatpush1.msra.mxu0 %v662
    %3272 = vmatprep.subr.mxu0 0.0
    %3273 = vmatpush1.msra.mxu0 %v665
    %3274 = vmatprep.subr.mxu0 0.0
    %3275 = vmatpush1.msra.mxu0 %v668
    %3276 = vmatprep.subr.mxu0 0.0
    %3277 = vmatpush1.msra.mxu0 0.0
    %3278 = vmatprep.subr.mxu0 0.0
    %3279 = vmatpush1.msra.mxu0 0.0
    %3280 = vmatprep.subr.mxu0 0.0
    %3281 = vmatpush1.msra.mxu0 0.0
    %3282 = vmatprep.subr.mxu0 0.0
    %3283 = vmatpush1.msra.mxu0 0.0
    %3284 = vmatprep.subr.mxu0 0.0
    %3285 = vmatpush1.msra.mxu0 0.0
    %3286 = vmatprep.subr.mxu0 0.0
    %3287 = vmatpush1.msra.mxu0 0.0
    %3288 = vmatprep.subr.mxu0 0.0
    %3289 = vmatpush1.msra.mxu0 0.0
    %3290 = vmatprep.subr.mxu0 0.0
    %3291 = vmatpush1.msra.mxu0 0.0
    %3292 = vmatprep.subr.mxu0 0.0
    %3293 = vmatpush1.msra.mxu0 0.0
    %3294 = vmatprep.subr.mxu0 0.0
    %3295 = vmatpush1.msra.mxu0 0.0
    %3296 = vmatprep.subr.mxu0 0.0
    %3297 = vmatpush1.msra.mxu0 0.0
    %3298 = vmatprep.subr.mxu0 0.0
    %3299 = vmatpush1.msra.mxu0 0.0
    %3300 = vmatprep.subr.mxu0 0.0
    %3301 = vmatpush1.msra.mxu0 0.0
    %3302 = vmatprep.subr.mxu0 0.0
    %3303 = vmatpush1.msra.mxu0 0.0
    %3304 = vmatprep.subr.mxu0 0.0
    %3305 = vmatpush1.msra.mxu0 0.0
    %3306 = vmatprep.subr.mxu0 0.0
    %3307 = vmatpush1.msra.mxu0 0.0
    %3308 = vmatprep.mubr.f32.mxu0 0.0
    %3309 = vmatmul.mubr.f32.gmra.mrb[0].mxu0 %v3001
    %v3310 = vpop.f32.mrb[0].mxu0
    %v3311 = vadd.f32 0.0, %v3310
    %v3312 = vpop.f32.mrb[0].mxu0
    %3313 = vdwg.mxu0
    %v3314 = vadd.f32 %v3170, %v3240
    %v3315 = vmul.f32 %v3314, 0.5
    %v3316 = vtanh.pop %v3315
    %v3317 = vadd.f32 %v3316, 1.0
    %v3318 = vmul.f32 %v3317, 0.5
    %v3319 = vadd.f32 %v3171, %v3242
    %v3320 = vmul.f32 %v3319, 0.5
    %v3321 = vtanh.pop %v3320
    %v3322 = vadd.f32 %v3321, 1.0
    %v3323 = vmul.f32 %v3322, 0.5
    %v3324 = vadd.f32 %v3311, %v681
    %v3325 = vmul.f32 %v3318, %v3324
    %v3326 = vadd.f32 %v3172, %v3325
    %v3327 = vtanh.pop %v3326
    %v3328 = vsub.f32 1.0, %v3323
    %v3329 = vmul.f32 %v3328, %v3327
    %v3330 = vmul.f32 %v3323, %v3001
    %v3331 = vadd.f32 %v3329, %v3330
    %v3332 = vld [vmem:[%s1014] sm:$0xff]
    %v3333 = vadd.f32 %v3332, %v3169
    %3334 = vst [vmem:[%s1014] sm:$0xff] %v3333
    %v3335 = vld [vmem:[#allocation11] sm:$0xff]
    %v3336 = vadd.f32 %v3335, %v3331
    %3337 = vst [vmem:[#allocation11] sm:$0xff] %v3336
    %3338 = vst [vmem:[#allocation12] sm:$0xff] %v3169
    %s3339 = scalar_lea.vmem [#allocation12], 8
    %3340 = vst [vmem:[%s3339] sm:$0xff] %v3331
    // Predicated region
    $region42: #{tpu_custom_call.1} parent=1 // pred_check
      _
    $region43: #{tpu_custom_call.1} parent=1 // pred_check_branch
      %3342 = sbr.rel (0) target = $region45
    $region44: #{tpu_custom_call.1} parent=1 // pred_region
      %s3344 = ssub.s32 1024, 1024
      %3345 = vsyncadd [#allocation5], %s3344
      %s3346 = sshll.u32 [#allocation11], 4
      %s3347 = int_to_ptr.vmem [resolvable:$true] %s3346
      %3352 = dma.vmem_to_hbm [thread:$0]  %s3347, 1024, %s6, [#allocation5], 128, 128, 8
    $region45: #{tpu_custom_call.1} parent=1 // pred_fallthru
      _
    // Predicated region
    $region46: #{tpu_custom_call.1} parent=1 // pred_check
      _
    $region47: #{tpu_custom_call.1} parent=1 // pred_check_branch
      %3354 = sbr.rel (0) target = $region49
    $region48: #{tpu_custom_call.1} parent=1 // pred_region
      %s3356 = ssub.s32 256, 256
      %3357 = vsyncadd [#allocation13], %s3356
      %s3358 = sshll.u32 [#allocation12], 4
      %s3359 = int_to_ptr.vmem [resolvable:$true] %s3358
      %3364 = dma.vmem_to_hbm [thread:$0]  %s3359, 256, %s7, [#allocation13], 128, 128, 8
    $region49: #{tpu_custom_call.1} parent=1 // pred_fallthru
      _
    // Predicated region
    $region50: #{tpu_custom_call.1} parent=1 // pred_check
      _
    $region51: #{tpu_custom_call.1} parent=1 // pred_check_branch
      %3366 = sbr.rel (0) target = $region53
    $region52: #{tpu_custom_call.1} parent=1 // pred_region
      %3367 = dma.done [#allocation5], 1024
    $region53: #{tpu_custom_call.1} parent=1 // pred_fallthru
      _
    // Predicated region
    $region54: #{tpu_custom_call.1} parent=1 // pred_check
      _
    $region55: #{tpu_custom_call.1} parent=1 // pred_check_branch
      %3369 = sbr.rel (0) target = $region57
    $region56: #{tpu_custom_call.1} parent=1 // pred_region
      %3370 = dma.done [#allocation13], 256
    $region57: #{tpu_custom_call.1} parent=1 // pred_fallthru
      _
    %3371 = vsyncpa [#allocation4], 1
    %3372 = vsyncpa [#allocation7], 1
    %3373 = vsyncpa [#allocation10], 1
    %3374 = vsyncpa [#allocation5], 1
    %3375 = vsyncpa [#allocation13], 1

</llo_original>
